<compile_context>
chip_gen: v7x
topology: tpu7x:2x2x1
jax: 0.10.0
libtpu: 0.0.40
codegen_flags: <defaults>
</compile_context>

<pallas_src>
import jax
import jax.numpy as jnp
from jax import lax
from jax.experimental import pallas as pl
from jax.experimental.pallas import tpu as pltpu

# Module hyper-parameters (from the PyTorch script)
INPUT_DIM = 1
HIDDEN_DIM = 50
BATCH_SIZE = 32
OUTPUT_DIM = 40
NUM_LAYERS = 2
LATENT_DIM = 2
SEQ_LEN = 8  # small sequence length for the example

# Lane-aligned padded sizes
HP = 128            # per-gate / hidden padded width (1 vreg lane span)
G4 = 4 * HP         # padded gate dimension (i, f, o, g)
LP = 128            # padded latent width
OP = 128            # padded output width


def lstm_kernel(
    xw0_ref,      # (T, B, G4)  precomputed x @ W_ih_l0^T + b0 (gate-padded, order i,f,o,g)
    whh0_ref,     # (HP, G4)    layer-0 hidden weights (transposed, padded)
    w1cat_ref,    # (2*HP, G4)  layer-1 fused [W_ih; W_hh] (transposed, padded)
    b1_ref,       # (B, G4)     layer-1 combined bias, pre-broadcast
    w_lin1_ref,   # (HP, LP)
    b_lin1_ref,   # (1, LP)
    w_lin2_ref,   # (LP, OP)
    b_lin2_ref,   # (1, OP)
    out_ref,      # (B, OP)
):
    T = xw0_ref.shape[0]
    B = xw0_ref.shape[1]

    def gates_to_hc(gates, c):
        # gate layout: [i | f | o | g], each HP=128 lanes -> all slices vreg-aligned.
        sig = jax.nn.sigmoid(gates[:, : 3 * HP])
        i_g = sig[:, 0 * HP:1 * HP]
        f_g = sig[:, 1 * HP:2 * HP]
        o_g = sig[:, 2 * HP:3 * HP]
        g_g = jnp.tanh(gates[:, 3 * HP:4 * HP])
        c_new = f_g * c + i_g * g_g
        h_new = o_g * jnp.tanh(c_new)
        return h_new, c_new

    def body(t, carry):
        h0, c0, h1, c1 = carry
        # Layer 0: input projection + bias precomputed outside; only hidden matmul here.
        g0 = xw0_ref[t] + jnp.dot(
            h0, whh0_ref[...], preferred_element_type=jnp.float32
        )
        h0, c0 = gates_to_hc(g0, c0)
        # Layer 1: fused input/hidden matmul (single MXU round trip per cell).
        hin = jnp.concatenate([h0, h1], axis=-1)          # (B, 2*HP)
        g1 = (
            jnp.dot(hin, w1cat_ref[...], preferred_element_type=jnp.float32)
            + b1_ref[...]
        )
        h1, c1 = gates_to_hc(g1, c1)
        return (h0, c0, h1, c1)

    zeros = jnp.zeros((B, HP), jnp.float32)
    _, _, h1, _ = lax.fori_loop(
        0, T, body, (zeros, zeros, zeros, zeros), unroll=True
    )

    # Head: latent = relu(h1 @ W1 + b1); output = latent @ W2 + b2  (lane-dense, padded)
    latent = jnp.maximum(
        jnp.dot(h1, w_lin1_ref[...], preferred_element_type=jnp.float32)
        + b_lin1_ref[...],
        0.0,
    )
    out_ref[...] = (
        jnp.dot(latent, w_lin2_ref[...], preferred_element_type=jnp.float32)
        + b_lin2_ref[...]
    )


def init_params(key):
    """Deterministic parameter init mirroring nn.LSTM / nn.Linear shapes."""
    k = 1.0 / jnp.sqrt(jnp.float32(HIDDEN_DIM))
    keys = jax.random.split(key, 14)

    def u(kk, shape, bound):
        return jax.random.uniform(kk, shape, jnp.float32, -bound, bound)

    params = {}
    # LSTM layer 0: weight_ih (4H, I), weight_hh (4H, H), biases (4H,)
    params["w_ih_l0"] = u(keys[0], (4 * HIDDEN_DIM, INPUT_DIM), k)
    params["w_hh_l0"] = u(keys[1], (4 * HIDDEN_DIM, HIDDEN_DIM), k)
    params["b_ih_l0"] = u(keys[2], (4 * HIDDEN_DIM,), k)
    params["b_hh_l0"] = u(keys[3], (4 * HIDDEN_DIM,), k)
    # LSTM layer 1: weight_ih (4H, H)
    params["w_ih_l1"] = u(keys[4], (4 * HIDDEN_DIM, HIDDEN_DIM), k)
    params["w_hh_l1"] = u(keys[5], (4 * HIDDEN_DIM, HIDDEN_DIM), k)
    params["b_ih_l1"] = u(keys[6], (4 * HIDDEN_DIM,), k)
    params["b_hh_l1"] = u(keys[7], (4 * HIDDEN_DIM,), k)
    # linear1: (latent, H), bias (latent,)
    k1 = 1.0 / jnp.sqrt(jnp.float32(HIDDEN_DIM))
    params["w_lin1"] = u(keys[8], (LATENT_DIM, HIDDEN_DIM), k1)
    params["b_lin1"] = u(keys[9], (LATENT_DIM,), k1)
    # linear2: (output, latent), bias (output,)
    k2 = 1.0 / jnp.sqrt(jnp.float32(LATENT_DIM))
    params["w_lin2"] = u(keys[10], (OUTPUT_DIM, LATENT_DIM), k2)
    params["b_lin2"] = u(keys[11], (OUTPUT_DIM,), k2)
    return params


def _pack_gate_weight(w, k_pad):
    """(4H, K) PyTorch gate order (i,f,g,o) -> (k_pad, 4*HP), order (i,f,o,g),
    each gate zero-padded to HP output columns, K zero-padded to k_pad rows."""
    H = HIDDEN_DIM
    parts = [w[0:H], w[H:2 * H], w[3 * H:4 * H], w[2 * H:3 * H]]  # i, f, o, g
    padded = [jnp.pad(p, ((0, HP - H), (0, 0))) for p in parts]
    wt = jnp.concatenate(padded, axis=0).T                        # (K, 4*HP)
    if k_pad > wt.shape[0]:
        wt = jnp.pad(wt, ((0, k_pad - wt.shape[0]), (0, 0)))
    return wt.astype(jnp.float32)


def _pack_gate_bias(b):
    """(4H,) PyTorch gate order -> (4*HP,), order (i,f,o,g), zero-padded per gate."""
    H = HIDDEN_DIM
    parts = [b[0:H], b[H:2 * H], b[3 * H:4 * H], b[2 * H:3 * H]]  # i, f, o, g
    return jnp.concatenate([jnp.pad(p, (0, HP - H)) for p in parts]).astype(jnp.float32)


def lstm_forward(x, params):
    """x: (T, B, I) float32  ->  (B, input_dim, output_dim)"""
    x = x.astype(jnp.float32)
    T, B, I = x.shape
    H = HIDDEN_DIM

    # ---- Layer 0 input projection hoisted out of the recurrence (I == 1) ----
    w0_row = _pack_gate_weight(params["w_ih_l0"], k_pad=I)          # (1, G4)
    b0 = _pack_gate_bias(params["b_ih_l0"] + params["b_hh_l0"])     # (G4,)
    xw0 = x * w0_row.reshape(1, 1, G4) + b0.reshape(1, 1, G4)       # (T, B, G4)

    # ---- Layer 0 hidden weights, layer 1 fused weights ----
    whh0 = _pack_gate_weight(params["w_hh_l0"], k_pad=HP)           # (HP, G4)
    wih1 = _pack_gate_weight(params["w_ih_l1"], k_pad=HP)           # (HP, G4)
    whh1 = _pack_gate_weight(params["w_hh_l1"], k_pad=HP)           # (HP, G4)
    w1cat = jnp.concatenate([wih1, whh1], axis=0)                   # (2*HP, G4)
    b1 = _pack_gate_bias(params["b_ih_l1"] + params["b_hh_l1"])     # (G4,)
    b1_b = jnp.broadcast_to(b1.reshape(1, G4), (B, G4))             # pre-broadcast

    # ---- Lane-dense head (pad latent/output to 128 lanes) ----
    w_lin1_p = jnp.zeros((HP, LP), jnp.float32).at[:H, :LATENT_DIM].set(
        params["w_lin1"].T
    )
    b_lin1_p = jnp.zeros((1, LP), jnp.float32).at[0, :LATENT_DIM].set(
        params["b_lin1"]
    )
    w_lin2_p = jnp.zeros((LP, OP), jnp.float32).at[:LATENT_DIM, :OUTPUT_DIM].set(
        params["w_lin2"].T
    )
    b_lin2_p = jnp.zeros((1, OP), jnp.float32).at[0, :OUTPUT_DIM].set(
        params["b_lin2"]
    )

    vmem = pl.BlockSpec(memory_space=pltpu.MemorySpace.VMEM)
    args = (xw0, whh0, w1cat, b1_b, w_lin1_p, b_lin1_p, w_lin2_p, b_lin2_p)

    out_padded = pl.pallas_call(
        lstm_kernel,
        out_shape=jax.ShapeDtypeStruct((B, OP), jnp.float32),
        in_specs=[vmem] * len(args),
        out_specs=vmem,
    )(*args)

    # slice padded lanes and reshape: output.view(batch_size, input_dim, -1)
    return out_padded[:, :OUTPUT_DIM].reshape(B, INPUT_DIM, OUTPUT_DIM)


def lstm_forward_ref(x, params):
    """Pure-JAX reference with identical semantics (for validation)."""
    T, B, I = x.shape
    H = HIDDEN_DIM

    def cell(x_t, h, c, w_ih, w_hh, b_ih, b_hh):
        gates = x_t @ w_ih.T + b_ih + h @ w_hh.T + b_hh
        i_g = jax.nn.sigmoid(gates[:, 0 * H:1 * H])
        f_g = jax.nn.sigmoid(gates[:, 1 * H:2 * H])
        g_g = jnp.tanh(gates[:, 2 * H:3 * H])
        o_g = jax.nn.sigmoid(gates[:, 3 * H:4 * H])
        c_new = f_g * c + i_g * g_g
        h_new = o_g * jnp.tanh(c_new)
        return h_new, c_new

    h0 = c0 = h1 = c1 = jnp.zeros((B, H), jnp.float32)
    for t in range(T):
        h0, c0 = cell(x[t], h0, c0, params["w_ih_l0"], params["w_hh_l0"],
                      params["b_ih_l0"], params["b_hh_l0"])
        h1, c1 = cell(h0, h1, c1, params["w_ih_l1"], params["w_hh_l1"],
                      params["b_ih_l1"], params["b_hh_l1"])
    latent = jax.nn.relu(h1 @ params["w_lin1"].T + params["b_lin1"])
    out = latent @ params["w_lin2"].T + params["b_lin2"]
    return out.reshape(B, INPUT_DIM, OUTPUT_DIM)


if __name__ == "__main__":
    key = jax.random.PRNGKey(0)
    pkey, xkey = jax.random.split(key)
    params = init_params(pkey)

    # input is viewed to (-1, batch_size, input_dim) inside forward -> (T, B, I)
    x = jax.random.normal(xkey, (SEQ_LEN, BATCH_SIZE, INPUT_DIM), jnp.float32)

    out = lstm_forward(x, params)
    out = jax.block_until_ready(out)

    ref = lstm_forward_ref(x, params)
    assert out.shape == (BATCH_SIZE, INPUT_DIM, OUTPUT_DIM), out.shape
    assert jnp.allclose(out, ref, rtol=1e-3, atol=1e-3), "mismatch vs reference"

    print("KERNEL_OK")
</pallas_src>

<mosaic_0001>
module attributes {stable_mosaic.version = 11 : i64} {
  func.func @lstm_kernel(%arg0: memref<8x32x512xf32, #tpu.memory_space<vmem>>, %arg1: memref<128x512xf32, #tpu.memory_space<vmem>>, %arg2: memref<256x512xf32, #tpu.memory_space<vmem>>, %arg3: memref<32x512xf32, #tpu.memory_space<vmem>>, %arg4: memref<128x128xf32, #tpu.memory_space<vmem>>, %arg5: memref<1x128xf32, #tpu.memory_space<vmem>>, %arg6: memref<128x128xf32, #tpu.memory_space<vmem>>, %arg7: memref<1x128xf32, #tpu.memory_space<vmem>>, %arg8: memref<32x128xf32, #tpu.memory_space<vmem>>) attributes {dimension_semantics = [], scalar_prefetch = 0 : i64, scratch_operands = 0 : i64, tpu.core_type = #tpu.core_type<tc>} {
    %cst = arith.constant 0.000000e+00 : f32
    %0 = vector.broadcast %cst : f32 to vector<32x128xf32>
    %c0_i32 = arith.constant 0 : i32
    %1 = arith.index_cast %c0_i32 : i32 to index
    %c0 = arith.constant 0 : index
    %c0_0 = arith.constant 0 : index
    %2 = vector.load %arg0[%1, %c0, %c0_0] : memref<8x32x512xf32, #tpu.memory_space<vmem>>, vector<1x32x512xf32>
    %3 = vector.shape_cast %2 : vector<1x32x512xf32> to vector<32x512xf32>
    %c0_1 = arith.constant 0 : index
    %c0_2 = arith.constant 0 : index
    %4 = vector.load %arg1[%c0_1, %c0_2] : memref<128x512xf32, #tpu.memory_space<vmem>>, vector<128x512xf32>
    %cst_3 = arith.constant dense<0.000000e+00> : vector<32x512xf32>
    %5 = tpu.matmul %0, %4, %cst_3 {dimension_numbers = #tpu.dot_dimension_numbers<[1], [0], [0], [1], [0, 0, 1, 1], [], []>} : vector<32x128xf32>, vector<128x512xf32>, vector<32x512xf32> -> vector<32x512xf32>
    %6 = arith.addf %3, %5 : vector<32x512xf32>
    %7 = vector.extract_strided_slice %6 {offsets = [0, 0], sizes = [32, 384], strides = [1, 1]} : vector<32x512xf32> to vector<32x384xf32>
    %8 = arith.negf %7 : vector<32x384xf32>
    %9 = math.exp %8 : vector<32x384xf32>
    %cst_4 = arith.constant 1.000000e+00 : f32
    %10 = vector.broadcast %cst_4 : f32 to vector<32x384xf32>
    %11 = arith.addf %10, %9 : vector<32x384xf32>
    %12 = arith.divf %10, %11 : vector<32x384xf32>
    %13 = vector.extract_strided_slice %12 {offsets = [0, 0], sizes = [32, 128], strides = [1, 1]} : vector<32x384xf32> to vector<32x128xf32>
    %14 = vector.extract_strided_slice %12 {offsets = [0, 128], sizes = [32, 128], strides = [1, 1]} : vector<32x384xf32> to vector<32x128xf32>
    %15 = vector.extract_strided_slice %12 {offsets = [0, 256], sizes = [32, 128], strides = [1, 1]} : vector<32x384xf32> to vector<32x128xf32>
    %16 = vector.extract_strided_slice %6 {offsets = [0, 384], sizes = [32, 128], strides = [1, 1]} : vector<32x512xf32> to vector<32x128xf32>
    %17 = math.tanh %16 : vector<32x128xf32>
    %18 = arith.mulf %14, %0 : vector<32x128xf32>
    %19 = arith.mulf %13, %17 : vector<32x128xf32>
    %20 = arith.addf %18, %19 : vector<32x128xf32>
    %21 = math.tanh %20 : vector<32x128xf32>
    %22 = arith.mulf %15, %21 : vector<32x128xf32>
    %23 = tpu.concatenate %22, %0 in 1 : vector<32x128xf32>, vector<32x128xf32> -> vector<32x256xf32>
    %c0_5 = arith.constant 0 : index
    %c0_6 = arith.constant 0 : index
    %24 = vector.load %arg2[%c0_5, %c0_6] : memref<256x512xf32, #tpu.memory_space<vmem>>, vector<256x512xf32>
    %cst_7 = arith.constant dense<0.000000e+00> : vector<32x512xf32>
    %25 = tpu.matmul %23, %24, %cst_7 {dimension_numbers = #tpu.dot_dimension_numbers<[1], [0], [0], [1], [0, 0, 1, 1], [], []>} : vector<32x256xf32>, vector<256x512xf32>, vector<32x512xf32> -> vector<32x512xf32>
    %c0_8 = arith.constant 0 : index
    %c0_9 = arith.constant 0 : index
    %26 = vector.load %arg3[%c0_8, %c0_9] : memref<32x512xf32, #tpu.memory_space<vmem>>, vector<32x512xf32>
    %27 = arith.addf %25, %26 : vector<32x512xf32>
    %28 = vector.extract_strided_slice %27 {offsets = [0, 0], sizes = [32, 384], strides = [1, 1]} : vector<32x512xf32> to vector<32x384xf32>
    %29 = arith.negf %28 : vector<32x384xf32>
    %30 = math.exp %29 : vector<32x384xf32>
    %cst_10 = arith.constant 1.000000e+00 : f32
    %31 = vector.broadcast %cst_10 : f32 to vector<32x384xf32>
    %32 = arith.addf %31, %30 : vector<32x384xf32>
    %33 = arith.divf %31, %32 : vector<32x384xf32>
    %34 = vector.extract_strided_slice %33 {offsets = [0, 0], sizes = [32, 128], strides = [1, 1]} : vector<32x384xf32> to vector<32x128xf32>
    %35 = vector.extract_strided_slice %33 {offsets = [0, 128], sizes = [32, 128], strides = [1, 1]} : vector<32x384xf32> to vector<32x128xf32>
    %36 = vector.extract_strided_slice %33 {offsets = [0, 256], sizes = [32, 128], strides = [1, 1]} : vector<32x384xf32> to vector<32x128xf32>
    %37 = vector.extract_strided_slice %27 {offsets = [0, 384], sizes = [32, 128], strides = [1, 1]} : vector<32x512xf32> to vector<32x128xf32>
    %38 = math.tanh %37 : vector<32x128xf32>
    %39 = arith.mulf %35, %0 : vector<32x128xf32>
    %40 = arith.mulf %34, %38 : vector<32x128xf32>
    %41 = arith.addf %39, %40 : vector<32x128xf32>
    %42 = math.tanh %41 : vector<32x128xf32>
    %43 = arith.mulf %36, %42 : vector<32x128xf32>
    %c1_i32 = arith.constant 1 : i32
    %44 = arith.index_cast %c1_i32 : i32 to index
    %c0_11 = arith.constant 0 : index
    %c0_12 = arith.constant 0 : index
    %45 = vector.load %arg0[%44, %c0_11, %c0_12] : memref<8x32x512xf32, #tpu.memory_space<vmem>>, vector<1x32x512xf32>
    %46 = vector.shape_cast %45 : vector<1x32x512xf32> to vector<32x512xf32>
    %c0_13 = arith.constant 0 : index
    %c0_14 = arith.constant 0 : index
    %47 = vector.load %arg1[%c0_13, %c0_14] : memref<128x512xf32, #tpu.memory_space<vmem>>, vector<128x512xf32>
    %cst_15 = arith.constant dense<0.000000e+00> : vector<32x512xf32>
    %48 = tpu.matmul %22, %47, %cst_15 {dimension_numbers = #tpu.dot_dimension_numbers<[1], [0], [0], [1], [0, 0, 1, 1], [], []>} : vector<32x128xf32>, vector<128x512xf32>, vector<32x512xf32> -> vector<32x512xf32>
    %49 = arith.addf %46, %48 : vector<32x512xf32>
    %50 = vector.extract_strided_slice %49 {offsets = [0, 0], sizes = [32, 384], strides = [1, 1]} : vector<32x512xf32> to vector<32x384xf32>
    %51 = arith.negf %50 : vector<32x384xf32>
    %52 = math.exp %51 : vector<32x384xf32>
    %cst_16 = arith.constant 1.000000e+00 : f32
    %53 = vector.broadcast %cst_16 : f32 to vector<32x384xf32>
    %54 = arith.addf %53, %52 : vector<32x384xf32>
    %55 = arith.divf %53, %54 : vector<32x384xf32>
    %56 = vector.extract_strided_slice %55 {offsets = [0, 0], sizes = [32, 128], strides = [1, 1]} : vector<32x384xf32> to vector<32x128xf32>
    %57 = vector.extract_strided_slice %55 {offsets = [0, 128], sizes = [32, 128], strides = [1, 1]} : vector<32x384xf32> to vector<32x128xf32>
    %58 = vector.extract_strided_slice %55 {offsets = [0, 256], sizes = [32, 128], strides = [1, 1]} : vector<32x384xf32> to vector<32x128xf32>
    %59 = vector.extract_strided_slice %49 {offsets = [0, 384], sizes = [32, 128], strides = [1, 1]} : vector<32x512xf32> to vector<32x128xf32>
    %60 = math.tanh %59 : vector<32x128xf32>
    %61 = arith.mulf %57, %20 : vector<32x128xf32>
    %62 = arith.mulf %56, %60 : vector<32x128xf32>
    %63 = arith.addf %61, %62 : vector<32x128xf32>
    %64 = math.tanh %63 : vector<32x128xf32>
    %65 = arith.mulf %58, %64 : vector<32x128xf32>
    %66 = tpu.concatenate %65, %43 in 1 : vector<32x128xf32>, vector<32x128xf32> -> vector<32x256xf32>
    %c0_17 = arith.constant 0 : index
    %c0_18 = arith.constant 0 : index
    %67 = vector.load %arg2[%c0_17, %c0_18] : memref<256x512xf32, #tpu.memory_space<vmem>>, vector<256x512xf32>
    %cst_19 = arith.constant dense<0.000000e+00> : vector<32x512xf32>
    %68 = tpu.matmul %66, %67, %cst_19 {dimension_numbers = #tpu.dot_dimension_numbers<[1], [0], [0], [1], [0, 0, 1, 1], [], []>} : vector<32x256xf32>, vector<256x512xf32>, vector<32x512xf32> -> vector<32x512xf32>
    %c0_20 = arith.constant 0 : index
    %c0_21 = arith.constant 0 : index
    %69 = vector.load %arg3[%c0_20, %c0_21] : memref<32x512xf32, #tpu.memory_space<vmem>>, vector<32x512xf32>
    %70 = arith.addf %68, %69 : vector<32x512xf32>
    %71 = vector.extract_strided_slice %70 {offsets = [0, 0], sizes = [32, 384], strides = [1, 1]} : vector<32x512xf32> to vector<32x384xf32>
    %72 = arith.negf %71 : vector<32x384xf32>
    %73 = math.exp %72 : vector<32x384xf32>
    %cst_22 = arith.constant 1.000000e+00 : f32
    %74 = vector.broadcast %cst_22 : f32 to vector<32x384xf32>
    %75 = arith.addf %74, %73 : vector<32x384xf32>
    %76 = arith.divf %74, %75 : vector<32x384xf32>
    %77 = vector.extract_strided_slice %76 {offsets = [0, 0], sizes = [32, 128], strides = [1, 1]} : vector<32x384xf32> to vector<32x128xf32>
    %78 = vector.extract_strided_slice %76 {offsets = [0, 128], sizes = [32, 128], strides = [1, 1]} : vector<32x384xf32> to vector<32x128xf32>
    %79 = vector.extract_strided_slice %76 {offsets = [0, 256], sizes = [32, 128], strides = [1, 1]} : vector<32x384xf32> to vector<32x128xf32>
    %80 = vector.extract_strided_slice %70 {offsets = [0, 384], sizes = [32, 128], strides = [1, 1]} : vector<32x512xf32> to vector<32x128xf32>
    %81 = math.tanh %80 : vector<32x128xf32>
    %82 = arith.mulf %78, %41 : vector<32x128xf32>
    %83 = arith.mulf %77, %81 : vector<32x128xf32>
    %84 = arith.addf %82, %83 : vector<32x128xf32>
    %85 = math.tanh %84 : vector<32x128xf32>
    %86 = arith.mulf %79, %85 : vector<32x128xf32>
    %c2_i32 = arith.constant 2 : i32
    %87 = arith.index_cast %c2_i32 : i32 to index
    %c0_23 = arith.constant 0 : index
    %c0_24 = arith.constant 0 : index
    %88 = vector.load %arg0[%87, %c0_23, %c0_24] : memref<8x32x512xf32, #tpu.memory_space<vmem>>, vector<1x32x512xf32>
    %89 = vector.shape_cast %88 : vector<1x32x512xf32> to vector<32x512xf32>
    %c0_25 = arith.constant 0 : index
    %c0_26 = arith.constant 0 : index
    %90 = vector.load %arg1[%c0_25, %c0_26] : memref<128x512xf32, #tpu.memory_space<vmem>>, vector<128x512xf32>
    %cst_27 = arith.constant dense<0.000000e+00> : vector<32x512xf32>
    %91 = tpu.matmul %65, %90, %cst_27 {dimension_numbers = #tpu.dot_dimension_numbers<[1], [0], [0], [1], [0, 0, 1, 1], [], []>} : vector<32x128xf32>, vector<128x512xf32>, vector<32x512xf32> -> vector<32x512xf32>
    %92 = arith.addf %89, %91 : vector<32x512xf32>
    %93 = vector.extract_strided_slice %92 {offsets = [0, 0], sizes = [32, 384], strides = [1, 1]} : vector<32x512xf32> to vector<32x384xf32>
    %94 = arith.negf %93 : vector<32x384xf32>
    %95 = math.exp %94 : vector<32x384xf32>
    %cst_28 = arith.constant 1.000000e+00 : f32
    %96 = vector.broadcast %cst_28 : f32 to vector<32x384xf32>
    %97 = arith.addf %96, %95 : vector<32x384xf32>
    %98 = arith.divf %96, %97 : vector<32x384xf32>
    %99 = vector.extract_strided_slice %98 {offsets = [0, 0], sizes = [32, 128], strides = [1, 1]} : vector<32x384xf32> to vector<32x128xf32>
    %100 = vector.extract_strided_slice %98 {offsets = [0, 128], sizes = [32, 128], strides = [1, 1]} : vector<32x384xf32> to vector<32x128xf32>
    %101 = vector.extract_strided_slice %98 {offsets = [0, 256], sizes = [32, 128], strides = [1, 1]} : vector<32x384xf32> to vector<32x128xf32>
    %102 = vector.extract_strided_slice %92 {offsets = [0, 384], sizes = [32, 128], strides = [1, 1]} : vector<32x512xf32> to vector<32x128xf32>
    %103 = math.tanh %102 : vector<32x128xf32>
    %104 = arith.mulf %100, %63 : vector<32x128xf32>
    %105 = arith.mulf %99, %103 : vector<32x128xf32>
    %106 = arith.addf %104, %105 : vector<32x128xf32>
    %107 = math.tanh %106 : vector<32x128xf32>
    %108 = arith.mulf %101, %107 : vector<32x128xf32>
    %109 = tpu.concatenate %108, %86 in 1 : vector<32x128xf32>, vector<32x128xf32> -> vector<32x256xf32>
    %c0_29 = arith.constant 0 : index
    %c0_30 = arith.constant 0 : index
    %110 = vector.load %arg2[%c0_29, %c0_30] : memref<256x512xf32, #tpu.memory_space<vmem>>, vector<256x512xf32>
    %cst_31 = arith.constant dense<0.000000e+00> : vector<32x512xf32>
    %111 = tpu.matmul %109, %110, %cst_31 {dimension_numbers = #tpu.dot_dimension_numbers<[1], [0], [0], [1], [0, 0, 1, 1], [], []>} : vector<32x256xf32>, vector<256x512xf32>, vector<32x512xf32> -> vector<32x512xf32>
    %c0_32 = arith.constant 0 : index
    %c0_33 = arith.constant 0 : index
    %112 = vector.load %arg3[%c0_32, %c0_33] : memref<32x512xf32, #tpu.memory_space<vmem>>, vector<32x512xf32>
    %113 = arith.addf %111, %112 : vector<32x512xf32>
    %114 = vector.extract_strided_slice %113 {offsets = [0, 0], sizes = [32, 384], strides = [1, 1]} : vector<32x512xf32> to vector<32x384xf32>
    %115 = arith.negf %114 : vector<32x384xf32>
    %116 = math.exp %115 : vector<32x384xf32>
    %cst_34 = arith.constant 1.000000e+00 : f32
    %117 = vector.broadcast %cst_34 : f32 to vector<32x384xf32>
    %118 = arith.addf %117, %116 : vector<32x384xf32>
    %119 = arith.divf %117, %118 : vector<32x384xf32>
    %120 = vector.extract_strided_slice %119 {offsets = [0, 0], sizes = [32, 128], strides = [1, 1]} : vector<32x384xf32> to vector<32x128xf32>
    %121 = vector.extract_strided_slice %119 {offsets = [0, 128], sizes = [32, 128], strides = [1, 1]} : vector<32x384xf32> to vector<32x128xf32>
    %122 = vector.extract_strided_slice %119 {offsets = [0, 256], sizes = [32, 128], strides = [1, 1]} : vector<32x384xf32> to vector<32x128xf32>
    %123 = vector.extract_strided_slice %113 {offsets = [0, 384], sizes = [32, 128], strides = [1, 1]} : vector<32x512xf32> to vector<32x128xf32>
    %124 = math.tanh %123 : vector<32x128xf32>
    %125 = arith.mulf %121, %84 : vector<32x128xf32>
    %126 = arith.mulf %120, %124 : vector<32x128xf32>
    %127 = arith.addf %125, %126 : vector<32x128xf32>
    %128 = math.tanh %127 : vector<32x128xf32>
    %129 = arith.mulf %122, %128 : vector<32x128xf32>
    %c3_i32 = arith.constant 3 : i32
    %130 = arith.index_cast %c3_i32 : i32 to index
    %c0_35 = arith.constant 0 : index
    %c0_36 = arith.constant 0 : index
    %131 = vector.load %arg0[%130, %c0_35, %c0_36] : memref<8x32x512xf32, #tpu.memory_space<vmem>>, vector<1x32x512xf32>
    %132 = vector.shape_cast %131 : vector<1x32x512xf32> to vector<32x512xf32>
    %c0_37 = arith.constant 0 : index
    %c0_38 = arith.constant 0 : index
    %133 = vector.load %arg1[%c0_37, %c0_38] : memref<128x512xf32, #tpu.memory_space<vmem>>, vector<128x512xf32>
    %cst_39 = arith.constant dense<0.000000e+00> : vector<32x512xf32>
    %134 = tpu.matmul %108, %133, %cst_39 {dimension_numbers = #tpu.dot_dimension_numbers<[1], [0], [0], [1], [0, 0, 1, 1], [], []>} : vector<32x128xf32>, vector<128x512xf32>, vector<32x512xf32> -> vector<32x512xf32>
    %135 = arith.addf %132, %134 : vector<32x512xf32>
    %136 = vector.extract_strided_slice %135 {offsets = [0, 0], sizes = [32, 384], strides = [1, 1]} : vector<32x512xf32> to vector<32x384xf32>
    %137 = arith.negf %136 : vector<32x384xf32>
    %138 = math.exp %137 : vector<32x384xf32>
    %cst_40 = arith.constant 1.000000e+00 : f32
    %139 = vector.broadcast %cst_40 : f32 to vector<32x384xf32>
    %140 = arith.addf %139, %138 : vector<32x384xf32>
    %141 = arith.divf %139, %140 : vector<32x384xf32>
    %142 = vector.extract_strided_slice %141 {offsets = [0, 0], sizes = [32, 128], strides = [1, 1]} : vector<32x384xf32> to vector<32x128xf32>
    %143 = vector.extract_strided_slice %141 {offsets = [0, 128], sizes = [32, 128], strides = [1, 1]} : vector<32x384xf32> to vector<32x128xf32>
    %144 = vector.extract_strided_slice %141 {offsets = [0, 256], sizes = [32, 128], strides = [1, 1]} : vector<32x384xf32> to vector<32x128xf32>
    %145 = vector.extract_strided_slice %135 {offsets = [0, 384], sizes = [32, 128], strides = [1, 1]} : vector<32x512xf32> to vector<32x128xf32>
    %146 = math.tanh %145 : vector<32x128xf32>
    %147 = arith.mulf %143, %106 : vector<32x128xf32>
    %148 = arith.mulf %142, %146 : vector<32x128xf32>
    %149 = arith.addf %147, %148 : vector<32x128xf32>
    %150 = math.tanh %149 : vector<32x128xf32>
    %151 = arith.mulf %144, %150 : vector<32x128xf32>
    %152 = tpu.concatenate %151, %129 in 1 : vector<32x128xf32>, vector<32x128xf32> -> vector<32x256xf32>
    %c0_41 = arith.constant 0 : index
    %c0_42 = arith.constant 0 : index
    %153 = vector.load %arg2[%c0_41, %c0_42] : memref<256x512xf32, #tpu.memory_space<vmem>>, vector<256x512xf32>
    %cst_43 = arith.constant dense<0.000000e+00> : vector<32x512xf32>
    %154 = tpu.matmul %152, %153, %cst_43 {dimension_numbers = #tpu.dot_dimension_numbers<[1], [0], [0], [1], [0, 0, 1, 1], [], []>} : vector<32x256xf32>, vector<256x512xf32>, vector<32x512xf32> -> vector<32x512xf32>
    %c0_44 = arith.constant 0 : index
    %c0_45 = arith.constant 0 : index
    %155 = vector.load %arg3[%c0_44, %c0_45] : memref<32x512xf32, #tpu.memory_space<vmem>>, vector<32x512xf32>
    %156 = arith.addf %154, %155 : vector<32x512xf32>
    %157 = vector.extract_strided_slice %156 {offsets = [0, 0], sizes = [32, 384], strides = [1, 1]} : vector<32x512xf32> to vector<32x384xf32>
    %158 = arith.negf %157 : vector<32x384xf32>
    %159 = math.exp %158 : vector<32x384xf32>
    %cst_46 = arith.constant 1.000000e+00 : f32
    %160 = vector.broadcast %cst_46 : f32 to vector<32x384xf32>
    %161 = arith.addf %160, %159 : vector<32x384xf32>
    %162 = arith.divf %160, %161 : vector<32x384xf32>
    %163 = vector.extract_strided_slice %162 {offsets = [0, 0], sizes = [32, 128], strides = [1, 1]} : vector<32x384xf32> to vector<32x128xf32>
    %164 = vector.extract_strided_slice %162 {offsets = [0, 128], sizes = [32, 128], strides = [1, 1]} : vector<32x384xf32> to vector<32x128xf32>
    %165 = vector.extract_strided_slice %162 {offsets = [0, 256], sizes = [32, 128], strides = [1, 1]} : vector<32x384xf32> to vector<32x128xf32>
    %166 = vector.extract_strided_slice %156 {offsets = [0, 384], sizes = [32, 128], strides = [1, 1]} : vector<32x512xf32> to vector<32x128xf32>
    %167 = math.tanh %166 : vector<32x128xf32>
    %168 = arith.mulf %164, %127 : vector<32x128xf32>
    %169 = arith.mulf %163, %167 : vector<32x128xf32>
    %170 = arith.addf %168, %169 : vector<32x128xf32>
    %171 = math.tanh %170 : vector<32x128xf32>
    %172 = arith.mulf %165, %171 : vector<32x128xf32>
    %c4_i32 = arith.constant 4 : i32
    %173 = arith.index_cast %c4_i32 : i32 to index
    %c0_47 = arith.constant 0 : index
    %c0_48 = arith.constant 0 : index
    %174 = vector.load %arg0[%173, %c0_47, %c0_48] : memref<8x32x512xf32, #tpu.memory_space<vmem>>, vector<1x32x512xf32>
    %175 = vector.shape_cast %174 : vector<1x32x512xf32> to vector<32x512xf32>
    %c0_49 = arith.constant 0 : index
    %c0_50 = arith.constant 0 : index
    %176 = vector.load %arg1[%c0_49, %c0_50] : memref<128x512xf32, #tpu.memory_space<vmem>>, vector<128x512xf32>
    %cst_51 = arith.constant dense<0.000000e+00> : vector<32x512xf32>
    %177 = tpu.matmul %151, %176, %cst_51 {dimension_numbers = #tpu.dot_dimension_numbers<[1], [0], [0], [1], [0, 0, 1, 1], [], []>} : vector<32x128xf32>, vector<128x512xf32>, vector<32x512xf32> -> vector<32x512xf32>
    %178 = arith.addf %175, %177 : vector<32x512xf32>
    %179 = vector.extract_strided_slice %178 {offsets = [0, 0], sizes = [32, 384], strides = [1, 1]} : vector<32x512xf32> to vector<32x384xf32>
    %180 = arith.negf %179 : vector<32x384xf32>
    %181 = math.exp %180 : vector<32x384xf32>
    %cst_52 = arith.constant 1.000000e+00 : f32
    %182 = vector.broadcast %cst_52 : f32 to vector<32x384xf32>
    %183 = arith.addf %182, %181 : vector<32x384xf32>
    %184 = arith.divf %182, %183 : vector<32x384xf32>
    %185 = vector.extract_strided_slice %184 {offsets = [0, 0], sizes = [32, 128], strides = [1, 1]} : vector<32x384xf32> to vector<32x128xf32>
    %186 = vector.extract_strided_slice %184 {offsets = [0, 128], sizes = [32, 128], strides = [1, 1]} : vector<32x384xf32> to vector<32x128xf32>
    %187 = vector.extract_strided_slice %184 {offsets = [0, 256], sizes = [32, 128], strides = [1, 1]} : vector<32x384xf32> to vector<32x128xf32>
    %188 = vector.extract_strided_slice %178 {offsets = [0, 384], sizes = [32, 128], strides = [1, 1]} : vector<32x512xf32> to vector<32x128xf32>
    %189 = math.tanh %188 : vector<32x128xf32>
    %190 = arith.mulf %186, %149 : vector<32x128xf32>
    %191 = arith.mulf %185, %189 : vector<32x128xf32>
    %192 = arith.addf %190, %191 : vector<32x128xf32>
    %193 = math.tanh %192 : vector<32x128xf32>
    %194 = arith.mulf %187, %193 : vector<32x128xf32>
    %195 = tpu.concatenate %194, %172 in 1 : vector<32x128xf32>, vector<32x128xf32> -> vector<32x256xf32>
    %c0_53 = arith.constant 0 : index
    %c0_54 = arith.constant 0 : index
    %196 = vector.load %arg2[%c0_53, %c0_54] : memref<256x512xf32, #tpu.memory_space<vmem>>, vector<256x512xf32>
    %cst_55 = arith.constant dense<0.000000e+00> : vector<32x512xf32>
    %197 = tpu.matmul %195, %196, %cst_55 {dimension_numbers = #tpu.dot_dimension_numbers<[1], [0], [0], [1], [0, 0, 1, 1], [], []>} : vector<32x256xf32>, vector<256x512xf32>, vector<32x512xf32> -> vector<32x512xf32>
    %c0_56 = arith.constant 0 : index
    %c0_57 = arith.constant 0 : index
    %198 = vector.load %arg3[%c0_56, %c0_57] : memref<32x512xf32, #tpu.memory_space<vmem>>, vector<32x512xf32>
    %199 = arith.addf %197, %198 : vector<32x512xf32>
    %200 = vector.extract_strided_slice %199 {offsets = [0, 0], sizes = [32, 384], strides = [1, 1]} : vector<32x512xf32> to vector<32x384xf32>
    %201 = arith.negf %200 : vector<32x384xf32>
    %202 = math.exp %201 : vector<32x384xf32>
    %cst_58 = arith.constant 1.000000e+00 : f32
    %203 = vector.broadcast %cst_58 : f32 to vector<32x384xf32>
    %204 = arith.addf %203, %202 : vector<32x384xf32>
    %205 = arith.divf %203, %204 : vector<32x384xf32>
    %206 = vector.extract_strided_slice %205 {offsets = [0, 0], sizes = [32, 128], strides = [1, 1]} : vector<32x384xf32> to vector<32x128xf32>
    %207 = vector.extract_strided_slice %205 {offsets = [0, 128], sizes = [32, 128], strides = [1, 1]} : vector<32x384xf32> to vector<32x128xf32>
    %208 = vector.extract_strided_slice %205 {offsets = [0, 256], sizes = [32, 128], strides = [1, 1]} : vector<32x384xf32> to vector<32x128xf32>
    %209 = vector.extract_strided_slice %199 {offsets = [0, 384], sizes = [32, 128], strides = [1, 1]} : vector<32x512xf32> to vector<32x128xf32>
    %210 = math.tanh %209 : vector<32x128xf32>
    %211 = arith.mulf %207, %170 : vector<32x128xf32>
    %212 = arith.mulf %206, %210 : vector<32x128xf32>
    %213 = arith.addf %211, %212 : vector<32x128xf32>
    %214 = math.tanh %213 : vector<32x128xf32>
    %215 = arith.mulf %208, %214 : vector<32x128xf32>
    %c5_i32 = arith.constant 5 : i32
    %216 = arith.index_cast %c5_i32 : i32 to index
    %c0_59 = arith.constant 0 : index
    %c0_60 = arith.constant 0 : index
    %217 = vector.load %arg0[%216, %c0_59, %c0_60] : memref<8x32x512xf32, #tpu.memory_space<vmem>>, vector<1x32x512xf32>
    %218 = vector.shape_cast %217 : vector<1x32x512xf32> to vector<32x512xf32>
    %c0_61 = arith.constant 0 : index
    %c0_62 = arith.constant 0 : index
    %219 = vector.load %arg1[%c0_61, %c0_62] : memref<128x512xf32, #tpu.memory_space<vmem>>, vector<128x512xf32>
    %cst_63 = arith.constant dense<0.000000e+00> : vector<32x512xf32>
    %220 = tpu.matmul %194, %219, %cst_63 {dimension_numbers = #tpu.dot_dimension_numbers<[1], [0], [0], [1], [0, 0, 1, 1], [], []>} : vector<32x128xf32>, vector<128x512xf32>, vector<32x512xf32> -> vector<32x512xf32>
    %221 = arith.addf %218, %220 : vector<32x512xf32>
    %222 = vector.extract_strided_slice %221 {offsets = [0, 0], sizes = [32, 384], strides = [1, 1]} : vector<32x512xf32> to vector<32x384xf32>
    %223 = arith.negf %222 : vector<32x384xf32>
    %224 = math.exp %223 : vector<32x384xf32>
    %cst_64 = arith.constant 1.000000e+00 : f32
    %225 = vector.broadcast %cst_64 : f32 to vector<32x384xf32>
    %226 = arith.addf %225, %224 : vector<32x384xf32>
    %227 = arith.divf %225, %226 : vector<32x384xf32>
    %228 = vector.extract_strided_slice %227 {offsets = [0, 0], sizes = [32, 128], strides = [1, 1]} : vector<32x384xf32> to vector<32x128xf32>
    %229 = vector.extract_strided_slice %227 {offsets = [0, 128], sizes = [32, 128], strides = [1, 1]} : vector<32x384xf32> to vector<32x128xf32>
    %230 = vector.extract_strided_slice %227 {offsets = [0, 256], sizes = [32, 128], strides = [1, 1]} : vector<32x384xf32> to vector<32x128xf32>
    %231 = vector.extract_strided_slice %221 {offsets = [0, 384], sizes = [32, 128], strides = [1, 1]} : vector<32x512xf32> to vector<32x128xf32>
    %232 = math.tanh %231 : vector<32x128xf32>
    %233 = arith.mulf %229, %192 : vector<32x128xf32>
    %234 = arith.mulf %228, %232 : vector<32x128xf32>
    %235 = arith.addf %233, %234 : vector<32x128xf32>
    %236 = math.tanh %235 : vector<32x128xf32>
    %237 = arith.mulf %230, %236 : vector<32x128xf32>
    %238 = tpu.concatenate %237, %215 in 1 : vector<32x128xf32>, vector<32x128xf32> -> vector<32x256xf32>
    %c0_65 = arith.constant 0 : index
    %c0_66 = arith.constant 0 : index
    %239 = vector.load %arg2[%c0_65, %c0_66] : memref<256x512xf32, #tpu.memory_space<vmem>>, vector<256x512xf32>
    %cst_67 = arith.constant dense<0.000000e+00> : vector<32x512xf32>
    %240 = tpu.matmul %238, %239, %cst_67 {dimension_numbers = #tpu.dot_dimension_numbers<[1], [0], [0], [1], [0, 0, 1, 1], [], []>} : vector<32x256xf32>, vector<256x512xf32>, vector<32x512xf32> -> vector<32x512xf32>
    %c0_68 = arith.constant 0 : index
    %c0_69 = arith.constant 0 : index
    %241 = vector.load %arg3[%c0_68, %c0_69] : memref<32x512xf32, #tpu.memory_space<vmem>>, vector<32x512xf32>
    %242 = arith.addf %240, %241 : vector<32x512xf32>
    %243 = vector.extract_strided_slice %242 {offsets = [0, 0], sizes = [32, 384], strides = [1, 1]} : vector<32x512xf32> to vector<32x384xf32>
    %244 = arith.negf %243 : vector<32x384xf32>
    %245 = math.exp %244 : vector<32x384xf32>
    %cst_70 = arith.constant 1.000000e+00 : f32
    %246 = vector.broadcast %cst_70 : f32 to vector<32x384xf32>
    %247 = arith.addf %246, %245 : vector<32x384xf32>
    %248 = arith.divf %246, %247 : vector<32x384xf32>
    %249 = vector.extract_strided_slice %248 {offsets = [0, 0], sizes = [32, 128], strides = [1, 1]} : vector<32x384xf32> to vector<32x128xf32>
    %250 = vector.extract_strided_slice %248 {offsets = [0, 128], sizes = [32, 128], strides = [1, 1]} : vector<32x384xf32> to vector<32x128xf32>
    %251 = vector.extract_strided_slice %248 {offsets = [0, 256], sizes = [32, 128], strides = [1, 1]} : vector<32x384xf32> to vector<32x128xf32>
    %252 = vector.extract_strided_slice %242 {offsets = [0, 384], sizes = [32, 128], strides = [1, 1]} : vector<32x512xf32> to vector<32x128xf32>
    %253 = math.tanh %252 : vector<32x128xf32>
    %254 = arith.mulf %250, %213 : vector<32x128xf32>
    %255 = arith.mulf %249, %253 : vector<32x128xf32>
    %256 = arith.addf %254, %255 : vector<32x128xf32>
    %257 = math.tanh %256 : vector<32x128xf32>
    %258 = arith.mulf %251, %257 : vector<32x128xf32>
    %c6_i32 = arith.constant 6 : i32
    %259 = arith.index_cast %c6_i32 : i32 to index
    %c0_71 = arith.constant 0 : index
    %c0_72 = arith.constant 0 : index
    %260 = vector.load %arg0[%259, %c0_71, %c0_72] : memref<8x32x512xf32, #tpu.memory_space<vmem>>, vector<1x32x512xf32>
    %261 = vector.shape_cast %260 : vector<1x32x512xf32> to vector<32x512xf32>
    %c0_73 = arith.constant 0 : index
    %c0_74 = arith.constant 0 : index
    %262 = vector.load %arg1[%c0_73, %c0_74] : memref<128x512xf32, #tpu.memory_space<vmem>>, vector<128x512xf32>
    %cst_75 = arith.constant dense<0.000000e+00> : vector<32x512xf32>
    %263 = tpu.matmul %237, %262, %cst_75 {dimension_numbers = #tpu.dot_dimension_numbers<[1], [0], [0], [1], [0, 0, 1, 1], [], []>} : vector<32x128xf32>, vector<128x512xf32>, vector<32x512xf32> -> vector<32x512xf32>
    %264 = arith.addf %261, %263 : vector<32x512xf32>
    %265 = vector.extract_strided_slice %264 {offsets = [0, 0], sizes = [32, 384], strides = [1, 1]} : vector<32x512xf32> to vector<32x384xf32>
    %266 = arith.negf %265 : vector<32x384xf32>
    %267 = math.exp %266 : vector<32x384xf32>
    %cst_76 = arith.constant 1.000000e+00 : f32
    %268 = vector.broadcast %cst_76 : f32 to vector<32x384xf32>
    %269 = arith.addf %268, %267 : vector<32x384xf32>
    %270 = arith.divf %268, %269 : vector<32x384xf32>
    %271 = vector.extract_strided_slice %270 {offsets = [0, 0], sizes = [32, 128], strides = [1, 1]} : vector<32x384xf32> to vector<32x128xf32>
    %272 = vector.extract_strided_slice %270 {offsets = [0, 128], sizes = [32, 128], strides = [1, 1]} : vector<32x384xf32> to vector<32x128xf32>
    %273 = vector.extract_strided_slice %270 {offsets = [0, 256], sizes = [32, 128], strides = [1, 1]} : vector<32x384xf32> to vector<32x128xf32>
    %274 = vector.extract_strided_slice %264 {offsets = [0, 384], sizes = [32, 128], strides = [1, 1]} : vector<32x512xf32> to vector<32x128xf32>
    %275 = math.tanh %274 : vector<32x128xf32>
    %276 = arith.mulf %272, %235 : vector<32x128xf32>
    %277 = arith.mulf %271, %275 : vector<32x128xf32>
    %278 = arith.addf %276, %277 : vector<32x128xf32>
    %279 = math.tanh %278 : vector<32x128xf32>
    %280 = arith.mulf %273, %279 : vector<32x128xf32>
    %281 = tpu.concatenate %280, %258 in 1 : vector<32x128xf32>, vector<32x128xf32> -> vector<32x256xf32>
    %c0_77 = arith.constant 0 : index
    %c0_78 = arith.constant 0 : index
    %282 = vector.load %arg2[%c0_77, %c0_78] : memref<256x512xf32, #tpu.memory_space<vmem>>, vector<256x512xf32>
    %cst_79 = arith.constant dense<0.000000e+00> : vector<32x512xf32>
    %283 = tpu.matmul %281, %282, %cst_79 {dimension_numbers = #tpu.dot_dimension_numbers<[1], [0], [0], [1], [0, 0, 1, 1], [], []>} : vector<32x256xf32>, vector<256x512xf32>, vector<32x512xf32> -> vector<32x512xf32>
    %c0_80 = arith.constant 0 : index
    %c0_81 = arith.constant 0 : index
    %284 = vector.load %arg3[%c0_80, %c0_81] : memref<32x512xf32, #tpu.memory_space<vmem>>, vector<32x512xf32>
    %285 = arith.addf %283, %284 : vector<32x512xf32>
    %286 = vector.extract_strided_slice %285 {offsets = [0, 0], sizes = [32, 384], strides = [1, 1]} : vector<32x512xf32> to vector<32x384xf32>
    %287 = arith.negf %286 : vector<32x384xf32>
    %288 = math.exp %287 : vector<32x384xf32>
    %cst_82 = arith.constant 1.000000e+00 : f32
    %289 = vector.broadcast %cst_82 : f32 to vector<32x384xf32>
    %290 = arith.addf %289, %288 : vector<32x384xf32>
    %291 = arith.divf %289, %290 : vector<32x384xf32>
    %292 = vector.extract_strided_slice %291 {offsets = [0, 0], sizes = [32, 128], strides = [1, 1]} : vector<32x384xf32> to vector<32x128xf32>
    %293 = vector.extract_strided_slice %291 {offsets = [0, 128], sizes = [32, 128], strides = [1, 1]} : vector<32x384xf32> to vector<32x128xf32>
    %294 = vector.extract_strided_slice %291 {offsets = [0, 256], sizes = [32, 128], strides = [1, 1]} : vector<32x384xf32> to vector<32x128xf32>
    %295 = vector.extract_strided_slice %285 {offsets = [0, 384], sizes = [32, 128], strides = [1, 1]} : vector<32x512xf32> to vector<32x128xf32>
    %296 = math.tanh %295 : vector<32x128xf32>
    %297 = arith.mulf %293, %256 : vector<32x128xf32>
    %298 = arith.mulf %292, %296 : vector<32x128xf32>
    %299 = arith.addf %297, %298 : vector<32x128xf32>
    %300 = math.tanh %299 : vector<32x128xf32>
    %301 = arith.mulf %294, %300 : vector<32x128xf32>
    %c7_i32 = arith.constant 7 : i32
    %302 = arith.index_cast %c7_i32 : i32 to index
    %c0_83 = arith.constant 0 : index
    %c0_84 = arith.constant 0 : index
    %303 = vector.load %arg0[%302, %c0_83, %c0_84] : memref<8x32x512xf32, #tpu.memory_space<vmem>>, vector<1x32x512xf32>
    %304 = vector.shape_cast %303 : vector<1x32x512xf32> to vector<32x512xf32>
    %c0_85 = arith.constant 0 : index
    %c0_86 = arith.constant 0 : index
    %305 = vector.load %arg1[%c0_85, %c0_86] : memref<128x512xf32, #tpu.memory_space<vmem>>, vector<128x512xf32>
    %cst_87 = arith.constant dense<0.000000e+00> : vector<32x512xf32>
    %306 = tpu.matmul %280, %305, %cst_87 {dimension_numbers = #tpu.dot_dimension_numbers<[1], [0], [0], [1], [0, 0, 1, 1], [], []>} : vector<32x128xf32>, vector<128x512xf32>, vector<32x512xf32> -> vector<32x512xf32>
    %307 = arith.addf %304, %306 : vector<32x512xf32>
    %308 = vector.extract_strided_slice %307 {offsets = [0, 0], sizes = [32, 384], strides = [1, 1]} : vector<32x512xf32> to vector<32x384xf32>
    %309 = arith.negf %308 : vector<32x384xf32>
    %310 = math.exp %309 : vector<32x384xf32>
    %cst_88 = arith.constant 1.000000e+00 : f32
    %311 = vector.broadcast %cst_88 : f32 to vector<32x384xf32>
    %312 = arith.addf %311, %310 : vector<32x384xf32>
    %313 = arith.divf %311, %312 : vector<32x384xf32>
    %314 = vector.extract_strided_slice %313 {offsets = [0, 0], sizes = [32, 128], strides = [1, 1]} : vector<32x384xf32> to vector<32x128xf32>
    %315 = vector.extract_strided_slice %313 {offsets = [0, 128], sizes = [32, 128], strides = [1, 1]} : vector<32x384xf32> to vector<32x128xf32>
    %316 = vector.extract_strided_slice %313 {offsets = [0, 256], sizes = [32, 128], strides = [1, 1]} : vector<32x384xf32> to vector<32x128xf32>
    %317 = vector.extract_strided_slice %307 {offsets = [0, 384], sizes = [32, 128], strides = [1, 1]} : vector<32x512xf32> to vector<32x128xf32>
    %318 = math.tanh %317 : vector<32x128xf32>
    %319 = arith.mulf %315, %278 : vector<32x128xf32>
    %320 = arith.mulf %314, %318 : vector<32x128xf32>
    %321 = arith.addf %319, %320 : vector<32x128xf32>
    %322 = math.tanh %321 : vector<32x128xf32>
    %323 = arith.mulf %316, %322 : vector<32x128xf32>
    %324 = tpu.concatenate %323, %301 in 1 : vector<32x128xf32>, vector<32x128xf32> -> vector<32x256xf32>
    %c0_89 = arith.constant 0 : index
    %c0_90 = arith.constant 0 : index
    %325 = vector.load %arg2[%c0_89, %c0_90] : memref<256x512xf32, #tpu.memory_space<vmem>>, vector<256x512xf32>
    %cst_91 = arith.constant dense<0.000000e+00> : vector<32x512xf32>
    %326 = tpu.matmul %324, %325, %cst_91 {dimension_numbers = #tpu.dot_dimension_numbers<[1], [0], [0], [1], [0, 0, 1, 1], [], []>} : vector<32x256xf32>, vector<256x512xf32>, vector<32x512xf32> -> vector<32x512xf32>
    %c0_92 = arith.constant 0 : index
    %c0_93 = arith.constant 0 : index
    %327 = vector.load %arg3[%c0_92, %c0_93] : memref<32x512xf32, #tpu.memory_space<vmem>>, vector<32x512xf32>
    %328 = arith.addf %326, %327 : vector<32x512xf32>
    %329 = vector.extract_strided_slice %328 {offsets = [0, 0], sizes = [32, 384], strides = [1, 1]} : vector<32x512xf32> to vector<32x384xf32>
    %330 = arith.negf %329 : vector<32x384xf32>
    %331 = math.exp %330 : vector<32x384xf32>
    %cst_94 = arith.constant 1.000000e+00 : f32
    %332 = vector.broadcast %cst_94 : f32 to vector<32x384xf32>
    %333 = arith.addf %332, %331 : vector<32x384xf32>
    %334 = arith.divf %332, %333 : vector<32x384xf32>
    %335 = vector.extract_strided_slice %334 {offsets = [0, 0], sizes = [32, 128], strides = [1, 1]} : vector<32x384xf32> to vector<32x128xf32>
    %336 = vector.extract_strided_slice %334 {offsets = [0, 128], sizes = [32, 128], strides = [1, 1]} : vector<32x384xf32> to vector<32x128xf32>
    %337 = vector.extract_strided_slice %334 {offsets = [0, 256], sizes = [32, 128], strides = [1, 1]} : vector<32x384xf32> to vector<32x128xf32>
    %338 = vector.extract_strided_slice %328 {offsets = [0, 384], sizes = [32, 128], strides = [1, 1]} : vector<32x512xf32> to vector<32x128xf32>
    %339 = math.tanh %338 : vector<32x128xf32>
    %340 = arith.mulf %336, %299 : vector<32x128xf32>
    %341 = arith.mulf %335, %339 : vector<32x128xf32>
    %342 = arith.addf %340, %341 : vector<32x128xf32>
    %343 = math.tanh %342 : vector<32x128xf32>
    %344 = arith.mulf %337, %343 : vector<32x128xf32>
    %c8_i32 = arith.constant 8 : i32
    %c0_95 = arith.constant 0 : index
    %c0_96 = arith.constant 0 : index
    %345 = vector.load %arg4[%c0_95, %c0_96] : memref<128x128xf32, #tpu.memory_space<vmem>>, vector<128x128xf32>
    %cst_97 = arith.constant dense<0.000000e+00> : vector<32x128xf32>
    %346 = tpu.matmul %344, %345, %cst_97 {dimension_numbers = #tpu.dot_dimension_numbers<[1], [0], [0], [1], [0, 0, 1, 1], [], []>} : vector<32x128xf32>, vector<128x128xf32>, vector<32x128xf32> -> vector<32x128xf32>
    %c0_98 = arith.constant 0 : index
    %c0_99 = arith.constant 0 : index
    %347 = vector.load %arg5[%c0_98, %c0_99] : memref<1x128xf32, #tpu.memory_space<vmem>>, vector<1x128xf32>
    %348 = vector.broadcast %347 : vector<1x128xf32> to vector<32x128xf32>
    %349 = arith.addf %346, %348 : vector<32x128xf32>
    %cst_100 = arith.constant 0.000000e+00 : f32
    %350 = vector.broadcast %cst_100 : f32 to vector<32x128xf32>
    %351 = arith.maximumf %349, %350 : vector<32x128xf32>
    %c0_101 = arith.constant 0 : index
    %c0_102 = arith.constant 0 : index
    %352 = vector.load %arg6[%c0_101, %c0_102] : memref<128x128xf32, #tpu.memory_space<vmem>>, vector<128x128xf32>
    %cst_103 = arith.constant dense<0.000000e+00> : vector<32x128xf32>
    %353 = tpu.matmul %351, %352, %cst_103 {dimension_numbers = #tpu.dot_dimension_numbers<[1], [0], [0], [1], [0, 0, 1, 1], [], []>} : vector<32x128xf32>, vector<128x128xf32>, vector<32x128xf32> -> vector<32x128xf32>
    %c0_104 = arith.constant 0 : index
    %c0_105 = arith.constant 0 : index
    %354 = vector.load %arg7[%c0_104, %c0_105] : memref<1x128xf32, #tpu.memory_space<vmem>>, vector<1x128xf32>
    %355 = vector.broadcast %354 : vector<1x128xf32> to vector<32x128xf32>
    %356 = arith.addf %353, %355 : vector<32x128xf32>
    %c0_106 = arith.constant 0 : index
    %c0_107 = arith.constant 0 : index
    %357 = vector.load %arg8[%c0_106, %c0_107] : memref<32x128xf32, #tpu.memory_space<vmem>>, vector<32x128xf32>
    tpu.vector_store %arg8[%c0_106, %c0_107], %356 {strides = array<i32>} : memref<32x128xf32, #tpu.memory_space<vmem>>, vector<32x128xf32>,
    return
  }
}

</mosaic_0001>

<llo_original>
// kernel: tpu_custom_call.1
$region0: #{tpu_custom_call.1}
  #allocation0 [shape = 'u32[]', space=smem, size = 0x4, offset = 0x4, fixed_abs, tag = 'smem constant byte address 0x4 - core index']
  #allocation1 [shape = 'u32[144,128]{1,0:T(1,128)}', space=vmem, size = 0x12000, scoped, tag = 'internal scratch']
  %s0 = inlined_call_operand.hbm [shape: f32[8,32,512], index: 0, kind: input, shape index: {}]
  %s1 = inlined_call_operand.hbm [shape: f32[128,512], index: 1, kind: input, shape index: {}]
  %s2 = inlined_call_operand.hbm [shape: f32[256,512], index: 2, kind: input, shape index: {}]
  %s3 = inlined_call_operand.hbm [shape: f32[32,512], index: 3, kind: input, shape index: {}]
  %s4 = inlined_call_operand.hbm [shape: f32[128,128], index: 4, kind: input, shape index: {}]
  %s5 = inlined_call_operand.vmem [shape: f32[1,128], index: 5, kind: input, shape index: {}]
  %s6 = inlined_call_operand.hbm [shape: f32[128,128], index: 6, kind: input, shape index: {}]
  %s7 = inlined_call_operand.vmem [shape: f32[1,128], index: 7, kind: input, shape index: {}]
  %s8 = inlined_call_operand.hbm [shape: f32[32,128], index: 8, kind: output, shape index: {}]
  %s9 = sld [smem:[#allocation0]]
  $region66: #{tpu_custom_call.1} parent=0
    _
  %s11 = ssub.s32 1, %s9
  %s12 = scalar_select 0, %s11, %s9
  $region1: #{tpu_custom_call.1} parent=0
    #allocation2 [shape = 'u8[524288]{0}', space=vmem, size = 0x80000, scoped, tag = 'input window, operand 0, single buffered']
    #allocation3 [shape = 's32[1]{0}', space=sflag, size = 0x4, scoped, tag = 'scoped memory for tpu_custom_call.1']
    #allocation4 [shape = 's32[1]{0}', space=sflag, size = 0x4, scoped, tag = 'scoped memory for tpu_custom_call.1']
    #allocation5 [shape = 'u8[262144]{0}', space=vmem, size = 0x40000, scoped, tag = 'input window, operand 1, single buffered']
    #allocation6 [shape = 's32[1]{0}', space=sflag, size = 0x4, scoped, tag = 'scoped memory for tpu_custom_call.1']
    #allocation7 [shape = 'u8[524288]{0}', space=vmem, size = 0x80000, scoped, tag = 'input window, operand 2, single buffered']
    #allocation8 [shape = 'u8[65536]{0}', space=vmem, size = 0x10000, scoped, tag = 'input window, operand 3, single buffered']
    #allocation9 [shape = 's32[1]{0}', space=sflag, size = 0x4, scoped, tag = 'scoped memory for tpu_custom_call.1']
    #allocation10 [shape = 'u8[65536]{0}', space=vmem, size = 0x10000, scoped, tag = 'input window, operand 4, single buffered']
    #allocation11 [shape = 'u8[65536]{0}', space=vmem, size = 0x10000, scoped, tag = 'input window, operand 6, single buffered']
    #allocation12 [shape = 's32[1]{0}', space=sflag, size = 0x4, scoped, tag = 'scoped memory for tpu_custom_call.1']
    #allocation13 [shape = 'u8[16384]{0}', space=vmem, size = 0x4000, scoped, tag = 'output window, operand 0, single buffered']
    %13 = vsyncpa [#allocation3], 0
    %14 = vsyncpa [#allocation6], 0
    %15 = vsyncpa [#allocation9], 0
    %16 = vsyncpa [#allocation12], 0
    %17 = vsyncpa [#allocation4], 0
    // Predicated region
    $region2: #{tpu_custom_call.1} parent=1 // pred_check
      _
    $region3: #{tpu_custom_call.1} parent=1 // pred_check_branch
      %19 = sbr.rel (0) target = $region5
    $region4: #{tpu_custom_call.1} parent=1 // pred_region
      %s21 = ssub.s32 16384, 16384
      %22 = vsyncadd [#allocation3], %s21
      %s23 = sshll.u32 [#allocation2], 4
      %s24 = int_to_ptr.vmem [resolvable:$true] %s23
      %29 = dma.hbm_to_vmem [thread:$0]  %s0, 16384, %s24, [#allocation3], 512, 512, 32
    $region5: #{tpu_custom_call.1} parent=1 // pred_fallthru
      _
    // Predicated region
    $region6: #{tpu_custom_call.1} parent=1 // pred_check
      _
    $region7: #{tpu_custom_call.1} parent=1 // pred_check_branch
      %31 = sbr.rel (0) target = $region9
    $region8: #{tpu_custom_call.1} parent=1 // pred_region
      %s33 = ssub.s32 8192, 8192
      %34 = vsyncadd [#allocation6], %s33
      %s35 = sshll.u32 [#allocation5], 4
      %s36 = int_to_ptr.vmem [resolvable:$true] %s35
      %41 = dma.hbm_to_vmem [thread:$0]  %s1, 8192, %s36, [#allocation6], 512, 512, 32
    $region9: #{tpu_custom_call.1} parent=1 // pred_fallthru
      _
    // Predicated region
    $region10: #{tpu_custom_call.1} parent=1 // pred_check
      _
    $region11: #{tpu_custom_call.1} parent=1 // pred_check_branch
      %43 = sbr.rel (0) target = $region13
    $region12: #{tpu_custom_call.1} parent=1 // pred_region
      %s45 = ssub.s32 16384, 16384
      %46 = vsyncadd [#allocation6], %s45
      %s47 = sshll.u32 [#allocation7], 4
      %s48 = int_to_ptr.vmem [resolvable:$true] %s47
      %53 = dma.hbm_to_vmem [thread:$0]  %s2, 16384, %s48, [#allocation6], 512, 512, 32
    $region13: #{tpu_custom_call.1} parent=1 // pred_fallthru
      _
    // Predicated region
    $region14: #{tpu_custom_call.1} parent=1 // pred_check
      _
    $region15: #{tpu_custom_call.1} parent=1 // pred_check_branch
      %55 = sbr.rel (0) target = $region17
    $region16: #{tpu_custom_call.1} parent=1 // pred_region
      %s57 = ssub.s32 2048, 2048
      %58 = vsyncadd [#allocation9], %s57
      %s59 = sshll.u32 [#allocation8], 4
      %s60 = int_to_ptr.vmem [resolvable:$true] %s59
      %65 = dma.hbm_to_vmem [thread:$0]  %s3, 2048, %s60, [#allocation9], 512, 512, 32
    $region17: #{tpu_custom_call.1} parent=1 // pred_fallthru
      _
    // Predicated region
    $region18: #{tpu_custom_call.1} parent=1 // pred_check
      _
    $region19: #{tpu_custom_call.1} parent=1 // pred_check_branch
      %67 = sbr.rel (0) target = $region21
    $region20: #{tpu_custom_call.1} parent=1 // pred_region
      %s69 = ssub.s32 2048, 2048
      %70 = vsyncadd [#allocation9], %s69
      %s71 = sshll.u32 [#allocation10], 4
      %s72 = int_to_ptr.vmem [resolvable:$true] %s71
      %77 = dma.hbm_to_vmem [thread:$0]  %s4, 2048, %s72, [#allocation9], 128, 128, 8
    $region21: #{tpu_custom_call.1} parent=1 // pred_fallthru
      _
    // Predicated region
    $region22: #{tpu_custom_call.1} parent=1 // pred_check
      _
    $region23: #{tpu_custom_call.1} parent=1 // pred_check_branch
      %79 = sbr.rel (0) target = $region25
    $region24: #{tpu_custom_call.1} parent=1 // pred_region
      _
    $region25: #{tpu_custom_call.1} parent=1 // pred_fallthru
      _
    // Predicated region
    $region26: #{tpu_custom_call.1} parent=1 // pred_check
      _
    $region27: #{tpu_custom_call.1} parent=1 // pred_check_branch
      %81 = sbr.rel (0) target = $region29
    $region28: #{tpu_custom_call.1} parent=1 // pred_region
      %s83 = ssub.s32 2048, 2048
      %84 = vsyncadd [#allocation12], %s83
      %s85 = sshll.u32 [#allocation11], 4
      %s86 = int_to_ptr.vmem [resolvable:$true] %s85
      %91 = dma.hbm_to_vmem [thread:$0]  %s6, 2048, %s86, [#allocation12], 128, 128, 8
    $region29: #{tpu_custom_call.1} parent=1 // pred_fallthru
      _
    // Predicated region
    $region30: #{tpu_custom_call.1} parent=1 // pred_check
      _
    $region31: #{tpu_custom_call.1} parent=1 // pred_check_branch
      %93 = sbr.rel (0) target = $region33
    $region32: #{tpu_custom_call.1} parent=1 // pred_region
      _
    $region33: #{tpu_custom_call.1} parent=1 // pred_fallthru
      _
    // Predicated region
    $region34: #{tpu_custom_call.1} parent=1 // pred_check
      _
    $region35: #{tpu_custom_call.1} parent=1 // pred_check_branch
      %95 = sbr.rel (0) target = $region37
    $region36: #{tpu_custom_call.1} parent=1 // pred_region
      %96 = dma.done [#allocation3], 16384
    $region37: #{tpu_custom_call.1} parent=1 // pred_fallthru
      _
    // Predicated region
    $region38: #{tpu_custom_call.1} parent=1 // pred_check
      _
    $region39: #{tpu_custom_call.1} parent=1 // pred_check_branch
      %98 = sbr.rel (0) target = $region41
    $region40: #{tpu_custom_call.1} parent=1 // pred_region
      %99 = dma.done [#allocation6], 8192
    $region41: #{tpu_custom_call.1} parent=1 // pred_fallthru
      _
    // Predicated region
    $region42: #{tpu_custom_call.1} parent=1 // pred_check
      _
    $region43: #{tpu_custom_call.1} parent=1 // pred_check_branch
      %101 = sbr.rel (0) target = $region45
    $region44: #{tpu_custom_call.1} parent=1 // pred_region
      %102 = dma.done [#allocation6], 16384
    $region45: #{tpu_custom_call.1} parent=1 // pred_fallthru
      _
    // Predicated region
    $region46: #{tpu_custom_call.1} parent=1 // pred_check
      _
    $region47: #{tpu_custom_call.1} parent=1 // pred_check_branch
      %104 = sbr.rel (0) target = $region49
    $region48: #{tpu_custom_call.1} parent=1 // pred_region
      %105 = dma.done [#allocation9], 2048
    $region49: #{tpu_custom_call.1} parent=1 // pred_fallthru
      _
    // Predicated region
    $region50: #{tpu_custom_call.1} parent=1 // pred_check
      _
    $region51: #{tpu_custom_call.1} parent=1 // pred_check_branch
      %107 = sbr.rel (0) target = $region53
    $region52: #{tpu_custom_call.1} parent=1 // pred_region
      %108 = dma.done [#allocation9], 2048
    $region53: #{tpu_custom_call.1} parent=1 // pred_fallthru
      _
    // Predicated region
    $region54: #{tpu_custom_call.1} parent=1 // pred_check
      _
    $region55: #{tpu_custom_call.1} parent=1 // pred_check_branch
      %110 = sbr.rel (0) target = $region57
    $region56: #{tpu_custom_call.1} parent=1 // pred_region
      %111 = dma.done [#allocation12], 2048
    $region57: #{tpu_custom_call.1} parent=1 // pred_fallthru
      _
    %v112 = vld [vmem:[#allocation2] sm:$0xff]
    %v113 = vld [vmem:[#allocation2 + $0x8] sm:$0xff]
    %v114 = vld [vmem:[#allocation2 + $0x10] sm:$0xff]
    %v115 = vld [vmem:[#allocation2 + $0x18] sm:$0xff]
    %v116 = vld [vmem:[#allocation2 + $0x20] sm:$0xff]
    %v117 = vld [vmem:[#allocation2 + $0x28] sm:$0xff]
    %v118 = vld [vmem:[#allocation2 + $0x30] sm:$0xff]
    %v119 = vld [vmem:[#allocation2 + $0x38] sm:$0xff]
    %v120 = vld [vmem:[#allocation2 + $0x40] sm:$0xff]
    %v121 = vld [vmem:[#allocation2 + $0x48] sm:$0xff]
    %v122 = vld [vmem:[#allocation2 + $0x50] sm:$0xff]
    %v123 = vld [vmem:[#allocation2 + $0x58] sm:$0xff]
    %v124 = vld [vmem:[#allocation2 + $0x60] sm:$0xff]
    %v125 = vld [vmem:[#allocation2 + $0x68] sm:$0xff]
    %v126 = vld [vmem:[#allocation2 + $0x70] sm:$0xff]
    %v127 = vld [vmem:[#allocation2 + $0x78] sm:$0xff]
    %v128 = vld [vmem:[#allocation5] sm:$0xff]
    %v129 = vld [vmem:[#allocation5 + $0x8] sm:$0xff]
    %v130 = vld [vmem:[#allocation5 + $0x10] sm:$0xff]
    %v131 = vld [vmem:[#allocation5 + $0x18] sm:$0xff]
    %v132 = vld [vmem:[#allocation5 + $0x20] sm:$0xff]
    %v133 = vld [vmem:[#allocation5 + $0x28] sm:$0xff]
    %v134 = vld [vmem:[#allocation5 + $0x30] sm:$0xff]
    %v135 = vld [vmem:[#allocation5 + $0x38] sm:$0xff]
    %v136 = vld [vmem:[#allocation5 + $0x40] sm:$0xff]
    %v137 = vld [vmem:[#allocation5 + $0x48] sm:$0xff]
    %v138 = vld [vmem:[#allocation5 + $0x50] sm:$0xff]
    %v139 = vld [vmem:[#allocation5 + $0x58] sm:$0xff]
    %v140 = vld [vmem:[#allocation5 + $0x60] sm:$0xff]
    %v141 = vld [vmem:[#allocation5 + $0x68] sm:$0xff]
    %v142 = vld [vmem:[#allocation5 + $0x70] sm:$0xff]
    %v143 = vld [vmem:[#allocation5 + $0x78] sm:$0xff]
    %v144 = vld [vmem:[#allocation5 + $0x80] sm:$0xff]
    %v145 = vld [vmem:[#allocation5 + $0x88] sm:$0xff]
    %v146 = vld [vmem:[#allocation5 + $0x90] sm:$0xff]
    %v147 = vld [vmem:[#allocation5 + $0x98] sm:$0xff]
    %v148 = vld [vmem:[#allocation5 + $0xa0] sm:$0xff]
    %v149 = vld [vmem:[#allocation5 + $0xa8] sm:$0xff]
    %v150 = vld [vmem:[#allocation5 + $0xb0] sm:$0xff]
    %v151 = vld [vmem:[#allocation5 + $0xb8] sm:$0xff]
    %v152 = vld [vmem:[#allocation5 + $0xc0] sm:$0xff]
    %v153 = vld [vmem:[#allocation5 + $0xc8] sm:$0xff]
    %v154 = vld [vmem:[#allocation5 + $0xd0] sm:$0xff]
    %v155 = vld [vmem:[#allocation5 + $0xd8] sm:$0xff]
    %v156 = vld [vmem:[#allocation5 + $0xe0] sm:$0xff]
    %v157 = vld [vmem:[#allocation5 + $0xe8] sm:$0xff]
    %v158 = vld [vmem:[#allocation5 + $0xf0] sm:$0xff]
    %v159 = vld [vmem:[#allocation5 + $0xf8] sm:$0xff]
    %v160 = vld [vmem:[#allocation5 + $0x100] sm:$0xff]
    %v161 = vld [vmem:[#allocation5 + $0x108] sm:$0xff]
    %v162 = vld [vmem:[#allocation5 + $0x110] sm:$0xff]
    %v163 = vld [vmem:[#allocation5 + $0x118] sm:$0xff]
    %v164 = vld [vmem:[#allocation5 + $0x120] sm:$0xff]
    %v165 = vld [vmem:[#allocation5 + $0x128] sm:$0xff]
    %v166 = vld [vmem:[#allocation5 + $0x130] sm:$0xff]
    %v167 = vld [vmem:[#allocation5 + $0x138] sm:$0xff]
    %v168 = vld [vmem:[#allocation5 + $0x140] sm:$0xff]
    %v169 = vld [vmem:[#allocation5 + $0x148] sm:$0xff]
    %v170 = vld [vmem:[#allocation5 + $0x150] sm:$0xff]
    %v171 = vld [vmem:[#allocation5 + $0x158] sm:$0xff]
    %v172 = vld [vmem:[#allocation5 + $0x160] sm:$0xff]
    %v173 = vld [vmem:[#allocation5 + $0x168] sm:$0xff]
    %v174 = vld [vmem:[#allocation5 + $0x170] sm:$0xff]
    %v175 = vld [vmem:[#allocation5 + $0x178] sm:$0xff]
    %v176 = vld [vmem:[#allocation5 + $0x180] sm:$0xff]
    %v177 = vld [vmem:[#allocation5 + $0x188] sm:$0xff]
    %v178 = vld [vmem:[#allocation5 + $0x190] sm:$0xff]
    %v179 = vld [vmem:[#allocation5 + $0x198] sm:$0xff]
    %v180 = vld [vmem:[#allocation5 + $0x1a0] sm:$0xff]
    %v181 = vld [vmem:[#allocation5 + $0x1a8] sm:$0xff]
    %v182 = vld [vmem:[#allocation5 + $0x1b0] sm:$0xff]
    %v183 = vld [vmem:[#allocation5 + $0x1b8] sm:$0xff]
    %v184 = vld [vmem:[#allocation5 + $0x1c0] sm:$0xff]
    %v185 = vld [vmem:[#allocation5 + $0x1c8] sm:$0xff]
    %v186 = vld [vmem:[#allocation5 + $0x1d0] sm:$0xff]
    %v187 = vld [vmem:[#allocation5 + $0x1d8] sm:$0xff]
    %v188 = vld [vmem:[#allocation5 + $0x1e0] sm:$0xff]
    %v189 = vld [vmem:[#allocation5 + $0x1e8] sm:$0xff]
    %v190 = vld [vmem:[#allocation5 + $0x1f0] sm:$0xff]
    %v191 = vld [vmem:[#allocation5 + $0x1f8] sm:$0xff]
    %192 = vmatprep.subr.mxu0 %v129
    %193 = vmatpush1.msra.mxu0 %v128
    %194 = vmatprep.subr.mxu0 %v133
    %195 = vmatpush1.msra.mxu0 %v132
    %196 = vmatprep.subr.mxu0 %v137
    %197 = vmatpush1.msra.mxu0 %v136
    %198 = vmatprep.subr.mxu0 %v141
    %199 = vmatpush1.msra.mxu0 %v140
    %200 = vmatprep.subr.mxu0 %v145
    %201 = vmatpush1.msra.mxu0 %v144
    %202 = vmatprep.subr.mxu0 %v149
    %203 = vmatpush1.msra.mxu0 %v148
    %204 = vmatprep.subr.mxu0 %v153
    %205 = vmatpush1.msra.mxu0 %v152
    %206 = vmatprep.subr.mxu0 %v157
    %207 = vmatpush1.msra.mxu0 %v156
    %208 = vmatprep.subr.mxu0 %v161
    %209 = vmatpush1.msra.mxu0 %v160
    %210 = vmatprep.subr.mxu0 %v165
    %211 = vmatpush1.msra.mxu0 %v164
    %212 = vmatprep.subr.mxu0 %v169
    %213 = vmatpush1.msra.mxu0 %v168
    %214 = vmatprep.subr.mxu0 %v173
    %215 = vmatpush1.msra.mxu0 %v172
    %216 = vmatprep.subr.mxu0 %v177
    %217 = vmatpush1.msra.mxu0 %v176
    %218 = vmatprep.subr.mxu0 %v181
    %219 = vmatpush1.msra.mxu0 %v180
    %220 = vmatprep.subr.mxu0 %v185
    %221 = vmatpush1.msra.mxu0 %v184
    %222 = vmatprep.subr.mxu0 %v189
    %223 = vmatpush1.msra.mxu0 %v188
    %224 = vmatprep.subr.mxu0 0.0
    %225 = vmatpush1.msra.mxu0 0.0
    %226 = vmatprep.subr.mxu0 0.0
    %227 = vmatpush1.msra.mxu0 0.0
    %228 = vmatprep.subr.mxu0 0.0
    %229 = vmatpush1.msra.mxu0 0.0
    %230 = vmatprep.subr.mxu0 0.0
    %231 = vmatpush1.msra.mxu0 0.0
    %232 = vmatprep.subr.mxu0 0.0
    %233 = vmatpush1.msra.mxu0 0.0
    %234 = vmatprep.subr.mxu0 0.0
    %235 = vmatpush1.msra.mxu0 0.0
    %236 = vmatprep.subr.mxu0 0.0
    %237 = vmatpush1.msra.mxu0 0.0
    %238 = vmatprep.subr.mxu0 0.0
    %239 = vmatpush1.msra.mxu0 0.0
    %240 = vmatprep.subr.mxu0 0.0
    %241 = vmatpush1.msra.mxu0 0.0
    %242 = vmatprep.subr.mxu0 0.0
    %243 = vmatpush1.msra.mxu0 0.0
    %244 = vmatprep.subr.mxu0 0.0
    %245 = vmatpush1.msra.mxu0 0.0
    %246 = vmatprep.subr.mxu0 0.0
    %247 = vmatpush1.msra.mxu0 0.0
    %248 = vmatprep.subr.mxu0 0.0
    %249 = vmatpush1.msra.mxu0 0.0
    %250 = vmatprep.subr.mxu0 0.0
    %251 = vmatpush1.msra.mxu0 0.0
    %252 = vmatprep.subr.mxu0 0.0
    %253 = vmatpush1.msra.mxu0 0.0
    %254 = vmatprep.subr.mxu0 0.0
    %255 = vmatpush1.msra.mxu0 0.0
    %256 = vmatprep.mubr.f32.mxu0 0.0
    %257 = vmatmul.mubr.f32.gmra.mrb[0].mxu0 0.0
    %v258 = vpop.f32.mrb[0].mxu0
    %v259 = vadd.f32 0.0, %v258
    %v260 = vpop.f32.mrb[0].mxu0
    %v261 = vadd.f32 0.0, %v260
    %262 = vmatprep.mubr.f32.mxu0 0.0
    %263 = vmatmul.mubr.f32.gmra.mrb[0].mxu0 0.0
    %v264 = vpop.f32.mrb[0].mxu0
    %v265 = vadd.f32 0.0, %v264
    %v266 = vpop.f32.mrb[0].mxu0
    %v267 = vadd.f32 0.0, %v266
    %268 = vmatprep.mubr.f32.mxu0 0.0
    %269 = vmatmul.mubr.f32.gmra.mrb[0].mxu0 0.0
    %v270 = vpop.f32.mrb[0].mxu0
    %v271 = vadd.f32 0.0, %v270
    %v272 = vpop.f32.mrb[0].mxu0
    %v273 = vadd.f32 0.0, %v272
    %274 = vmatprep.mubr.f32.mxu0 0.0
    %275 = vmatmul.mubr.f32.gmra.mrb[0].mxu0 0.0
    %v276 = vpop.f32.mrb[0].mxu0
    %v277 = vadd.f32 0.0, %v276
    %v278 = vpop.f32.mrb[0].mxu0
    %v279 = vadd.f32 0.0, %v278
    %280 = vdwg.mxu0
    %281 = vmatprep.subr.mxu0 %v131
    %282 = vmatpush1.msra.mxu0 %v130
    %283 = vmatprep.subr.mxu0 %v135
    %284 = vmatpush1.msra.mxu0 %v134
    %285 = vmatprep.subr.mxu0 %v139
    %286 = vmatpush1.msra.mxu0 %v138
    %287 = vmatprep.subr.mxu0 %v143
    %288 = vmatpush1.msra.mxu0 %v142
    %289 = vmatprep.subr.mxu0 %v147
    %290 = vmatpush1.msra.mxu0 %v146
    %291 = vmatprep.subr.mxu0 %v151
    %292 = vmatpush1.msra.mxu0 %v150
    %293 = vmatprep.subr.mxu0 %v155
    %294 = vmatpush1.msra.mxu0 %v154
    %295 = vmatprep.subr.mxu0 %v159
    %296 = vmatpush1.msra.mxu0 %v158
    %297 = vmatprep.subr.mxu0 %v163
    %298 = vmatpush1.msra.mxu0 %v162
    %299 = vmatprep.subr.mxu0 %v167
    %300 = vmatpush1.msra.mxu0 %v166
    %301 = vmatprep.subr.mxu0 %v171
    %302 = vmatpush1.msra.mxu0 %v170
    %303 = vmatprep.subr.mxu0 %v175
    %304 = vmatpush1.msra.mxu0 %v174
    %305 = vmatprep.subr.mxu0 %v179
    %306 = vmatpush1.msra.mxu0 %v178
    %307 = vmatprep.subr.mxu0 %v183
    %308 = vmatpush1.msra.mxu0 %v182
    %309 = vmatprep.subr.mxu0 %v187
    %310 = vmatpush1.msra.mxu0 %v186
    %311 = vmatprep.subr.mxu0 %v191
    %312 = vmatpush1.msra.mxu0 %v190
    %313 = vmatprep.subr.mxu0 0.0
    %314 = vmatpush1.msra.mxu0 0.0
    %315 = vmatprep.subr.mxu0 0.0
    %316 = vmatpush1.msra.mxu0 0.0
    %317 = vmatprep.subr.mxu0 0.0
    %318 = vmatpush1.msra.mxu0 0.0
    %319 = vmatprep.subr.mxu0 0.0
    %320 = vmatpush1.msra.mxu0 0.0
    %321 = vmatprep.subr.mxu0 0.0
    %322 = vmatpush1.msra.mxu0 0.0
    %323 = vmatprep.subr.mxu0 0.0
    %324 = vmatpush1.msra.mxu0 0.0
    %325 = vmatprep.subr.mxu0 0.0
    %326 = vmatpush1.msra.mxu0 0.0
    %327 = vmatprep.subr.mxu0 0.0
    %328 = vmatpush1.msra.mxu0 0.0
    %329 = vmatprep.subr.mxu0 0.0
    %330 = vmatpush1.msra.mxu0 0.0
    %331 = vmatprep.subr.mxu0 0.0
    %332 = vmatpush1.msra.mxu0 0.0
    %333 = vmatprep.subr.mxu0 0.0
    %334 = vmatpush1.msra.mxu0 0.0
    %335 = vmatprep.subr.mxu0 0.0
    %336 = vmatpush1.msra.mxu0 0.0
    %337 = vmatprep.subr.mxu0 0.0
    %338 = vmatpush1.msra.mxu0 0.0
    %339 = vmatprep.subr.mxu0 0.0
    %340 = vmatpush1.msra.mxu0 0.0
    %341 = vmatprep.subr.mxu0 0.0
    %342 = vmatpush1.msra.mxu0 0.0
    %343 = vmatprep.subr.mxu0 0.0
    %344 = vmatpush1.msra.mxu0 0.0
    %345 = vmatprep.mubr.f32.mxu0 0.0
    %346 = vmatmul.mubr.f32.gmra.mrb[0].mxu0 0.0
    %v347 = vpop.f32.mrb[0].mxu0
    %v348 = vadd.f32 0.0, %v347
    %v349 = vpop.f32.mrb[0].mxu0
    %v350 = vadd.f32 0.0, %v349
    %351 = vmatprep.mubr.f32.mxu0 0.0
    %352 = vmatmul.mubr.f32.gmra.mrb[0].mxu0 0.0
    %v353 = vpop.f32.mrb[0].mxu0
    %v354 = vadd.f32 0.0, %v353
    %v355 = vpop.f32.mrb[0].mxu0
    %v356 = vadd.f32 0.0, %v355
    %357 = vmatprep.mubr.f32.mxu0 0.0
    %358 = vmatmul.mubr.f32.gmra.mrb[0].mxu0 0.0
    %v359 = vpop.f32.mrb[0].mxu0
    %v360 = vadd.f32 0.0, %v359
    %v361 = vpop.f32.mrb[0].mxu0
    %v362 = vadd.f32 0.0, %v361
    %363 = vmatprep.mubr.f32.mxu0 0.0
    %364 = vmatmul.mubr.f32.gmra.mrb[0].mxu0 0.0
    %v365 = vpop.f32.mrb[0].mxu0
    %v366 = vadd.f32 0.0, %v365
    %v367 = vpop.f32.mrb[0].mxu0
    %v368 = vadd.f32 0.0, %v367
    %369 = vdwg.mxu0
    %v370 = vadd.f32 %v112, %v259
    %v371 = vadd.f32 %v113, %v261
    %v372 = vadd.f32 %v114, %v348
    %v373 = vadd.f32 %v115, %v350
    %v374 = vadd.f32 %v116, %v265
    %v375 = vadd.f32 %v117, %v267
    %v376 = vadd.f32 %v118, %v354
    %v377 = vadd.f32 %v119, %v356
    %v378 = vadd.f32 %v120, %v271
    %v379 = vadd.f32 %v121, %v273
    %v380 = vadd.f32 %v122, %v360
    %v381 = vadd.f32 %v123, %v362
    %v382 = vadd.f32 %v124, %v277
    %v383 = vadd.f32 %v125, %v279
    %v384 = vadd.f32 %v126, %v366
    %v385 = vadd.f32 %v127, %v368
    %v386 = vxor.u32 %v370, 2147483648
    %v387 = vxor.u32 %v371, 2147483648
    %v388 = vxor.u32 %v372, 2147483648
    %v389 = vxor.u32 %v374, 2147483648
    %v390 = vxor.u32 %v375, 2147483648
    %v391 = vxor.u32 %v376, 2147483648
    %v392 = vxor.u32 %v378, 2147483648
    %v393 = vxor.u32 %v379, 2147483648
    %v394 = vxor.u32 %v380, 2147483648
    %v395 = vxor.u32 %v382, 2147483648
    %v396 = vxor.u32 %v383, 2147483648
    %v397 = vxor.u32 %v384, 2147483648
    %v398 = vmul.f32 %v386, 1.442695
    %v399 = vpow.pop %v398
    %v400 = vmul.f32 %v387, 1.442695
    %v401 = vpow.pop %v400
    %v402 = vmul.f32 %v388, 1.442695
    %v403 = vpow.pop %v402
    %v404 = vmul.f32 %v389, 1.442695
    %v405 = vpow.pop %v404
    %v406 = vmul.f32 %v390, 1.442695
    %v407 = vpow.pop %v406
    %v408 = vmul.f32 %v391, 1.442695
    %v409 = vpow.pop %v408
    %v410 = vmul.f32 %v392, 1.442695
    %v411 = vpow.pop %v410
    %v412 = vmul.f32 %v393, 1.442695
    %v413 = vpow.pop %v412
    %v414 = vmul.f32 %v394, 1.442695
    %v415 = vpow.pop %v414
    %v416 = vmul.f32 %v395, 1.442695
    %v417 = vpow.pop %v416
    %v418 = vmul.f32 %v396, 1.442695
    %v419 = vpow.pop %v418
    %v420 = vmul.f32 %v397, 1.442695
    %v421 = vpow.pop %v420
    %v422 = vadd.f32 %v399, 1.0
    %v423 = vadd.f32 %v401, 1.0
    %v424 = vadd.f32 %v403, 1.0
    %v425 = vadd.f32 %v405, 1.0
    %v426 = vadd.f32 %v407, 1.0
    %v427 = vadd.f32 %v409, 1.0
    %v428 = vadd.f32 %v411, 1.0
    %v429 = vadd.f32 %v413, 1.0
    %v430 = vadd.f32 %v415, 1.0
    %v431 = vadd.f32 %v417, 1.0
    %v432 = vadd.f32 %v419, 1.0
    %v433 = vadd.f32 %v421, 1.0
    %v434 = vrcp.pop %v422
    %v435 = vmul.f32 1.0, %v434
    %v436 = vrcp.pop %v423
    %v437 = vmul.f32 1.0, %v436
    %v438 = vrcp.pop %v424
    %v439 = vmul.f32 1.0, %v438
    %v440 = vrcp.pop %v425
    %v441 = vmul.f32 1.0, %v440
    %v442 = vrcp.pop %v426
    %v443 = vmul.f32 1.0, %v442
    %v444 = vrcp.pop %v427
    %v445 = vmul.f32 1.0, %v444
    %v446 = vrcp.pop %v428
    %v447 = vmul.f32 1.0, %v446
    %v448 = vrcp.pop %v429
    %v449 = vmul.f32 1.0, %v448
    %v450 = vrcp.pop %v430
    %v451 = vmul.f32 1.0, %v450
    %v452 = vrcp.pop %v431
    %v453 = vmul.f32 1.0, %v452
    %v454 = vrcp.pop %v432
    %v455 = vmul.f32 1.0, %v454
    %v456 = vrcp.pop %v433
    %v457 = vmul.f32 1.0, %v456
    %v458 = vtanh.pop %v373
    %v459 = vtanh.pop %v377
    %v460 = vtanh.pop %v381
    %v461 = vtanh.pop %v385
    %v462 = vmul.f32 %v437, 0.0
    %v463 = vmul.f32 %v443, 0.0
    %v464 = vmul.f32 %v449, 0.0
    %v465 = vmul.f32 %v455, 0.0
    %v466 = vmul.f32 %v435, %v458
    %v467 = vmul.f32 %v441, %v459
    %v468 = vmul.f32 %v447, %v460
    %v469 = vmul.f32 %v453, %v461
    %v470 = vadd.f32 %v462, %v466
    %v471 = vadd.f32 %v463, %v467
    %v472 = vadd.f32 %v464, %v468
    %v473 = vadd.f32 %v465, %v469
    %v474 = vtanh.pop %v470
    %v475 = vtanh.pop %v471
    %v476 = vtanh.pop %v472
    %v477 = vtanh.pop %v473
    %v478 = vmul.f32 %v439, %v474
    %v479 = vmul.f32 %v445, %v475
    %v480 = vmul.f32 %v451, %v476
    %v481 = vmul.f32 %v457, %v477
    %v482 = vld [vmem:[#allocation7] sm:$0xff]
    %v483 = vld [vmem:[#allocation7 + $0x8] sm:$0xff]
    %v484 = vld [vmem:[#allocation7 + $0x10] sm:$0xff]
    %v485 = vld [vmem:[#allocation7 + $0x18] sm:$0xff]
    %v486 = vld [vmem:[#allocation7 + $0x20] sm:$0xff]
    %v487 = vld [vmem:[#allocation7 + $0x28] sm:$0xff]
    %v488 = vld [vmem:[#allocation7 + $0x30] sm:$0xff]
    %v489 = vld [vmem:[#allocation7 + $0x38] sm:$0xff]
    %v490 = vld [vmem:[#allocation7 + $0x40] sm:$0xff]
    %v491 = vld [vmem:[#allocation7 + $0x48] sm:$0xff]
    %v492 = vld [vmem:[#allocation7 + $0x50] sm:$0xff]
    %v493 = vld [vmem:[#allocation7 + $0x58] sm:$0xff]
    %v494 = vld [vmem:[#allocation7 + $0x60] sm:$0xff]
    %v495 = vld [vmem:[#allocation7 + $0x68] sm:$0xff]
    %v496 = vld [vmem:[#allocation7 + $0x70] sm:$0xff]
    %v497 = vld [vmem:[#allocation7 + $0x78] sm:$0xff]
    %v498 = vld [vmem:[#allocation7 + $0x80] sm:$0xff]
    %v499 = vld [vmem:[#allocation7 + $0x88] sm:$0xff]
    %v500 = vld [vmem:[#allocation7 + $0x90] sm:$0xff]
    %v501 = vld [vmem:[#allocation7 + $0x98] sm:$0xff]
    %v502 = vld [vmem:[#allocation7 + $0xa0] sm:$0xff]
    %v503 = vld [vmem:[#allocation7 + $0xa8] sm:$0xff]
    %v504 = vld [vmem:[#allocation7 + $0xb0] sm:$0xff]
    %v505 = vld [vmem:[#allocation7 + $0xb8] sm:$0xff]
    %v506 = vld [vmem:[#allocation7 + $0xc0] sm:$0xff]
    %v507 = vld [vmem:[#allocation7 + $0xc8] sm:$0xff]
    %v508 = vld [vmem:[#allocation7 + $0xd0] sm:$0xff]
    %v509 = vld [vmem:[#allocation7 + $0xd8] sm:$0xff]
    %v510 = vld [vmem:[#allocation7 + $0xe0] sm:$0xff]
    %v511 = vld [vmem:[#allocation7 + $0xe8] sm:$0xff]
    %v512 = vld [vmem:[#allocation7 + $0xf0] sm:$0xff]
    %v513 = vld [vmem:[#allocation7 + $0xf8] sm:$0xff]
    %v514 = vld [vmem:[#allocation7 + $0x100] sm:$0xff]
    %v515 = vld [vmem:[#allocation7 + $0x108] sm:$0xff]
    %v516 = vld [vmem:[#allocation7 + $0x110] sm:$0xff]
    %v517 = vld [vmem:[#allocation7 + $0x118] sm:$0xff]
    %v518 = vld [vmem:[#allocation7 + $0x120] sm:$0xff]
    %v519 = vld [vmem:[#allocation7 + $0x128] sm:$0xff]
    %v520 = vld [vmem:[#allocation7 + $0x130] sm:$0xff]
    %v521 = vld [vmem:[#allocation7 + $0x138] sm:$0xff]
    %v522 = vld [vmem:[#allocation7 + $0x140] sm:$0xff]
    %v523 = vld [vmem:[#allocation7 + $0x148] sm:$0xff]
    %v524 = vld [vmem:[#allocation7 + $0x150] sm:$0xff]
    %v525 = vld [vmem:[#allocation7 + $0x158] sm:$0xff]
    %v526 = vld [vmem:[#allocation7 + $0x160] sm:$0xff]
    %v527 = vld [vmem:[#allocation7 + $0x168] sm:$0xff]
    %v528 = vld [vmem:[#allocation7 + $0x170] sm:$0xff]
    %v529 = vld [vmem:[#allocation7 + $0x178] sm:$0xff]
    %v530 = vld [vmem:[#allocation7 + $0x180] sm:$0xff]
    %v531 = vld [vmem:[#allocation7 + $0x188] sm:$0xff]
    %v532 = vld [vmem:[#allocation7 + $0x190] sm:$0xff]
    %v533 = vld [vmem:[#allocation7 + $0x198] sm:$0xff]
    %v534 = vld [vmem:[#allocation7 + $0x1a0] sm:$0xff]
    %v535 = vld [vmem:[#allocation7 + $0x1a8] sm:$0xff]
    %v536 = vld [vmem:[#allocation7 + $0x1b0] sm:$0xff]
    %v537 = vld [vmem:[#allocation7 + $0x1b8] sm:$0xff]
    %v538 = vld [vmem:[#allocation7 + $0x1c0] sm:$0xff]
    %v539 = vld [vmem:[#allocation7 + $0x1c8] sm:$0xff]
    %v540 = vld [vmem:[#allocation7 + $0x1d0] sm:$0xff]
    %v541 = vld [vmem:[#allocation7 + $0x1d8] sm:$0xff]
    %v542 = vld [vmem:[#allocation7 + $0x1e0] sm:$0xff]
    %v543 = vld [vmem:[#allocation7 + $0x1e8] sm:$0xff]
    %v544 = vld [vmem:[#allocation7 + $0x1f0] sm:$0xff]
    %v545 = vld [vmem:[#allocation7 + $0x1f8] sm:$0xff]
    %v546 = vld [vmem:[#allocation7 + $0x200] sm:$0xff]
    %v547 = vld [vmem:[#allocation7 + $0x208] sm:$0xff]
    %v548 = vld [vmem:[#allocation7 + $0x210] sm:$0xff]
    %v549 = vld [vmem:[#allocation7 + $0x218] sm:$0xff]
    %v550 = vld [vmem:[#allocation7 + $0x220] sm:$0xff]
    %v551 = vld [vmem:[#allocation7 + $0x228] sm:$0xff]
    %v552 = vld [vmem:[#allocation7 + $0x230] sm:$0xff]
    %v553 = vld [vmem:[#allocation7 + $0x238] sm:$0xff]
    %v554 = vld [vmem:[#allocation7 + $0x240] sm:$0xff]
    %v555 = vld [vmem:[#allocation7 + $0x248] sm:$0xff]
    %v556 = vld [vmem:[#allocation7 + $0x250] sm:$0xff]
    %v557 = vld [vmem:[#allocation7 + $0x258] sm:$0xff]
    %v558 = vld [vmem:[#allocation7 + $0x260] sm:$0xff]
    %v559 = vld [vmem:[#allocation7 + $0x268] sm:$0xff]
    %v560 = vld [vmem:[#allocation7 + $0x270] sm:$0xff]
    %v561 = vld [vmem:[#allocation7 + $0x278] sm:$0xff]
    %v562 = vld [vmem:[#allocation7 + $0x280] sm:$0xff]
    %v563 = vld [vmem:[#allocation7 + $0x288] sm:$0xff]
    %v564 = vld [vmem:[#allocation7 + $0x290] sm:$0xff]
    %v565 = vld [vmem:[#allocation7 + $0x298] sm:$0xff]
    %v566 = vld [vmem:[#allocation7 + $0x2a0] sm:$0xff]
    %v567 = vld [vmem:[#allocation7 + $0x2a8] sm:$0xff]
    %v568 = vld [vmem:[#allocation7 + $0x2b0] sm:$0xff]
    %v569 = vld [vmem:[#allocation7 + $0x2b8] sm:$0xff]
    %v570 = vld [vmem:[#allocation7 + $0x2c0] sm:$0xff]
    %v571 = vld [vmem:[#allocation7 + $0x2c8] sm:$0xff]
    %v572 = vld [vmem:[#allocation7 + $0x2d0] sm:$0xff]
    %v573 = vld [vmem:[#allocation7 + $0x2d8] sm:$0xff]
    %v574 = vld [vmem:[#allocation7 + $0x2e0] sm:$0xff]
    %v575 = vld [vmem:[#allocation7 + $0x2e8] sm:$0xff]
    %v576 = vld [vmem:[#allocation7 + $0x2f0] sm:$0xff]
    %v577 = vld [vmem:[#allocation7 + $0x2f8] sm:$0xff]
    %v578 = vld [vmem:[#allocation7 + $0x300] sm:$0xff]
    %v579 = vld [vmem:[#allocation7 + $0x308] sm:$0xff]
    %v580 = vld [vmem:[#allocation7 + $0x310] sm:$0xff]
    %v581 = vld [vmem:[#allocation7 + $0x318] sm:$0xff]
    %v582 = vld [vmem:[#allocation7 + $0x320] sm:$0xff]
    %v583 = vld [vmem:[#allocation7 + $0x328] sm:$0xff]
    %v584 = vld [vmem:[#allocation7 + $0x330] sm:$0xff]
    %v585 = vld [vmem:[#allocation7 + $0x338] sm:$0xff]
    %v586 = vld [vmem:[#allocation7 + $0x340] sm:$0xff]
    %v587 = vld [vmem:[#allocation7 + $0x348] sm:$0xff]
    %v588 = vld [vmem:[#allocation7 + $0x350] sm:$0xff]
    %v589 = vld [vmem:[#allocation7 + $0x358] sm:$0xff]
    %v590 = vld [vmem:[#allocation7 + $0x360] sm:$0xff]
    %v591 = vld [vmem:[#allocation7 + $0x368] sm:$0xff]
    %v592 = vld [vmem:[#allocation7 + $0x370] sm:$0xff]
    %v593 = vld [vmem:[#allocation7 + $0x378] sm:$0xff]
    %v594 = vld [vmem:[#allocation7 + $0x380] sm:$0xff]
    %v595 = vld [vmem:[#allocation7 + $0x388] sm:$0xff]
    %v596 = vld [vmem:[#allocation7 + $0x390] sm:$0xff]
    %v597 = vld [vmem:[#allocation7 + $0x398] sm:$0xff]
    %v598 = vld [vmem:[#allocation7 + $0x3a0] sm:$0xff]
    %v599 = vld [vmem:[#allocation7 + $0x3a8] sm:$0xff]
    %v600 = vld [vmem:[#allocation7 + $0x3b0] sm:$0xff]
    %v601 = vld [vmem:[#allocation7 + $0x3b8] sm:$0xff]
    %v602 = vld [vmem:[#allocation7 + $0x3c0] sm:$0xff]
    %v603 = vld [vmem:[#allocation7 + $0x3c8] sm:$0xff]
    %v604 = vld [vmem:[#allocation7 + $0x3d0] sm:$0xff]
    %v605 = vld [vmem:[#allocation7 + $0x3d8] sm:$0xff]
    %v606 = vld [vmem:[#allocation7 + $0x3e0] sm:$0xff]
    %v607 = vld [vmem:[#allocation7 + $0x3e8] sm:$0xff]
    %v608 = vld [vmem:[#allocation7 + $0x3f0] sm:$0xff]
    %v609 = vld [vmem:[#allocation7 + $0x3f8] sm:$0xff]
    %v610 = vld [vmem:[#allocation8] sm:$0xff]
    %v611 = vld [vmem:[#allocation8 + $0x8] sm:$0xff]
    %v612 = vld [vmem:[#allocation8 + $0x10] sm:$0xff]
    %v613 = vld [vmem:[#allocation8 + $0x18] sm:$0xff]
    %v614 = vld [vmem:[#allocation8 + $0x20] sm:$0xff]
    %v615 = vld [vmem:[#allocation8 + $0x28] sm:$0xff]
    %v616 = vld [vmem:[#allocation8 + $0x30] sm:$0xff]
    %v617 = vld [vmem:[#allocation8 + $0x38] sm:$0xff]
    %v618 = vld [vmem:[#allocation8 + $0x40] sm:$0xff]
    %v619 = vld [vmem:[#allocation8 + $0x48] sm:$0xff]
    %v620 = vld [vmem:[#allocation8 + $0x50] sm:$0xff]
    %v621 = vld [vmem:[#allocation8 + $0x58] sm:$0xff]
    %v622 = vld [vmem:[#allocation8 + $0x60] sm:$0xff]
    %v623 = vld [vmem:[#allocation8 + $0x68] sm:$0xff]
    %v624 = vld [vmem:[#allocation8 + $0x70] sm:$0xff]
    %v625 = vld [vmem:[#allocation8 + $0x78] sm:$0xff]
    %626 = vmatprep.subr.mxu0 %v483
    %627 = vmatpush1.msra.mxu0 %v482
    %628 = vmatprep.subr.mxu0 %v487
    %629 = vmatpush1.msra.mxu0 %v486
    %630 = vmatprep.subr.mxu0 %v491
    %631 = vmatpush1.msra.mxu0 %v490
    %632 = vmatprep.subr.mxu0 %v495
    %633 = vmatpush1.msra.mxu0 %v494
    %634 = vmatprep.subr.mxu0 %v499
    %635 = vmatpush1.msra.mxu0 %v498
    %636 = vmatprep.subr.mxu0 %v503
    %637 = vmatpush1.msra.mxu0 %v502
    %638 = vmatprep.subr.mxu0 %v507
    %639 = vmatpush1.msra.mxu0 %v506
    %640 = vmatprep.subr.mxu0 %v511
    %641 = vmatpush1.msra.mxu0 %v510
    %642 = vmatprep.subr.mxu0 %v515
    %643 = vmatpush1.msra.mxu0 %v514
    %644 = vmatprep.subr.mxu0 %v519
    %645 = vmatpush1.msra.mxu0 %v518
    %646 = vmatprep.subr.mxu0 %v523
    %647 = vmatpush1.msra.mxu0 %v522
    %648 = vmatprep.subr.mxu0 %v527
    %649 = vmatpush1.msra.mxu0 %v526
    %650 = vmatprep.subr.mxu0 %v531
    %651 = vmatpush1.msra.mxu0 %v530
    %652 = vmatprep.subr.mxu0 %v535
    %653 = vmatpush1.msra.mxu0 %v534
    %654 = vmatprep.subr.mxu0 %v539
    %655 = vmatpush1.msra.mxu0 %v538
    %656 = vmatprep.subr.mxu0 %v543
    %657 = vmatpush1.msra.mxu0 %v542
    %658 = vmatprep.subr.mxu0 %v547
    %659 = vmatpush1.msra.mxu0 %v546
    %660 = vmatprep.subr.mxu0 %v551
    %661 = vmatpush1.msra.mxu0 %v550
    %662 = vmatprep.subr.mxu0 %v555
    %663 = vmatpush1.msra.mxu0 %v554
    %664 = vmatprep.subr.mxu0 %v559
    %665 = vmatpush1.msra.mxu0 %v558
    %666 = vmatprep.subr.mxu0 %v563
    %667 = vmatpush1.msra.mxu0 %v562
    %668 = vmatprep.subr.mxu0 %v567
    %669 = vmatpush1.msra.mxu0 %v566
    %670 = vmatprep.subr.mxu0 %v571
    %671 = vmatpush1.msra.mxu0 %v570
    %672 = vmatprep.subr.mxu0 %v575
    %673 = vmatpush1.msra.mxu0 %v574
    %674 = vmatprep.subr.mxu0 %v579
    %675 = vmatpush1.msra.mxu0 %v578
    %676 = vmatprep.subr.mxu0 %v583
    %677 = vmatpush1.msra.mxu0 %v582
    %678 = vmatprep.subr.mxu0 %v587
    %679 = vmatpush1.msra.mxu0 %v586
    %680 = vmatprep.subr.mxu0 %v591
    %681 = vmatpush1.msra.mxu0 %v590
    %682 = vmatprep.subr.mxu0 %v595
    %683 = vmatpush1.msra.mxu0 %v594
    %684 = vmatprep.subr.mxu0 %v599
    %685 = vmatpush1.msra.mxu0 %v598
    %686 = vmatprep.subr.mxu0 %v603
    %687 = vmatpush1.msra.mxu0 %v602
    %688 = vmatprep.subr.mxu0 %v607
    %689 = vmatpush1.msra.mxu0 %v606
    %690 = vmatprep.mubr.f32.mxu0 0.0
    %691 = vmatmul.mubr.f32.gmra.mrb[0].mxu0 %v478
    %v692 = vpop.f32.mrb[0].mxu0
    %v693 = vadd.f32 %v610, %v692
    %v694 = vpop.f32.mrb[0].mxu0
    %v695 = vadd.f32 %v611, %v694
    %696 = vmatprep.mubr.f32.mxu0 0.0
    %697 = vmatmul.mubr.f32.gmra.mrb[0].mxu0 %v479
    %v698 = vpop.f32.mrb[0].mxu0
    %v699 = vadd.f32 %v614, %v698
    %v700 = vpop.f32.mrb[0].mxu0
    %v701 = vadd.f32 %v615, %v700
    %702 = vmatprep.mubr.f32.mxu0 0.0
    %703 = vmatmul.mubr.f32.gmra.mrb[0].mxu0 %v480
    %v704 = vpop.f32.mrb[0].mxu0
    %v705 = vadd.f32 %v618, %v704
    %v706 = vpop.f32.mrb[0].mxu0
    %v707 = vadd.f32 %v619, %v706
    %708 = vmatprep.mubr.f32.mxu0 0.0
    %709 = vmatmul.mubr.f32.gmra.mrb[0].mxu0 %v481
    %v710 = vpop.f32.mrb[0].mxu0
    %v711 = vadd.f32 %v622, %v710
    %v712 = vpop.f32.mrb[0].mxu0
    %v713 = vadd.f32 %v623, %v712
    %714 = vdwg.mxu0
    %715 = vmatprep.subr.mxu0 %v485
    %716 = vmatpush1.msra.mxu0 %v484
    %717 = vmatprep.subr.mxu0 %v489
    %718 = vmatpush1.msra.mxu0 %v488
    %719 = vmatprep.subr.mxu0 %v493
    %720 = vmatpush1.msra.mxu0 %v492
    %721 = vmatprep.subr.mxu0 %v497
    %722 = vmatpush1.msra.mxu0 %v496
    %723 = vmatprep.subr.mxu0 %v501
    %724 = vmatpush1.msra.mxu0 %v500
    %725 = vmatprep.subr.mxu0 %v505
    %726 = vmatpush1.msra.mxu0 %v504
    %727 = vmatprep.subr.mxu0 %v509
    %728 = vmatpush1.msra.mxu0 %v508
    %729 = vmatprep.subr.mxu0 %v513
    %730 = vmatpush1.msra.mxu0 %v512
    %731 = vmatprep.subr.mxu0 %v517
    %732 = vmatpush1.msra.mxu0 %v516
    %733 = vmatprep.subr.mxu0 %v521
    %734 = vmatpush1.msra.mxu0 %v520
    %735 = vmatprep.subr.mxu0 %v525
    %736 = vmatpush1.msra.mxu0 %v524
    %737 = vmatprep.subr.mxu0 %v529
    %738 = vmatpush1.msra.mxu0 %v528
    %739 = vmatprep.subr.mxu0 %v533
    %740 = vmatpush1.msra.mxu0 %v532
    %741 = vmatprep.subr.mxu0 %v537
    %742 = vmatpush1.msra.mxu0 %v536
    %743 = vmatprep.subr.mxu0 %v541
    %744 = vmatpush1.msra.mxu0 %v540
    %745 = vmatprep.subr.mxu0 %v545
    %746 = vmatpush1.msra.mxu0 %v544
    %747 = vmatprep.subr.mxu0 %v549
    %748 = vmatpush1.msra.mxu0 %v548
    %749 = vmatprep.subr.mxu0 %v553
    %750 = vmatpush1.msra.mxu0 %v552
    %751 = vmatprep.subr.mxu0 %v557
    %752 = vmatpush1.msra.mxu0 %v556
    %753 = vmatprep.subr.mxu0 %v561
    %754 = vmatpush1.msra.mxu0 %v560
    %755 = vmatprep.subr.mxu0 %v565
    %756 = vmatpush1.msra.mxu0 %v564
    %757 = vmatprep.subr.mxu0 %v569
    %758 = vmatpush1.msra.mxu0 %v568
    %759 = vmatprep.subr.mxu0 %v573
    %760 = vmatpush1.msra.mxu0 %v572
    %761 = vmatprep.subr.mxu0 %v577
    %762 = vmatpush1.msra.mxu0 %v576
    %763 = vmatprep.subr.mxu0 %v581
    %764 = vmatpush1.msra.mxu0 %v580
    %765 = vmatprep.subr.mxu0 %v585
    %766 = vmatpush1.msra.mxu0 %v584
    %767 = vmatprep.subr.mxu0 %v589
    %768 = vmatpush1.msra.mxu0 %v588
    %769 = vmatprep.subr.mxu0 %v593
    %770 = vmatpush1.msra.mxu0 %v592
    %771 = vmatprep.subr.mxu0 %v597
    %772 = vmatpush1.msra.mxu0 %v596
    %773 = vmatprep.subr.mxu0 %v601
    %774 = vmatpush1.msra.mxu0 %v600
    %775 = vmatprep.subr.mxu0 %v605
    %776 = vmatpush1.msra.mxu0 %v604
    %777 = vmatprep.subr.mxu0 %v609
    %778 = vmatpush1.msra.mxu0 %v608
    %779 = vmatprep.mubr.f32.mxu0 0.0
    %780 = vmatmul.mubr.f32.gmra.mrb[0].mxu0 %v478
    %v781 = vpop.f32.mrb[0].mxu0
    %v782 = vadd.f32 %v612, %v781
    %v783 = vpop.f32.mrb[0].mxu0
    %v784 = vadd.f32 %v613, %v783
    %785 = vmatprep.mubr.f32.mxu0 0.0
    %786 = vmatmul.mubr.f32.gmra.mrb[0].mxu0 %v479
    %v787 = vpop.f32.mrb[0].mxu0
    %v788 = vadd.f32 %v616, %v787
    %v789 = vpop.f32.mrb[0].mxu0
    %v790 = vadd.f32 %v617, %v789
    %791 = vmatprep.mubr.f32.mxu0 0.0
    %792 = vmatmul.mubr.f32.gmra.mrb[0].mxu0 %v480
    %v793 = vpop.f32.mrb[0].mxu0
    %v794 = vadd.f32 %v620, %v793
    %v795 = vpop.f32.mrb[0].mxu0
    %v796 = vadd.f32 %v621, %v795
    %797 = vmatprep.mubr.f32.mxu0 0.0
    %798 = vmatmul.mubr.f32.gmra.mrb[0].mxu0 %v481
    %v799 = vpop.f32.mrb[0].mxu0
    %v800 = vadd.f32 %v624, %v799
    %v801 = vpop.f32.mrb[0].mxu0
    %v802 = vadd.f32 %v625, %v801
    %803 = vdwg.mxu0
    %v804 = vxor.u32 %v693, 2147483648
    %v805 = vxor.u32 %v695, 2147483648
    %v806 = vxor.u32 %v782, 2147483648
    %v807 = vxor.u32 %v699, 2147483648
    %v808 = vxor.u32 %v701, 2147483648
    %v809 = vxor.u32 %v788, 2147483648
    %v810 = vxor.u32 %v705, 2147483648
    %v811 = vxor.u32 %v707, 2147483648
    %v812 = vxor.u32 %v794, 2147483648
    %v813 = vxor.u32 %v711, 2147483648
    %v814 = vxor.u32 %v713, 2147483648
    %v815 = vxor.u32 %v800, 2147483648
    %v816 = vmul.f32 %v804, 1.442695
    %v817 = vpow.pop %v816
    %v818 = vmul.f32 %v805, 1.442695
    %v819 = vpow.pop %v818
    %v820 = vmul.f32 %v806, 1.442695
    %v821 = vpow.pop %v820
    %v822 = vmul.f32 %v807, 1.442695
    %v823 = vpow.pop %v822
    %v824 = vmul.f32 %v808, 1.442695
    %v825 = vpow.pop %v824
    %v826 = vmul.f32 %v809, 1.442695
    %v827 = vpow.pop %v826
    %v828 = vmul.f32 %v810, 1.442695
    %v829 = vpow.pop %v828
    %v830 = vmul.f32 %v811, 1.442695
    %v831 = vpow.pop %v830
    %v832 = vmul.f32 %v812, 1.442695
    %v833 = vpow.pop %v832
    %v834 = vmul.f32 %v813, 1.442695
    %v835 = vpow.pop %v834
    %v836 = vmul.f32 %v814, 1.442695
    %v837 = vpow.pop %v836
    %v838 = vmul.f32 %v815, 1.442695
    %v839 = vpow.pop %v838
    %v840 = vadd.f32 %v817, 1.0
    %v841 = vadd.f32 %v819, 1.0
    %v842 = vadd.f32 %v821, 1.0
    %v843 = vadd.f32 %v823, 1.0
    %v844 = vadd.f32 %v825, 1.0
    %v845 = vadd.f32 %v827, 1.0
    %v846 = vadd.f32 %v829, 1.0
    %v847 = vadd.f32 %v831, 1.0
    %v848 = vadd.f32 %v833, 1.0
    %v849 = vadd.f32 %v835, 1.0
    %v850 = vadd.f32 %v837, 1.0
    %v851 = vadd.f32 %v839, 1.0
    %v852 = vrcp.pop %v840
    %v853 = vmul.f32 1.0, %v852
    %v854 = vrcp.pop %v841
    %v855 = vmul.f32 1.0, %v854
    %v856 = vrcp.pop %v842
    %v857 = vmul.f32 1.0, %v856
    %v858 = vrcp.pop %v843
    %v859 = vmul.f32 1.0, %v858
    %v860 = vrcp.pop %v844
    %v861 = vmul.f32 1.0, %v860
    %v862 = vrcp.pop %v845
    %v863 = vmul.f32 1.0, %v862
    %v864 = vrcp.pop %v846
    %v865 = vmul.f32 1.0, %v864
    %v866 = vrcp.pop %v847
    %v867 = vmul.f32 1.0, %v866
    %v868 = vrcp.pop %v848
    %v869 = vmul.f32 1.0, %v868
    %v870 = vrcp.pop %v849
    %v871 = vmul.f32 1.0, %v870
    %v872 = vrcp.pop %v850
    %v873 = vmul.f32 1.0, %v872
    %v874 = vrcp.pop %v851
    %v875 = vmul.f32 1.0, %v874
    %v876 = vtanh.pop %v784
    %v877 = vtanh.pop %v790
    %v878 = vtanh.pop %v796
    %v879 = vtanh.pop %v802
    %v880 = vmul.f32 %v855, 0.0
    %v881 = vmul.f32 %v861, 0.0
    %v882 = vmul.f32 %v867, 0.0
    %v883 = vmul.f32 %v873, 0.0
    %v884 = vmul.f32 %v853, %v876
    %v885 = vmul.f32 %v859, %v877
    %v886 = vmul.f32 %v865, %v878
    %v887 = vmul.f32 %v871, %v879
    %v888 = vadd.f32 %v880, %v884
    %v889 = vadd.f32 %v881, %v885
    %v890 = vadd.f32 %v882, %v886
    %v891 = vadd.f32 %v883, %v887
    %v892 = vtanh.pop %v888
    %v893 = vtanh.pop %v889
    %v894 = vtanh.pop %v890
    %v895 = vtanh.pop %v891
    %v896 = vmul.f32 %v857, %v892
    %v897 = vmul.f32 %v863, %v893
    %v898 = vmul.f32 %v869, %v894
    %v899 = vmul.f32 %v875, %v895
    %s900 = scalar_lea.vmem [#allocation2], 128
    %v901 = vld [vmem:[%s900] sm:$0xff]
    %v902 = vld [vmem:[%s900 + $0x8] sm:$0xff]
    %v903 = vld [vmem:[%s900 + $0x10] sm:$0xff]
    %v904 = vld [vmem:[%s900 + $0x18] sm:$0xff]
    %v905 = vld [vmem:[%s900 + $0x20] sm:$0xff]
    %v906 = vld [vmem:[%s900 + $0x28] sm:$0xff]
    %v907 = vld [vmem:[%s900 + $0x30] sm:$0xff]
    %v908 = vld [vmem:[%s900 + $0x38] sm:$0xff]
    %v909 = vld [vmem:[%s900 + $0x40] sm:$0xff]
    %v910 = vld [vmem:[%s900 + $0x48] sm:$0xff]
    %v911 = vld [vmem:[%s900 + $0x50] sm:$0xff]
    %v912 = vld [vmem:[%s900 + $0x58] sm:$0xff]
    %v913 = vld [vmem:[%s900 + $0x60] sm:$0xff]
    %v914 = vld [vmem:[%s900 + $0x68] sm:$0xff]
    %v915 = vld [vmem:[%s900 + $0x70] sm:$0xff]
    %v916 = vld [vmem:[%s900 + $0x78] sm:$0xff]
    %917 = vmatprep.subr.mxu0 %v129
    %918 = vmatpush1.msra.mxu0 %v128
    %919 = vmatprep.subr.mxu0 %v133
    %920 = vmatpush1.msra.mxu0 %v132
    %921 = vmatprep.subr.mxu0 %v137
    %922 = vmatpush1.msra.mxu0 %v136
    %923 = vmatprep.subr.mxu0 %v141
    %924 = vmatpush1.msra.mxu0 %v140
    %925 = vmatprep.subr.mxu0 %v145
    %926 = vmatpush1.msra.mxu0 %v144
    %927 = vmatprep.subr.mxu0 %v149
    %928 = vmatpush1.msra.mxu0 %v148
    %929 = vmatprep.subr.mxu0 %v153
    %930 = vmatpush1.msra.mxu0 %v152
    %931 = vmatprep.subr.mxu0 %v157
    %932 = vmatpush1.msra.mxu0 %v156
    %933 = vmatprep.subr.mxu0 %v161
    %934 = vmatpush1.msra.mxu0 %v160
    %935 = vmatprep.subr.mxu0 %v165
    %936 = vmatpush1.msra.mxu0 %v164
    %937 = vmatprep.subr.mxu0 %v169
    %938 = vmatpush1.msra.mxu0 %v168
    %939 = vmatprep.subr.mxu0 %v173
    %940 = vmatpush1.msra.mxu0 %v172
    %941 = vmatprep.subr.mxu0 %v177
    %942 = vmatpush1.msra.mxu0 %v176
    %943 = vmatprep.subr.mxu0 %v181
    %944 = vmatpush1.msra.mxu0 %v180
    %945 = vmatprep.subr.mxu0 %v185
    %946 = vmatpush1.msra.mxu0 %v184
    %947 = vmatprep.subr.mxu0 %v189
    %948 = vmatpush1.msra.mxu0 %v188
    %949 = vmatprep.subr.mxu0 0.0
    %950 = vmatpush1.msra.mxu0 0.0
    %951 = vmatprep.subr.mxu0 0.0
    %952 = vmatpush1.msra.mxu0 0.0
    %953 = vmatprep.subr.mxu0 0.0
    %954 = vmatpush1.msra.mxu0 0.0
    %955 = vmatprep.subr.mxu0 0.0
    %956 = vmatpush1.msra.mxu0 0.0
    %957 = vmatprep.subr.mxu0 0.0
    %958 = vmatpush1.msra.mxu0 0.0
    %959 = vmatprep.subr.mxu0 0.0
    %960 = vmatpush1.msra.mxu0 0.0
    %961 = vmatprep.subr.mxu0 0.0
    %962 = vmatpush1.msra.mxu0 0.0
    %963 = vmatprep.subr.mxu0 0.0
    %964 = vmatpush1.msra.mxu0 0.0
    %965 = vmatprep.subr.mxu0 0.0
    %966 = vmatpush1.msra.mxu0 0.0
    %967 = vmatprep.subr.mxu0 0.0
    %968 = vmatpush1.msra.mxu0 0.0
    %969 = vmatprep.subr.mxu0 0.0
    %970 = vmatpush1.msra.mxu0 0.0
    %971 = vmatprep.subr.mxu0 0.0
    %972 = vmatpush1.msra.mxu0 0.0
    %973 = vmatprep.subr.mxu0 0.0
    %974 = vmatpush1.msra.mxu0 0.0
    %975 = vmatprep.subr.mxu0 0.0
    %976 = vmatpush1.msra.mxu0 0.0
    %977 = vmatprep.subr.mxu0 0.0
    %978 = vmatpush1.msra.mxu0 0.0
    %979 = vmatprep.subr.mxu0 0.0
    %980 = vmatpush1.msra.mxu0 0.0
    %981 = vmatprep.mubr.f32.mxu0 0.0
    %982 = vmatmul.mubr.f32.gmra.mrb[0].mxu0 %v478
    %v983 = vpop.f32.mrb[0].mxu0
    %v984 = vadd.f32 0.0, %v983
    %v985 = vpop.f32.mrb[0].mxu0
    %v986 = vadd.f32 0.0, %v985
    %987 = vmatprep.mubr.f32.mxu0 0.0
    %988 = vmatmul.mubr.f32.gmra.mrb[0].mxu0 %v479
    %v989 = vpop.f32.mrb[0].mxu0
    %v990 = vadd.f32 0.0, %v989
    %v991 = vpop.f32.mrb[0].mxu0
    %v992 = vadd.f32 0.0, %v991
    %993 = vmatprep.mubr.f32.mxu0 0.0
    %994 = vmatmul.mubr.f32.gmra.mrb[0].mxu0 %v480
    %v995 = vpop.f32.mrb[0].mxu0
    %v996 = vadd.f32 0.0, %v995
    %v997 = vpop.f32.mrb[0].mxu0
    %v998 = vadd.f32 0.0, %v997
    %999 = vmatprep.mubr.f32.mxu0 0.0
    %1000 = vmatmul.mubr.f32.gmra.mrb[0].mxu0 %v481
    %v1001 = vpop.f32.mrb[0].mxu0
    %v1002 = vadd.f32 0.0, %v1001
    %v1003 = vpop.f32.mrb[0].mxu0
    %v1004 = vadd.f32 0.0, %v1003
    %1005 = vdwg.mxu0
    %1006 = vmatprep.subr.mxu0 %v131
    %1007 = vmatpush1.msra.mxu0 %v130
    %1008 = vmatprep.subr.mxu0 %v135
    %1009 = vmatpush1.msra.mxu0 %v134
    %1010 = vmatprep.subr.mxu0 %v139
    %1011 = vmatpush1.msra.mxu0 %v138
    %1012 = vmatprep.subr.mxu0 %v143
    %1013 = vmatpush1.msra.mxu0 %v142
    %1014 = vmatprep.subr.mxu0 %v147
    %1015 = vmatpush1.msra.mxu0 %v146
    %1016 = vmatprep.subr.mxu0 %v151
    %1017 = vmatpush1.msra.mxu0 %v150
    %1018 = vmatprep.subr.mxu0 %v155
    %1019 = vmatpush1.msra.mxu0 %v154
    %1020 = vmatprep.subr.mxu0 %v159
    %1021 = vmatpush1.msra.mxu0 %v158
    %1022 = vmatprep.subr.mxu0 %v163
    %1023 = vmatpush1.msra.mxu0 %v162
    %1024 = vmatprep.subr.mxu0 %v167
    %1025 = vmatpush1.msra.mxu0 %v166
    %1026 = vmatprep.subr.mxu0 %v171
    %1027 = vmatpush1.msra.mxu0 %v170
    %1028 = vmatprep.subr.mxu0 %v175
    %1029 = vmatpush1.msra.mxu0 %v174
    %1030 = vmatprep.subr.mxu0 %v179
    %1031 = vmatpush1.msra.mxu0 %v178
    %1032 = vmatprep.subr.mxu0 %v183
    %1033 = vmatpush1.msra.mxu0 %v182
    %1034 = vmatprep.subr.mxu0 %v187
    %1035 = vmatpush1.msra.mxu0 %v186
    %1036 = vmatprep.subr.mxu0 %v191
    %1037 = vmatpush1.msra.mxu0 %v190
    %1038 = vmatprep.subr.mxu0 0.0
    %1039 = vmatpush1.msra.mxu0 0.0
    %1040 = vmatprep.subr.mxu0 0.0
    %1041 = vmatpush1.msra.mxu0 0.0
    %1042 = vmatprep.subr.mxu0 0.0
    %1043 = vmatpush1.msra.mxu0 0.0
    %1044 = vmatprep.subr.mxu0 0.0
    %1045 = vmatpush1.msra.mxu0 0.0
    %1046 = vmatprep.subr.mxu0 0.0
    %1047 = vmatpush1.msra.mxu0 0.0
    %1048 = vmatprep.subr.mxu0 0.0
    %1049 = vmatpush1.msra.mxu0 0.0
    %1050 = vmatprep.subr.mxu0 0.0
    %1051 = vmatpush1.msra.mxu0 0.0
    %1052 = vmatprep.subr.mxu0 0.0
    %1053 = vmatpush1.msra.mxu0 0.0
    %1054 = vmatprep.subr.mxu0 0.0
    %1055 = vmatpush1.msra.mxu0 0.0
    %1056 = vmatprep.subr.mxu0 0.0
    %1057 = vmatpush1.msra.mxu0 0.0
    %1058 = vmatprep.subr.mxu0 0.0
    %1059 = vmatpush1.msra.mxu0 0.0
    %1060 = vmatprep.subr.mxu0 0.0
    %1061 = vmatpush1.msra.mxu0 0.0
    %1062 = vmatprep.subr.mxu0 0.0
    %1063 = vmatpush1.msra.mxu0 0.0
    %1064 = vmatprep.subr.mxu0 0.0
    %1065 = vmatpush1.msra.mxu0 0.0
    %1066 = vmatprep.subr.mxu0 0.0
    %1067 = vmatpush1.msra.mxu0 0.0
    %1068 = vmatprep.subr.mxu0 0.0
    %1069 = vmatpush1.msra.mxu0 0.0
    %1070 = vmatprep.mubr.f32.mxu0 0.0
    %1071 = vmatmul.mubr.f32.gmra.mrb[0].mxu0 %v478
    %v1072 = vpop.f32.mrb[0].mxu0
    %v1073 = vadd.f32 0.0, %v1072
    %v1074 = vpop.f32.mrb[0].mxu0
    %v1075 = vadd.f32 0.0, %v1074
    %1076 = vmatprep.mubr.f32.mxu0 0.0
    %1077 = vmatmul.mubr.f32.gmra.mrb[0].mxu0 %v479
    %v1078 = vpop.f32.mrb[0].mxu0
    %v1079 = vadd.f32 0.0, %v1078
    %v1080 = vpop.f32.mrb[0].mxu0
    %v1081 = vadd.f32 0.0, %v1080
    %1082 = vmatprep.mubr.f32.mxu0 0.0
    %1083 = vmatmul.mubr.f32.gmra.mrb[0].mxu0 %v480
    %v1084 = vpop.f32.mrb[0].mxu0
    %v1085 = vadd.f32 0.0, %v1084
    %v1086 = vpop.f32.mrb[0].mxu0
    %v1087 = vadd.f32 0.0, %v1086
    %1088 = vmatprep.mubr.f32.mxu0 0.0
    %1089 = vmatmul.mubr.f32.gmra.mrb[0].mxu0 %v481
    %v1090 = vpop.f32.mrb[0].mxu0
    %v1091 = vadd.f32 0.0, %v1090
    %v1092 = vpop.f32.mrb[0].mxu0
    %v1093 = vadd.f32 0.0, %v1092
    %1094 = vdwg.mxu0
    %v1095 = vadd.f32 %v901, %v984
    %v1096 = vadd.f32 %v902, %v986
    %v1097 = vadd.f32 %v903, %v1073
    %v1098 = vadd.f32 %v904, %v1075
    %v1099 = vadd.f32 %v905, %v990
    %v1100 = vadd.f32 %v906, %v992
    %v1101 = vadd.f32 %v907, %v1079
    %v1102 = vadd.f32 %v908, %v1081
    %v1103 = vadd.f32 %v909, %v996
    %v1104 = vadd.f32 %v910, %v998
    %v1105 = vadd.f32 %v911, %v1085
    %v1106 = vadd.f32 %v912, %v1087
    %v1107 = vadd.f32 %v913, %v1002
    %v1108 = vadd.f32 %v914, %v1004
    %v1109 = vadd.f32 %v915, %v1091
    %v1110 = vadd.f32 %v916, %v1093
    %v1111 = vxor.u32 %v1095, 2147483648
    %v1112 = vxor.u32 %v1096, 2147483648
    %v1113 = vxor.u32 %v1097, 2147483648
    %v1114 = vxor.u32 %v1099, 2147483648
    %v1115 = vxor.u32 %v1100, 2147483648
    %v1116 = vxor.u32 %v1101, 2147483648
    %v1117 = vxor.u32 %v1103, 2147483648
    %v1118 = vxor.u32 %v1104, 2147483648
    %v1119 = vxor.u32 %v1105, 2147483648
    %v1120 = vxor.u32 %v1107, 2147483648
    %v1121 = vxor.u32 %v1108, 2147483648
    %v1122 = vxor.u32 %v1109, 2147483648
    %v1123 = vmul.f32 %v1111, 1.442695
    %v1124 = vpow.pop %v1123
    %v1125 = vmul.f32 %v1112, 1.442695
    %v1126 = vpow.pop %v1125
    %v1127 = vmul.f32 %v1113, 1.442695
    %v1128 = vpow.pop %v1127
    %v1129 = vmul.f32 %v1114, 1.442695
    %v1130 = vpow.pop %v1129
    %v1131 = vmul.f32 %v1115, 1.442695
    %v1132 = vpow.pop %v1131
    %v1133 = vmul.f32 %v1116, 1.442695
    %v1134 = vpow.pop %v1133
    %v1135 = vmul.f32 %v1117, 1.442695
    %v1136 = vpow.pop %v1135
    %v1137 = vmul.f32 %v1118, 1.442695
    %v1138 = vpow.pop %v1137
    %v1139 = vmul.f32 %v1119, 1.442695
    %v1140 = vpow.pop %v1139
    %v1141 = vmul.f32 %v1120, 1.442695
    %v1142 = vpow.pop %v1141
    %v1143 = vmul.f32 %v1121, 1.442695
    %v1144 = vpow.pop %v1143
    %v1145 = vmul.f32 %v1122, 1.442695
    %v1146 = vpow.pop %v1145
    %v1147 = vadd.f32 %v1124, 1.0
    %v1148 = vadd.f32 %v1126, 1.0
    %v1149 = vadd.f32 %v1128, 1.0
    %v1150 = vadd.f32 %v1130, 1.0
    %v1151 = vadd.f32 %v1132, 1.0
    %v1152 = vadd.f32 %v1134, 1.0
    %v1153 = vadd.f32 %v1136, 1.0
    %v1154 = vadd.f32 %v1138, 1.0
    %v1155 = vadd.f32 %v1140, 1.0
    %v1156 = vadd.f32 %v1142, 1.0
    %v1157 = vadd.f32 %v1144, 1.0
    %v1158 = vadd.f32 %v1146, 1.0
    %v1159 = vrcp.pop %v1147
    %v1160 = vmul.f32 1.0, %v1159
    %v1161 = vrcp.pop %v1148
    %v1162 = vmul.f32 1.0, %v1161
    %v1163 = vrcp.pop %v1149
    %v1164 = vmul.f32 1.0, %v1163
    %v1165 = vrcp.pop %v1150
    %v1166 = vmul.f32 1.0, %v1165
    %v1167 = vrcp.pop %v1151
    %v1168 = vmul.f32 1.0, %v1167
    %v1169 = vrcp.pop %v1152
    %v1170 = vmul.f32 1.0, %v1169
    %v1171 = vrcp.pop %v1153
    %v1172 = vmul.f32 1.0, %v1171
    %v1173 = vrcp.pop %v1154
    %v1174 = vmul.f32 1.0, %v1173
    %v1175 = vrcp.pop %v1155
    %v1176 = vmul.f32 1.0, %v1175
    %v1177 = vrcp.pop %v1156
    %v1178 = vmul.f32 1.0, %v1177
    %v1179 = vrcp.pop %v1157
    %v1180 = vmul.f32 1.0, %v1179
    %v1181 = vrcp.pop %v1158
    %v1182 = vmul.f32 1.0, %v1181
    %v1183 = vtanh.pop %v1098
    %v1184 = vtanh.pop %v1102
    %v1185 = vtanh.pop %v1106
    %v1186 = vtanh.pop %v1110
    %v1187 = vmul.f32 %v1162, %v470
    %v1188 = vmul.f32 %v1168, %v471
    %v1189 = vmul.f32 %v1174, %v472
    %v1190 = vmul.f32 %v1180, %v473
    %v1191 = vmul.f32 %v1160, %v1183
    %v1192 = vmul.f32 %v1166, %v1184
    %v1193 = vmul.f32 %v1172, %v1185
    %v1194 = vmul.f32 %v1178, %v1186
    %v1195 = vadd.f32 %v1187, %v1191
    %v1196 = vadd.f32 %v1188, %v1192
    %v1197 = vadd.f32 %v1189, %v1193
    %v1198 = vadd.f32 %v1190, %v1194
    %v1199 = vtanh.pop %v1195
    %v1200 = vtanh.pop %v1196
    %v1201 = vtanh.pop %v1197
    %v1202 = vtanh.pop %v1198
    %v1203 = vmul.f32 %v1164, %v1199
    %v1204 = vmul.f32 %v1170, %v1200
    %v1205 = vmul.f32 %v1176, %v1201
    %v1206 = vmul.f32 %v1182, %v1202
    %1207 = vmatprep.subr.mxu0 %v483
    %1208 = vmatpush1.msra.mxu0 %v482
    %1209 = vmatprep.subr.mxu0 %v487
    %1210 = vmatpush1.msra.mxu0 %v486
    %1211 = vmatprep.subr.mxu0 %v491
    %1212 = vmatpush1.msra.mxu0 %v490
    %1213 = vmatprep.subr.mxu0 %v495
    %1214 = vmatpush1.msra.mxu0 %v494
    %1215 = vmatprep.subr.mxu0 %v499
    %1216 = vmatpush1.msra.mxu0 %v498
    %1217 = vmatprep.subr.mxu0 %v503
    %1218 = vmatpush1.msra.mxu0 %v502
    %1219 = vmatprep.subr.mxu0 %v507
    %1220 = vmatpush1.msra.mxu0 %v506
    %1221 = vmatprep.subr.mxu0 %v511
    %1222 = vmatpush1.msra.mxu0 %v510
    %1223 = vmatprep.subr.mxu0 %v515
    %1224 = vmatpush1.msra.mxu0 %v514
    %1225 = vmatprep.subr.mxu0 %v519
    %1226 = vmatpush1.msra.mxu0 %v518
    %1227 = vmatprep.subr.mxu0 %v523
    %1228 = vmatpush1.msra.mxu0 %v522
    %1229 = vmatprep.subr.mxu0 %v527
    %1230 = vmatpush1.msra.mxu0 %v526
    %1231 = vmatprep.subr.mxu0 %v531
    %1232 = vmatpush1.msra.mxu0 %v530
    %1233 = vmatprep.subr.mxu0 %v535
    %1234 = vmatpush1.msra.mxu0 %v534
    %1235 = vmatprep.subr.mxu0 %v539
    %1236 = vmatpush1.msra.mxu0 %v538
    %1237 = vmatprep.subr.mxu0 %v543
    %1238 = vmatpush1.msra.mxu0 %v542
    %1239 = vmatprep.subr.mxu0 %v547
    %1240 = vmatpush1.msra.mxu0 %v546
    %1241 = vmatprep.subr.mxu0 %v551
    %1242 = vmatpush1.msra.mxu0 %v550
    %1243 = vmatprep.subr.mxu0 %v555
    %1244 = vmatpush1.msra.mxu0 %v554
    %1245 = vmatprep.subr.mxu0 %v559
    %1246 = vmatpush1.msra.mxu0 %v558
    %1247 = vmatprep.subr.mxu0 %v563
    %1248 = vmatpush1.msra.mxu0 %v562
    %1249 = vmatprep.subr.mxu0 %v567
    %1250 = vmatpush1.msra.mxu0 %v566
    %1251 = vmatprep.subr.mxu0 %v571
    %1252 = vmatpush1.msra.mxu0 %v570
    %1253 = vmatprep.subr.mxu0 %v575
    %1254 = vmatpush1.msra.mxu0 %v574
    %1255 = vmatprep.subr.mxu0 %v579
    %1256 = vmatpush1.msra.mxu0 %v578
    %1257 = vmatprep.subr.mxu0 %v583
    %1258 = vmatpush1.msra.mxu0 %v582
    %1259 = vmatprep.subr.mxu0 %v587
    %1260 = vmatpush1.msra.mxu0 %v586
    %1261 = vmatprep.subr.mxu0 %v591
    %1262 = vmatpush1.msra.mxu0 %v590
    %1263 = vmatprep.subr.mxu0 %v595
    %1264 = vmatpush1.msra.mxu0 %v594
    %1265 = vmatprep.subr.mxu0 %v599
    %1266 = vmatpush1.msra.mxu0 %v598
    %1267 = vmatprep.subr.mxu0 %v603
    %1268 = vmatpush1.msra.mxu0 %v602
    %1269 = vmatprep.subr.mxu0 %v607
    %1270 = vmatpush1.msra.mxu0 %v606
    %1271 = vmatprep.mubr.f32.mxu0 %v896
    %1272 = vmatmul.mubr.f32.gmra.mrb[0].mxu0 %v1203
    %v1273 = vpop.f32.mrb[0].mxu0
    %v1274 = vadd.f32 %v610, %v1273
    %v1275 = vpop.f32.mrb[0].mxu0
    %v1276 = vadd.f32 %v611, %v1275
    %1277 = vmatprep.mubr.f32.mxu0 %v897
    %1278 = vmatmul.mubr.f32.gmra.mrb[0].mxu0 %v1204
    %v1279 = vpop.f32.mrb[0].mxu0
    %v1280 = vadd.f32 %v614, %v1279
    %v1281 = vpop.f32.mrb[0].mxu0
    %v1282 = vadd.f32 %v615, %v1281
    %1283 = vmatprep.mubr.f32.mxu0 %v898
    %1284 = vmatmul.mubr.f32.gmra.mrb[0].mxu0 %v1205
    %v1285 = vpop.f32.mrb[0].mxu0
    %v1286 = vadd.f32 %v618, %v1285
    %v1287 = vpop.f32.mrb[0].mxu0
    %v1288 = vadd.f32 %v619, %v1287
    %1289 = vmatprep.mubr.f32.mxu0 %v899
    %1290 = vmatmul.mubr.f32.gmra.mrb[0].mxu0 %v1206
    %v1291 = vpop.f32.mrb[0].mxu0
    %v1292 = vadd.f32 %v622, %v1291
    %v1293 = vpop.f32.mrb[0].mxu0
    %v1294 = vadd.f32 %v623, %v1293
    %1295 = vdwg.mxu0
    %1296 = vmatprep.subr.mxu0 %v485
    %1297 = vmatpush1.msra.mxu0 %v484
    %1298 = vmatprep.subr.mxu0 %v489
    %1299 = vmatpush1.msra.mxu0 %v488
    %1300 = vmatprep.subr.mxu0 %v493
    %1301 = vmatpush1.msra.mxu0 %v492
    %1302 = vmatprep.subr.mxu0 %v497
    %1303 = vmatpush1.msra.mxu0 %v496
    %1304 = vmatprep.subr.mxu0 %v501
    %1305 = vmatpush1.msra.mxu0 %v500
    %1306 = vmatprep.subr.mxu0 %v505
    %1307 = vmatpush1.msra.mxu0 %v504
    %1308 = vmatprep.subr.mxu0 %v509
    %1309 = vmatpush1.msra.mxu0 %v508
    %1310 = vmatprep.subr.mxu0 %v513
    %1311 = vmatpush1.msra.mxu0 %v512
    %1312 = vmatprep.subr.mxu0 %v517
    %1313 = vmatpush1.msra.mxu0 %v516
    %1314 = vmatprep.subr.mxu0 %v521
    %1315 = vmatpush1.msra.mxu0 %v520
    %1316 = vmatprep.subr.mxu0 %v525
    %1317 = vmatpush1.msra.mxu0 %v524
    %1318 = vmatprep.subr.mxu0 %v529
    %1319 = vmatpush1.msra.mxu0 %v528
    %1320 = vmatprep.subr.mxu0 %v533
    %1321 = vmatpush1.msra.mxu0 %v532
    %1322 = vmatprep.subr.mxu0 %v537
    %1323 = vmatpush1.msra.mxu0 %v536
    %1324 = vmatprep.subr.mxu0 %v541
    %1325 = vmatpush1.msra.mxu0 %v540
    %1326 = vmatprep.subr.mxu0 %v545
    %1327 = vmatpush1.msra.mxu0 %v544
    %1328 = vmatprep.subr.mxu0 %v549
    %1329 = vmatpush1.msra.mxu0 %v548
    %1330 = vmatprep.subr.mxu0 %v553
    %1331 = vmatpush1.msra.mxu0 %v552
    %1332 = vmatprep.subr.mxu0 %v557
    %1333 = vmatpush1.msra.mxu0 %v556
    %1334 = vmatprep.subr.mxu0 %v561
    %1335 = vmatpush1.msra.mxu0 %v560
    %1336 = vmatprep.subr.mxu0 %v565
    %1337 = vmatpush1.msra.mxu0 %v564
    %1338 = vmatprep.subr.mxu0 %v569
    %1339 = vmatpush1.msra.mxu0 %v568
    %1340 = vmatprep.subr.mxu0 %v573
    %1341 = vmatpush1.msra.mxu0 %v572
    %1342 = vmatprep.subr.mxu0 %v577
    %1343 = vmatpush1.msra.mxu0 %v576
    %1344 = vmatprep.subr.mxu0 %v581
    %1345 = vmatpush1.msra.mxu0 %v580
    %1346 = vmatprep.subr.mxu0 %v585
    %1347 = vmatpush1.msra.mxu0 %v584
    %1348 = vmatprep.subr.mxu0 %v589
    %1349 = vmatpush1.msra.mxu0 %v588
    %1350 = vmatprep.subr.mxu0 %v593
    %1351 = vmatpush1.msra.mxu0 %v592
    %1352 = vmatprep.subr.mxu0 %v597
    %1353 = vmatpush1.msra.mxu0 %v596
    %1354 = vmatprep.subr.mxu0 %v601
    %1355 = vmatpush1.msra.mxu0 %v600
    %1356 = vmatprep.subr.mxu0 %v605
    %1357 = vmatpush1.msra.mxu0 %v604
    %1358 = vmatprep.subr.mxu0 %v609
    %1359 = vmatpush1.msra.mxu0 %v608
    %1360 = vmatprep.mubr.f32.mxu0 %v896
    %1361 = vmatmul.mubr.f32.gmra.mrb[0].mxu0 %v1203
    %v1362 = vpop.f32.mrb[0].mxu0
    %v1363 = vadd.f32 %v612, %v1362
    %v1364 = vpop.f32.mrb[0].mxu0
    %v1365 = vadd.f32 %v613, %v1364
    %1366 = vmatprep.mubr.f32.mxu0 %v897
    %1367 = vmatmul.mubr.f32.gmra.mrb[0].mxu0 %v1204
    %v1368 = vpop.f32.mrb[0].mxu0
    %v1369 = vadd.f32 %v616, %v1368
    %v1370 = vpop.f32.mrb[0].mxu0
    %v1371 = vadd.f32 %v617, %v1370
    %1372 = vmatprep.mubr.f32.mxu0 %v898
    %1373 = vmatmul.mubr.f32.gmra.mrb[0].mxu0 %v1205
    %v1374 = vpop.f32.mrb[0].mxu0
    %v1375 = vadd.f32 %v620, %v1374
    %v1376 = vpop.f32.mrb[0].mxu0
    %v1377 = vadd.f32 %v621, %v1376
    %1378 = vmatprep.mubr.f32.mxu0 %v899
    %1379 = vmatmul.mubr.f32.gmra.mrb[0].mxu0 %v1206
    %v1380 = vpop.f32.mrb[0].mxu0
    %v1381 = vadd.f32 %v624, %v1380
    %v1382 = vpop.f32.mrb[0].mxu0
    %v1383 = vadd.f32 %v625, %v1382
    %1384 = vdwg.mxu0
    %v1385 = vxor.u32 %v1274, 2147483648
    %v1386 = vxor.u32 %v1276, 2147483648
    %v1387 = vxor.u32 %v1363, 2147483648
    %v1388 = vxor.u32 %v1280, 2147483648
    %v1389 = vxor.u32 %v1282, 2147483648
    %v1390 = vxor.u32 %v1369, 2147483648
    %v1391 = vxor.u32 %v1286, 2147483648
    %v1392 = vxor.u32 %v1288, 2147483648
    %v1393 = vxor.u32 %v1375, 2147483648
    %v1394 = vxor.u32 %v1292, 2147483648
    %v1395 = vxor.u32 %v1294, 2147483648
    %v1396 = vxor.u32 %v1381, 2147483648
    %v1397 = vmul.f32 %v1385, 1.442695
    %v1398 = vpow.pop %v1397
    %v1399 = vmul.f32 %v1386, 1.442695
    %v1400 = vpow.pop %v1399
    %v1401 = vmul.f32 %v1387, 1.442695
    %v1402 = vpow.pop %v1401
    %v1403 = vmul.f32 %v1388, 1.442695
    %v1404 = vpow.pop %v1403
    %v1405 = vmul.f32 %v1389, 1.442695
    %v1406 = vpow.pop %v1405
    %v1407 = vmul.f32 %v1390, 1.442695
    %v1408 = vpow.pop %v1407
    %v1409 = vmul.f32 %v1391, 1.442695
    %v1410 = vpow.pop %v1409
    %v1411 = vmul.f32 %v1392, 1.442695
    %v1412 = vpow.pop %v1411
    %v1413 = vmul.f32 %v1393, 1.442695
    %v1414 = vpow.pop %v1413
    %v1415 = vmul.f32 %v1394, 1.442695
    %v1416 = vpow.pop %v1415
    %v1417 = vmul.f32 %v1395, 1.442695
    %v1418 = vpow.pop %v1417
    %v1419 = vmul.f32 %v1396, 1.442695
    %v1420 = vpow.pop %v1419
    %v1421 = vadd.f32 %v1398, 1.0
    %v1422 = vadd.f32 %v1400, 1.0
    %v1423 = vadd.f32 %v1402, 1.0
    %v1424 = vadd.f32 %v1404, 1.0
    %v1425 = vadd.f32 %v1406, 1.0
    %v1426 = vadd.f32 %v1408, 1.0
    %v1427 = vadd.f32 %v1410, 1.0
    %v1428 = vadd.f32 %v1412, 1.0
    %v1429 = vadd.f32 %v1414, 1.0
    %v1430 = vadd.f32 %v1416, 1.0
    %v1431 = vadd.f32 %v1418, 1.0
    %v1432 = vadd.f32 %v1420, 1.0
    %v1433 = vrcp.pop %v1421
    %v1434 = vmul.f32 1.0, %v1433
    %v1435 = vrcp.pop %v1422
    %v1436 = vmul.f32 1.0, %v1435
    %v1437 = vrcp.pop %v1423
    %v1438 = vmul.f32 1.0, %v1437
    %v1439 = vrcp.pop %v1424
    %v1440 = vmul.f32 1.0, %v1439
    %v1441 = vrcp.pop %v1425
    %v1442 = vmul.f32 1.0, %v1441
    %v1443 = vrcp.pop %v1426
    %v1444 = vmul.f32 1.0, %v1443
    %v1445 = vrcp.pop %v1427
    %v1446 = vmul.f32 1.0, %v1445
    %v1447 = vrcp.pop %v1428
    %v1448 = vmul.f32 1.0, %v1447
    %v1449 = vrcp.pop %v1429
    %v1450 = vmul.f32 1.0, %v1449
    %v1451 = vrcp.pop %v1430
    %v1452 = vmul.f32 1.0, %v1451
    %v1453 = vrcp.pop %v1431
    %v1454 = vmul.f32 1.0, %v1453
    %v1455 = vrcp.pop %v1432
    %v1456 = vmul.f32 1.0, %v1455
    %v1457 = vtanh.pop %v1365
    %v1458 = vtanh.pop %v1371
    %v1459 = vtanh.pop %v1377
    %v1460 = vtanh.pop %v1383
    %v1461 = vmul.f32 %v1436, %v888
    %v1462 = vmul.f32 %v1442, %v889
    %v1463 = vmul.f32 %v1448, %v890
    %v1464 = vmul.f32 %v1454, %v891
    %v1465 = vmul.f32 %v1434, %v1457
    %v1466 = vmul.f32 %v1440, %v1458
    %v1467 = vmul.f32 %v1446, %v1459
    %v1468 = vmul.f32 %v1452, %v1460
    %v1469 = vadd.f32 %v1461, %v1465
    %v1470 = vadd.f32 %v1462, %v1466
    %v1471 = vadd.f32 %v1463, %v1467
    %v1472 = vadd.f32 %v1464, %v1468
    %v1473 = vtanh.pop %v1469
    %v1474 = vtanh.pop %v1470
    %v1475 = vtanh.pop %v1471
    %v1476 = vtanh.pop %v1472
    %v1477 = vmul.f32 %v1438, %v1473
    %v1478 = vmul.f32 %v1444, %v1474
    %v1479 = vmul.f32 %v1450, %v1475
    %v1480 = vmul.f32 %v1456, %v1476
    %s1481 = scalar_lea.vmem [#allocation2], 256
    %v1482 = vld [vmem:[%s1481] sm:$0xff]
    %v1483 = vld [vmem:[%s1481 + $0x8] sm:$0xff]
    %v1484 = vld [vmem:[%s1481 + $0x10] sm:$0xff]
    %v1485 = vld [vmem:[%s1481 + $0x18] sm:$0xff]
    %v1486 = vld [vmem:[%s1481 + $0x20] sm:$0xff]
    %v1487 = vld [vmem:[%s1481 + $0x28] sm:$0xff]
    %v1488 = vld [vmem:[%s1481 + $0x30] sm:$0xff]
    %v1489 = vld [vmem:[%s1481 + $0x38] sm:$0xff]
    %v1490 = vld [vmem:[%s1481 + $0x40] sm:$0xff]
    %v1491 = vld [vmem:[%s1481 + $0x48] sm:$0xff]
    %v1492 = vld [vmem:[%s1481 + $0x50] sm:$0xff]
    %v1493 = vld [vmem:[%s1481 + $0x58] sm:$0xff]
    %v1494 = vld [vmem:[%s1481 + $0x60] sm:$0xff]
    %v1495 = vld [vmem:[%s1481 + $0x68] sm:$0xff]
    %v1496 = vld [vmem:[%s1481 + $0x70] sm:$0xff]
    %v1497 = vld [vmem:[%s1481 + $0x78] sm:$0xff]
    %1498 = vmatprep.subr.mxu0 %v129
    %1499 = vmatpush1.msra.mxu0 %v128
    %1500 = vmatprep.subr.mxu0 %v133
    %1501 = vmatpush1.msra.mxu0 %v132
    %1502 = vmatprep.subr.mxu0 %v137
    %1503 = vmatpush1.msra.mxu0 %v136
    %1504 = vmatprep.subr.mxu0 %v141
    %1505 = vmatpush1.msra.mxu0 %v140
    %1506 = vmatprep.subr.mxu0 %v145
    %1507 = vmatpush1.msra.mxu0 %v144
    %1508 = vmatprep.subr.mxu0 %v149
    %1509 = vmatpush1.msra.mxu0 %v148
    %1510 = vmatprep.subr.mxu0 %v153
    %1511 = vmatpush1.msra.mxu0 %v152
    %1512 = vmatprep.subr.mxu0 %v157
    %1513 = vmatpush1.msra.mxu0 %v156
    %1514 = vmatprep.subr.mxu0 %v161
    %1515 = vmatpush1.msra.mxu0 %v160
    %1516 = vmatprep.subr.mxu0 %v165
    %1517 = vmatpush1.msra.mxu0 %v164
    %1518 = vmatprep.subr.mxu0 %v169
    %1519 = vmatpush1.msra.mxu0 %v168
    %1520 = vmatprep.subr.mxu0 %v173
    %1521 = vmatpush1.msra.mxu0 %v172
    %1522 = vmatprep.subr.mxu0 %v177
    %1523 = vmatpush1.msra.mxu0 %v176
    %1524 = vmatprep.subr.mxu0 %v181
    %1525 = vmatpush1.msra.mxu0 %v180
    %1526 = vmatprep.subr.mxu0 %v185
    %1527 = vmatpush1.msra.mxu0 %v184
    %1528 = vmatprep.subr.mxu0 %v189
    %1529 = vmatpush1.msra.mxu0 %v188
    %1530 = vmatprep.subr.mxu0 0.0
    %1531 = vmatpush1.msra.mxu0 0.0
    %1532 = vmatprep.subr.mxu0 0.0
    %1533 = vmatpush1.msra.mxu0 0.0
    %1534 = vmatprep.subr.mxu0 0.0
    %1535 = vmatpush1.msra.mxu0 0.0
    %1536 = vmatprep.subr.mxu0 0.0
    %1537 = vmatpush1.msra.mxu0 0.0
    %1538 = vmatprep.subr.mxu0 0.0
    %1539 = vmatpush1.msra.mxu0 0.0
    %1540 = vmatprep.subr.mxu0 0.0
    %1541 = vmatpush1.msra.mxu0 0.0
    %1542 = vmatprep.subr.mxu0 0.0
    %1543 = vmatpush1.msra.mxu0 0.0
    %1544 = vmatprep.subr.mxu0 0.0
    %1545 = vmatpush1.msra.mxu0 0.0
    %1546 = vmatprep.subr.mxu0 0.0
    %1547 = vmatpush1.msra.mxu0 0.0
    %1548 = vmatprep.subr.mxu0 0.0
    %1549 = vmatpush1.msra.mxu0 0.0
    %1550 = vmatprep.subr.mxu0 0.0
    %1551 = vmatpush1.msra.mxu0 0.0
    %1552 = vmatprep.subr.mxu0 0.0
    %1553 = vmatpush1.msra.mxu0 0.0
    %1554 = vmatprep.subr.mxu0 0.0
    %1555 = vmatpush1.msra.mxu0 0.0
    %1556 = vmatprep.subr.mxu0 0.0
    %1557 = vmatpush1.msra.mxu0 0.0
    %1558 = vmatprep.subr.mxu0 0.0
    %1559 = vmatpush1.msra.mxu0 0.0
    %1560 = vmatprep.subr.mxu0 0.0
    %1561 = vmatpush1.msra.mxu0 0.0
    %1562 = vmatprep.mubr.f32.mxu0 0.0
    %1563 = vmatmul.mubr.f32.gmra.mrb[0].mxu0 %v1203
    %v1564 = vpop.f32.mrb[0].mxu0
    %v1565 = vadd.f32 0.0, %v1564
    %v1566 = vpop.f32.mrb[0].mxu0
    %v1567 = vadd.f32 0.0, %v1566
    %1568 = vmatprep.mubr.f32.mxu0 0.0
    %1569 = vmatmul.mubr.f32.gmra.mrb[0].mxu0 %v1204
    %v1570 = vpop.f32.mrb[0].mxu0
    %v1571 = vadd.f32 0.0, %v1570
    %v1572 = vpop.f32.mrb[0].mxu0
    %v1573 = vadd.f32 0.0, %v1572
    %1574 = vmatprep.mubr.f32.mxu0 0.0
    %1575 = vmatmul.mubr.f32.gmra.mrb[0].mxu0 %v1205
    %v1576 = vpop.f32.mrb[0].mxu0
    %v1577 = vadd.f32 0.0, %v1576
    %v1578 = vpop.f32.mrb[0].mxu0
    %v1579 = vadd.f32 0.0, %v1578
    %1580 = vmatprep.mubr.f32.mxu0 0.0
    %1581 = vmatmul.mubr.f32.gmra.mrb[0].mxu0 %v1206
    %v1582 = vpop.f32.mrb[0].mxu0
    %v1583 = vadd.f32 0.0, %v1582
    %v1584 = vpop.f32.mrb[0].mxu0
    %v1585 = vadd.f32 0.0, %v1584
    %1586 = vdwg.mxu0
    %1587 = vmatprep.subr.mxu0 %v131
    %1588 = vmatpush1.msra.mxu0 %v130
    %1589 = vmatprep.subr.mxu0 %v135
    %1590 = vmatpush1.msra.mxu0 %v134
    %1591 = vmatprep.subr.mxu0 %v139
    %1592 = vmatpush1.msra.mxu0 %v138
    %1593 = vmatprep.subr.mxu0 %v143
    %1594 = vmatpush1.msra.mxu0 %v142
    %1595 = vmatprep.subr.mxu0 %v147
    %1596 = vmatpush1.msra.mxu0 %v146
    %1597 = vmatprep.subr.mxu0 %v151
    %1598 = vmatpush1.msra.mxu0 %v150
    %1599 = vmatprep.subr.mxu0 %v155
    %1600 = vmatpush1.msra.mxu0 %v154
    %1601 = vmatprep.subr.mxu0 %v159
    %1602 = vmatpush1.msra.mxu0 %v158
    %1603 = vmatprep.subr.mxu0 %v163
    %1604 = vmatpush1.msra.mxu0 %v162
    %1605 = vmatprep.subr.mxu0 %v167
    %1606 = vmatpush1.msra.mxu0 %v166
    %1607 = vmatprep.subr.mxu0 %v171
    %1608 = vmatpush1.msra.mxu0 %v170
    %1609 = vmatprep.subr.mxu0 %v175
    %1610 = vmatpush1.msra.mxu0 %v174
    %1611 = vmatprep.subr.mxu0 %v179
    %1612 = vmatpush1.msra.mxu0 %v178
    %1613 = vmatprep.subr.mxu0 %v183
    %1614 = vmatpush1.msra.mxu0 %v182
    %1615 = vmatprep.subr.mxu0 %v187
    %1616 = vmatpush1.msra.mxu0 %v186
    %1617 = vmatprep.subr.mxu0 %v191
    %1618 = vmatpush1.msra.mxu0 %v190
    %1619 = vmatprep.subr.mxu0 0.0
    %1620 = vmatpush1.msra.mxu0 0.0
    %1621 = vmatprep.subr.mxu0 0.0
    %1622 = vmatpush1.msra.mxu0 0.0
    %1623 = vmatprep.subr.mxu0 0.0
    %1624 = vmatpush1.msra.mxu0 0.0
    %1625 = vmatprep.subr.mxu0 0.0
    %1626 = vmatpush1.msra.mxu0 0.0
    %1627 = vmatprep.subr.mxu0 0.0
    %1628 = vmatpush1.msra.mxu0 0.0
    %1629 = vmatprep.subr.mxu0 0.0
    %1630 = vmatpush1.msra.mxu0 0.0
    %1631 = vmatprep.subr.mxu0 0.0
    %1632 = vmatpush1.msra.mxu0 0.0
    %1633 = vmatprep.subr.mxu0 0.0
    %1634 = vmatpush1.msra.mxu0 0.0
    %1635 = vmatprep.subr.mxu0 0.0
    %1636 = vmatpush1.msra.mxu0 0.0
    %1637 = vmatprep.subr.mxu0 0.0
    %1638 = vmatpush1.msra.mxu0 0.0
    %1639 = vmatprep.subr.mxu0 0.0
    %1640 = vmatpush1.msra.mxu0 0.0
    %1641 = vmatprep.subr.mxu0 0.0
    %1642 = vmatpush1.msra.mxu0 0.0
    %1643 = vmatprep.subr.mxu0 0.0
    %1644 = vmatpush1.msra.mxu0 0.0
    %1645 = vmatprep.subr.mxu0 0.0
    %1646 = vmatpush1.msra.mxu0 0.0
    %1647 = vmatprep.subr.mxu0 0.0
    %1648 = vmatpush1.msra.mxu0 0.0
    %1649 = vmatprep.subr.mxu0 0.0
    %1650 = vmatpush1.msra.mxu0 0.0
    %1651 = vmatprep.mubr.f32.mxu0 0.0
    %1652 = vmatmul.mubr.f32.gmra.mrb[0].mxu0 %v1203
    %v1653 = vpop.f32.mrb[0].mxu0
    %v1654 = vadd.f32 0.0, %v1653
    %v1655 = vpop.f32.mrb[0].mxu0
    %v1656 = vadd.f32 0.0, %v1655
    %1657 = vmatprep.mubr.f32.mxu0 0.0
    %1658 = vmatmul.mubr.f32.gmra.mrb[0].mxu0 %v1204
    %v1659 = vpop.f32.mrb[0].mxu0
    %v1660 = vadd.f32 0.0, %v1659
    %v1661 = vpop.f32.mrb[0].mxu0
    %v1662 = vadd.f32 0.0, %v1661
    %1663 = vmatprep.mubr.f32.mxu0 0.0
    %1664 = vmatmul.mubr.f32.gmra.mrb[0].mxu0 %v1205
    %v1665 = vpop.f32.mrb[0].mxu0
    %v1666 = vadd.f32 0.0, %v1665
    %v1667 = vpop.f32.mrb[0].mxu0
    %v1668 = vadd.f32 0.0, %v1667
    %1669 = vmatprep.mubr.f32.mxu0 0.0
    %1670 = vmatmul.mubr.f32.gmra.mrb[0].mxu0 %v1206
    %v1671 = vpop.f32.mrb[0].mxu0
    %v1672 = vadd.f32 0.0, %v1671
    %v1673 = vpop.f32.mrb[0].mxu0
    %v1674 = vadd.f32 0.0, %v1673
    %1675 = vdwg.mxu0
    %v1676 = vadd.f32 %v1482, %v1565
    %v1677 = vadd.f32 %v1483, %v1567
    %v1678 = vadd.f32 %v1484, %v1654
    %v1679 = vadd.f32 %v1485, %v1656
    %v1680 = vadd.f32 %v1486, %v1571
    %v1681 = vadd.f32 %v1487, %v1573
    %v1682 = vadd.f32 %v1488, %v1660
    %v1683 = vadd.f32 %v1489, %v1662
    %v1684 = vadd.f32 %v1490, %v1577
    %v1685 = vadd.f32 %v1491, %v1579
    %v1686 = vadd.f32 %v1492, %v1666
    %v1687 = vadd.f32 %v1493, %v1668
    %v1688 = vadd.f32 %v1494, %v1583
    %v1689 = vadd.f32 %v1495, %v1585
    %v1690 = vadd.f32 %v1496, %v1672
    %v1691 = vadd.f32 %v1497, %v1674
    %v1692 = vxor.u32 %v1676, 2147483648
    %v1693 = vxor.u32 %v1677, 2147483648
    %v1694 = vxor.u32 %v1678, 2147483648
    %v1695 = vxor.u32 %v1680, 2147483648
    %v1696 = vxor.u32 %v1681, 2147483648
    %v1697 = vxor.u32 %v1682, 2147483648
    %v1698 = vxor.u32 %v1684, 2147483648
    %v1699 = vxor.u32 %v1685, 2147483648
    %v1700 = vxor.u32 %v1686, 2147483648
    %v1701 = vxor.u32 %v1688, 2147483648
    %v1702 = vxor.u32 %v1689, 2147483648
    %v1703 = vxor.u32 %v1690, 2147483648
    %v1704 = vmul.f32 %v1692, 1.442695
    %v1705 = vpow.pop %v1704
    %v1706 = vmul.f32 %v1693, 1.442695
    %v1707 = vpow.pop %v1706
    %v1708 = vmul.f32 %v1694, 1.442695
    %v1709 = vpow.pop %v1708
    %v1710 = vmul.f32 %v1695, 1.442695
    %v1711 = vpow.pop %v1710
    %v1712 = vmul.f32 %v1696, 1.442695
    %v1713 = vpow.pop %v1712
    %v1714 = vmul.f32 %v1697, 1.442695
    %v1715 = vpow.pop %v1714
    %v1716 = vmul.f32 %v1698, 1.442695
    %v1717 = vpow.pop %v1716
    %v1718 = vmul.f32 %v1699, 1.442695
    %v1719 = vpow.pop %v1718
    %v1720 = vmul.f32 %v1700, 1.442695
    %v1721 = vpow.pop %v1720
    %v1722 = vmul.f32 %v1701, 1.442695
    %v1723 = vpow.pop %v1722
    %v1724 = vmul.f32 %v1702, 1.442695
    %v1725 = vpow.pop %v1724
    %v1726 = vmul.f32 %v1703, 1.442695
    %v1727 = vpow.pop %v1726
    %v1728 = vadd.f32 %v1705, 1.0
    %v1729 = vadd.f32 %v1707, 1.0
    %v1730 = vadd.f32 %v1709, 1.0
    %v1731 = vadd.f32 %v1711, 1.0
    %v1732 = vadd.f32 %v1713, 1.0
    %v1733 = vadd.f32 %v1715, 1.0
    %v1734 = vadd.f32 %v1717, 1.0
    %v1735 = vadd.f32 %v1719, 1.0
    %v1736 = vadd.f32 %v1721, 1.0
    %v1737 = vadd.f32 %v1723, 1.0
    %v1738 = vadd.f32 %v1725, 1.0
    %v1739 = vadd.f32 %v1727, 1.0
    %v1740 = vrcp.pop %v1728
    %v1741 = vmul.f32 1.0, %v1740
    %v1742 = vrcp.pop %v1729
    %v1743 = vmul.f32 1.0, %v1742
    %v1744 = vrcp.pop %v1730
    %v1745 = vmul.f32 1.0, %v1744
    %v1746 = vrcp.pop %v1731
    %v1747 = vmul.f32 1.0, %v1746
    %v1748 = vrcp.pop %v1732
    %v1749 = vmul.f32 1.0, %v1748
    %v1750 = vrcp.pop %v1733
    %v1751 = vmul.f32 1.0, %v1750
    %v1752 = vrcp.pop %v1734
    %v1753 = vmul.f32 1.0, %v1752
    %v1754 = vrcp.pop %v1735
    %v1755 = vmul.f32 1.0, %v1754
    %v1756 = vrcp.pop %v1736
    %v1757 = vmul.f32 1.0, %v1756
    %v1758 = vrcp.pop %v1737
    %v1759 = vmul.f32 1.0, %v1758
    %v1760 = vrcp.pop %v1738
    %v1761 = vmul.f32 1.0, %v1760
    %v1762 = vrcp.pop %v1739
    %v1763 = vmul.f32 1.0, %v1762
    %v1764 = vtanh.pop %v1679
    %v1765 = vtanh.pop %v1683
    %v1766 = vtanh.pop %v1687
    %v1767 = vtanh.pop %v1691
    %v1768 = vmul.f32 %v1743, %v1195
    %v1769 = vmul.f32 %v1749, %v1196
    %v1770 = vmul.f32 %v1755, %v1197
    %v1771 = vmul.f32 %v1761, %v1198
    %v1772 = vmul.f32 %v1741, %v1764
    %v1773 = vmul.f32 %v1747, %v1765
    %v1774 = vmul.f32 %v1753, %v1766
    %v1775 = vmul.f32 %v1759, %v1767
    %v1776 = vadd.f32 %v1768, %v1772
    %v1777 = vadd.f32 %v1769, %v1773
    %v1778 = vadd.f32 %v1770, %v1774
    %v1779 = vadd.f32 %v1771, %v1775
    %v1780 = vtanh.pop %v1776
    %v1781 = vtanh.pop %v1777
    %v1782 = vtanh.pop %v1778
    %v1783 = vtanh.pop %v1779
    %v1784 = vmul.f32 %v1745, %v1780
    %v1785 = vmul.f32 %v1751, %v1781
    %v1786 = vmul.f32 %v1757, %v1782
    %v1787 = vmul.f32 %v1763, %v1783
    %1788 = vmatprep.subr.mxu0 %v483
    %1789 = vmatpush1.msra.mxu0 %v482
    %1790 = vmatprep.subr.mxu0 %v487
    %1791 = vmatpush1.msra.mxu0 %v486
    %1792 = vmatprep.subr.mxu0 %v491
    %1793 = vmatpush1.msra.mxu0 %v490
    %1794 = vmatprep.subr.mxu0 %v495
    %1795 = vmatpush1.msra.mxu0 %v494
    %1796 = vmatprep.subr.mxu0 %v499
    %1797 = vmatpush1.msra.mxu0 %v498
    %1798 = vmatprep.subr.mxu0 %v503
    %1799 = vmatpush1.msra.mxu0 %v502
    %1800 = vmatprep.subr.mxu0 %v507
    %1801 = vmatpush1.msra.mxu0 %v506
    %1802 = vmatprep.subr.mxu0 %v511
    %1803 = vmatpush1.msra.mxu0 %v510
    %1804 = vmatprep.subr.mxu0 %v515
    %1805 = vmatpush1.msra.mxu0 %v514
    %1806 = vmatprep.subr.mxu0 %v519
    %1807 = vmatpush1.msra.mxu0 %v518
    %1808 = vmatprep.subr.mxu0 %v523
    %1809 = vmatpush1.msra.mxu0 %v522
    %1810 = vmatprep.subr.mxu0 %v527
    %1811 = vmatpush1.msra.mxu0 %v526
    %1812 = vmatprep.subr.mxu0 %v531
    %1813 = vmatpush1.msra.mxu0 %v530
    %1814 = vmatprep.subr.mxu0 %v535
    %1815 = vmatpush1.msra.mxu0 %v534
    %1816 = vmatprep.subr.mxu0 %v539
    %1817 = vmatpush1.msra.mxu0 %v538
    %1818 = vmatprep.subr.mxu0 %v543
    %1819 = vmatpush1.msra.mxu0 %v542
    %1820 = vmatprep.subr.mxu0 %v547
    %1821 = vmatpush1.msra.mxu0 %v546
    %1822 = vmatprep.subr.mxu0 %v551
    %1823 = vmatpush1.msra.mxu0 %v550
    %1824 = vmatprep.subr.mxu0 %v555
    %1825 = vmatpush1.msra.mxu0 %v554
    %1826 = vmatprep.subr.mxu0 %v559
    %1827 = vmatpush1.msra.mxu0 %v558
    %1828 = vmatprep.subr.mxu0 %v563
    %1829 = vmatpush1.msra.mxu0 %v562
    %1830 = vmatprep.subr.mxu0 %v567
    %1831 = vmatpush1.msra.mxu0 %v566
    %1832 = vmatprep.subr.mxu0 %v571
    %1833 = vmatpush1.msra.mxu0 %v570
    %1834 = vmatprep.subr.mxu0 %v575
    %1835 = vmatpush1.msra.mxu0 %v574
    %1836 = vmatprep.subr.mxu0 %v579
    %1837 = vmatpush1.msra.mxu0 %v578
    %1838 = vmatprep.subr.mxu0 %v583
    %1839 = vmatpush1.msra.mxu0 %v582
    %1840 = vmatprep.subr.mxu0 %v587
    %1841 = vmatpush1.msra.mxu0 %v586
    %1842 = vmatprep.subr.mxu0 %v591
    %1843 = vmatpush1.msra.mxu0 %v590
    %1844 = vmatprep.subr.mxu0 %v595
    %1845 = vmatpush1.msra.mxu0 %v594
    %1846 = vmatprep.subr.mxu0 %v599
    %1847 = vmatpush1.msra.mxu0 %v598
    %1848 = vmatprep.subr.mxu0 %v603
    %1849 = vmatpush1.msra.mxu0 %v602
    %1850 = vmatprep.subr.mxu0 %v607
    %1851 = vmatpush1.msra.mxu0 %v606
    %1852 = vmatprep.mubr.f32.mxu0 %v1477
    %1853 = vmatmul.mubr.f32.gmra.mrb[0].mxu0 %v1784
    %v1854 = vpop.f32.mrb[0].mxu0
    %v1855 = vadd.f32 %v610, %v1854
    %v1856 = vpop.f32.mrb[0].mxu0
    %v1857 = vadd.f32 %v611, %v1856
    %1858 = vmatprep.mubr.f32.mxu0 %v1478
    %1859 = vmatmul.mubr.f32.gmra.mrb[0].mxu0 %v1785
    %v1860 = vpop.f32.mrb[0].mxu0
    %v1861 = vadd.f32 %v614, %v1860
    %v1862 = vpop.f32.mrb[0].mxu0
    %v1863 = vadd.f32 %v615, %v1862
    %1864 = vmatprep.mubr.f32.mxu0 %v1479
    %1865 = vmatmul.mubr.f32.gmra.mrb[0].mxu0 %v1786
    %v1866 = vpop.f32.mrb[0].mxu0
    %v1867 = vadd.f32 %v618, %v1866
    %v1868 = vpop.f32.mrb[0].mxu0
    %v1869 = vadd.f32 %v619, %v1868
    %1870 = vmatprep.mubr.f32.mxu0 %v1480
    %1871 = vmatmul.mubr.f32.gmra.mrb[0].mxu0 %v1787
    %v1872 = vpop.f32.mrb[0].mxu0
    %v1873 = vadd.f32 %v622, %v1872
    %v1874 = vpop.f32.mrb[0].mxu0
    %v1875 = vadd.f32 %v623, %v1874
    %1876 = vdwg.mxu0
    %1877 = vmatprep.subr.mxu0 %v485
    %1878 = vmatpush1.msra.mxu0 %v484
    %1879 = vmatprep.subr.mxu0 %v489
    %1880 = vmatpush1.msra.mxu0 %v488
    %1881 = vmatprep.subr.mxu0 %v493
    %1882 = vmatpush1.msra.mxu0 %v492
    %1883 = vmatprep.subr.mxu0 %v497
    %1884 = vmatpush1.msra.mxu0 %v496
    %1885 = vmatprep.subr.mxu0 %v501
    %1886 = vmatpush1.msra.mxu0 %v500
    %1887 = vmatprep.subr.mxu0 %v505
    %1888 = vmatpush1.msra.mxu0 %v504
    %1889 = vmatprep.subr.mxu0 %v509
    %1890 = vmatpush1.msra.mxu0 %v508
    %1891 = vmatprep.subr.mxu0 %v513
    %1892 = vmatpush1.msra.mxu0 %v512
    %1893 = vmatprep.subr.mxu0 %v517
    %1894 = vmatpush1.msra.mxu0 %v516
    %1895 = vmatprep.subr.mxu0 %v521
    %1896 = vmatpush1.msra.mxu0 %v520
    %1897 = vmatprep.subr.mxu0 %v525
    %1898 = vmatpush1.msra.mxu0 %v524
    %1899 = vmatprep.subr.mxu0 %v529
    %1900 = vmatpush1.msra.mxu0 %v528
    %1901 = vmatprep.subr.mxu0 %v533
    %1902 = vmatpush1.msra.mxu0 %v532
    %1903 = vmatprep.subr.mxu0 %v537
    %1904 = vmatpush1.msra.mxu0 %v536
    %1905 = vmatprep.subr.mxu0 %v541
    %1906 = vmatpush1.msra.mxu0 %v540
    %1907 = vmatprep.subr.mxu0 %v545
    %1908 = vmatpush1.msra.mxu0 %v544
    %1909 = vmatprep.subr.mxu0 %v549
    %1910 = vmatpush1.msra.mxu0 %v548
    %1911 = vmatprep.subr.mxu0 %v553
    %1912 = vmatpush1.msra.mxu0 %v552
    %1913 = vmatprep.subr.mxu0 %v557
    %1914 = vmatpush1.msra.mxu0 %v556
    %1915 = vmatprep.subr.mxu0 %v561
    %1916 = vmatpush1.msra.mxu0 %v560
    %1917 = vmatprep.subr.mxu0 %v565
    %1918 = vmatpush1.msra.mxu0 %v564
    %1919 = vmatprep.subr.mxu0 %v569
    %1920 = vmatpush1.msra.mxu0 %v568
    %1921 = vmatprep.subr.mxu0 %v573
    %1922 = vmatpush1.msra.mxu0 %v572
    %1923 = vmatprep.subr.mxu0 %v577
    %1924 = vmatpush1.msra.mxu0 %v576
    %1925 = vmatprep.subr.mxu0 %v581
    %1926 = vmatpush1.msra.mxu0 %v580
    %1927 = vmatprep.subr.mxu0 %v585
    %1928 = vmatpush1.msra.mxu0 %v584
    %1929 = vmatprep.subr.mxu0 %v589
    %1930 = vmatpush1.msra.mxu0 %v588
    %1931 = vmatprep.subr.mxu0 %v593
    %1932 = vmatpush1.msra.mxu0 %v592
    %1933 = vmatprep.subr.mxu0 %v597
    %1934 = vmatpush1.msra.mxu0 %v596
    %1935 = vmatprep.subr.mxu0 %v601
    %1936 = vmatpush1.msra.mxu0 %v600
    %1937 = vmatprep.subr.mxu0 %v605
    %1938 = vmatpush1.msra.mxu0 %v604
    %1939 = vmatprep.subr.mxu0 %v609
    %1940 = vmatpush1.msra.mxu0 %v608
    %1941 = vmatprep.mubr.f32.mxu0 %v1477
    %1942 = vmatmul.mubr.f32.gmra.mrb[0].mxu0 %v1784
    %v1943 = vpop.f32.mrb[0].mxu0
    %v1944 = vadd.f32 %v612, %v1943
    %v1945 = vpop.f32.mrb[0].mxu0
    %v1946 = vadd.f32 %v613, %v1945
    %1947 = vmatprep.mubr.f32.mxu0 %v1478
    %1948 = vmatmul.mubr.f32.gmra.mrb[0].mxu0 %v1785
    %v1949 = vpop.f32.mrb[0].mxu0
    %v1950 = vadd.f32 %v616, %v1949
    %v1951 = vpop.f32.mrb[0].mxu0
    %v1952 = vadd.f32 %v617, %v1951
    %1953 = vmatprep.mubr.f32.mxu0 %v1479
    %1954 = vmatmul.mubr.f32.gmra.mrb[0].mxu0 %v1786
    %v1955 = vpop.f32.mrb[0].mxu0
    %v1956 = vadd.f32 %v620, %v1955
    %v1957 = vpop.f32.mrb[0].mxu0
    %v1958 = vadd.f32 %v621, %v1957
    %1959 = vmatprep.mubr.f32.mxu0 %v1480
    %1960 = vmatmul.mubr.f32.gmra.mrb[0].mxu0 %v1787
    %v1961 = vpop.f32.mrb[0].mxu0
    %v1962 = vadd.f32 %v624, %v1961
    %v1963 = vpop.f32.mrb[0].mxu0
    %v1964 = vadd.f32 %v625, %v1963
    %1965 = vdwg.mxu0
    %v1966 = vxor.u32 %v1855, 2147483648
    %v1967 = vxor.u32 %v1857, 2147483648
    %v1968 = vxor.u32 %v1944, 2147483648
    %v1969 = vxor.u32 %v1861, 2147483648
    %v1970 = vxor.u32 %v1863, 2147483648
    %v1971 = vxor.u32 %v1950, 2147483648
    %v1972 = vxor.u32 %v1867, 2147483648
    %v1973 = vxor.u32 %v1869, 2147483648
    %v1974 = vxor.u32 %v1956, 2147483648
    %v1975 = vxor.u32 %v1873, 2147483648
    %v1976 = vxor.u32 %v1875, 2147483648
    %v1977 = vxor.u32 %v1962, 2147483648
    %v1978 = vmul.f32 %v1966, 1.442695
    %v1979 = vpow.pop %v1978
    %v1980 = vmul.f32 %v1967, 1.442695
    %v1981 = vpow.pop %v1980
    %v1982 = vmul.f32 %v1968, 1.442695
    %v1983 = vpow.pop %v1982
    %v1984 = vmul.f32 %v1969, 1.442695
    %v1985 = vpow.pop %v1984
    %v1986 = vmul.f32 %v1970, 1.442695
    %v1987 = vpow.pop %v1986
    %v1988 = vmul.f32 %v1971, 1.442695
    %v1989 = vpow.pop %v1988
    %v1990 = vmul.f32 %v1972, 1.442695
    %v1991 = vpow.pop %v1990
    %v1992 = vmul.f32 %v1973, 1.442695
    %v1993 = vpow.pop %v1992
    %v1994 = vmul.f32 %v1974, 1.442695
    %v1995 = vpow.pop %v1994
    %v1996 = vmul.f32 %v1975, 1.442695
    %v1997 = vpow.pop %v1996
    %v1998 = vmul.f32 %v1976, 1.442695
    %v1999 = vpow.pop %v1998
    %v2000 = vmul.f32 %v1977, 1.442695
    %v2001 = vpow.pop %v2000
    %v2002 = vadd.f32 %v1979, 1.0
    %v2003 = vadd.f32 %v1981, 1.0
    %v2004 = vadd.f32 %v1983, 1.0
    %v2005 = vadd.f32 %v1985, 1.0
    %v2006 = vadd.f32 %v1987, 1.0
    %v2007 = vadd.f32 %v1989, 1.0
    %v2008 = vadd.f32 %v1991, 1.0
    %v2009 = vadd.f32 %v1993, 1.0
    %v2010 = vadd.f32 %v1995, 1.0
    %v2011 = vadd.f32 %v1997, 1.0
    %v2012 = vadd.f32 %v1999, 1.0
    %v2013 = vadd.f32 %v2001, 1.0
    %v2014 = vrcp.pop %v2002
    %v2015 = vmul.f32 1.0, %v2014
    %v2016 = vrcp.pop %v2003
    %v2017 = vmul.f32 1.0, %v2016
    %v2018 = vrcp.pop %v2004
    %v2019 = vmul.f32 1.0, %v2018
    %v2020 = vrcp.pop %v2005
    %v2021 = vmul.f32 1.0, %v2020
    %v2022 = vrcp.pop %v2006
    %v2023 = vmul.f32 1.0, %v2022
    %v2024 = vrcp.pop %v2007
    %v2025 = vmul.f32 1.0, %v2024
    %v2026 = vrcp.pop %v2008
    %v2027 = vmul.f32 1.0, %v2026
    %v2028 = vrcp.pop %v2009
    %v2029 = vmul.f32 1.0, %v2028
    %v2030 = vrcp.pop %v2010
    %v2031 = vmul.f32 1.0, %v2030
    %v2032 = vrcp.pop %v2011
    %v2033 = vmul.f32 1.0, %v2032
    %v2034 = vrcp.pop %v2012
    %v2035 = vmul.f32 1.0, %v2034
    %v2036 = vrcp.pop %v2013
    %v2037 = vmul.f32 1.0, %v2036
    %v2038 = vtanh.pop %v1946
    %v2039 = vtanh.pop %v1952
    %v2040 = vtanh.pop %v1958
    %v2041 = vtanh.pop %v1964
    %v2042 = vmul.f32 %v2017, %v1469
    %v2043 = vmul.f32 %v2023, %v1470
    %v2044 = vmul.f32 %v2029, %v1471
    %v2045 = vmul.f32 %v2035, %v1472
    %v2046 = vmul.f32 %v2015, %v2038
    %v2047 = vmul.f32 %v2021, %v2039
    %v2048 = vmul.f32 %v2027, %v2040
    %v2049 = vmul.f32 %v2033, %v2041
    %v2050 = vadd.f32 %v2042, %v2046
    %v2051 = vadd.f32 %v2043, %v2047
    %v2052 = vadd.f32 %v2044, %v2048
    %v2053 = vadd.f32 %v2045, %v2049
    %v2054 = vtanh.pop %v2050
    %v2055 = vtanh.pop %v2051
    %v2056 = vtanh.pop %v2052
    %v2057 = vtanh.pop %v2053
    %v2058 = vmul.f32 %v2019, %v2054
    %v2059 = vmul.f32 %v2025, %v2055
    %v2060 = vmul.f32 %v2031, %v2056
    %v2061 = vmul.f32 %v2037, %v2057
    %s2062 = scalar_lea.vmem [#allocation2], 384
    %v2063 = vld [vmem:[%s2062] sm:$0xff]
    %v2064 = vld [vmem:[%s2062 + $0x8] sm:$0xff]
    %v2065 = vld [vmem:[%s2062 + $0x10] sm:$0xff]
    %v2066 = vld [vmem:[%s2062 + $0x18] sm:$0xff]
    %v2067 = vld [vmem:[%s2062 + $0x20] sm:$0xff]
    %v2068 = vld [vmem:[%s2062 + $0x28] sm:$0xff]
    %v2069 = vld [vmem:[%s2062 + $0x30] sm:$0xff]
    %v2070 = vld [vmem:[%s2062 + $0x38] sm:$0xff]
    %v2071 = vld [vmem:[%s2062 + $0x40] sm:$0xff]
    %v2072 = vld [vmem:[%s2062 + $0x48] sm:$0xff]
    %v2073 = vld [vmem:[%s2062 + $0x50] sm:$0xff]
    %v2074 = vld [vmem:[%s2062 + $0x58] sm:$0xff]
    %v2075 = vld [vmem:[%s2062 + $0x60] sm:$0xff]
    %v2076 = vld [vmem:[%s2062 + $0x68] sm:$0xff]
    %v2077 = vld [vmem:[%s2062 + $0x70] sm:$0xff]
    %v2078 = vld [vmem:[%s2062 + $0x78] sm:$0xff]
    %2079 = vmatprep.subr.mxu0 %v129
    %2080 = vmatpush1.msra.mxu0 %v128
    %2081 = vmatprep.subr.mxu0 %v133
    %2082 = vmatpush1.msra.mxu0 %v132
    %2083 = vmatprep.subr.mxu0 %v137
    %2084 = vmatpush1.msra.mxu0 %v136
    %2085 = vmatprep.subr.mxu0 %v141
    %2086 = vmatpush1.msra.mxu0 %v140
    %2087 = vmatprep.subr.mxu0 %v145
    %2088 = vmatpush1.msra.mxu0 %v144
    %2089 = vmatprep.subr.mxu0 %v149
    %2090 = vmatpush1.msra.mxu0 %v148
    %2091 = vmatprep.subr.mxu0 %v153
    %2092 = vmatpush1.msra.mxu0 %v152
    %2093 = vmatprep.subr.mxu0 %v157
    %2094 = vmatpush1.msra.mxu0 %v156
    %2095 = vmatprep.subr.mxu0 %v161
    %2096 = vmatpush1.msra.mxu0 %v160
    %2097 = vmatprep.subr.mxu0 %v165
    %2098 = vmatpush1.msra.mxu0 %v164
    %2099 = vmatprep.subr.mxu0 %v169
    %2100 = vmatpush1.msra.mxu0 %v168
    %2101 = vmatprep.subr.mxu0 %v173
    %2102 = vmatpush1.msra.mxu0 %v172
    %2103 = vmatprep.subr.mxu0 %v177
    %2104 = vmatpush1.msra.mxu0 %v176
    %2105 = vmatprep.subr.mxu0 %v181
    %2106 = vmatpush1.msra.mxu0 %v180
    %2107 = vmatprep.subr.mxu0 %v185
    %2108 = vmatpush1.msra.mxu0 %v184
    %2109 = vmatprep.subr.mxu0 %v189
    %2110 = vmatpush1.msra.mxu0 %v188
    %2111 = vmatprep.subr.mxu0 0.0
    %2112 = vmatpush1.msra.mxu0 0.0
    %2113 = vmatprep.subr.mxu0 0.0
    %2114 = vmatpush1.msra.mxu0 0.0
    %2115 = vmatprep.subr.mxu0 0.0
    %2116 = vmatpush1.msra.mxu0 0.0
    %2117 = vmatprep.subr.mxu0 0.0
    %2118 = vmatpush1.msra.mxu0 0.0
    %2119 = vmatprep.subr.mxu0 0.0
    %2120 = vmatpush1.msra.mxu0 0.0
    %2121 = vmatprep.subr.mxu0 0.0
    %2122 = vmatpush1.msra.mxu0 0.0
    %2123 = vmatprep.subr.mxu0 0.0
    %2124 = vmatpush1.msra.mxu0 0.0
    %2125 = vmatprep.subr.mxu0 0.0
    %2126 = vmatpush1.msra.mxu0 0.0
    %2127 = vmatprep.subr.mxu0 0.0
    %2128 = vmatpush1.msra.mxu0 0.0
    %2129 = vmatprep.subr.mxu0 0.0
    %2130 = vmatpush1.msra.mxu0 0.0
    %2131 = vmatprep.subr.mxu0 0.0
    %2132 = vmatpush1.msra.mxu0 0.0
    %2133 = vmatprep.subr.mxu0 0.0
    %2134 = vmatpush1.msra.mxu0 0.0
    %2135 = vmatprep.subr.mxu0 0.0
    %2136 = vmatpush1.msra.mxu0 0.0
    %2137 = vmatprep.subr.mxu0 0.0
    %2138 = vmatpush1.msra.mxu0 0.0
    %2139 = vmatprep.subr.mxu0 0.0
    %2140 = vmatpush1.msra.mxu0 0.0
    %2141 = vmatprep.subr.mxu0 0.0
    %2142 = vmatpush1.msra.mxu0 0.0
    %2143 = vmatprep.mubr.f32.mxu0 0.0
    %2144 = vmatmul.mubr.f32.gmra.mrb[0].mxu0 %v1784
    %v2145 = vpop.f32.mrb[0].mxu0
    %v2146 = vadd.f32 0.0, %v2145
    %v2147 = vpop.f32.mrb[0].mxu0
    %v2148 = vadd.f32 0.0, %v2147
    %2149 = vmatprep.mubr.f32.mxu0 0.0
    %2150 = vmatmul.mubr.f32.gmra.mrb[0].mxu0 %v1785
    %v2151 = vpop.f32.mrb[0].mxu0
    %v2152 = vadd.f32 0.0, %v2151
    %v2153 = vpop.f32.mrb[0].mxu0
    %v2154 = vadd.f32 0.0, %v2153
    %2155 = vmatprep.mubr.f32.mxu0 0.0
    %2156 = vmatmul.mubr.f32.gmra.mrb[0].mxu0 %v1786
    %v2157 = vpop.f32.mrb[0].mxu0
    %v2158 = vadd.f32 0.0, %v2157
    %v2159 = vpop.f32.mrb[0].mxu0
    %v2160 = vadd.f32 0.0, %v2159
    %2161 = vmatprep.mubr.f32.mxu0 0.0
    %2162 = vmatmul.mubr.f32.gmra.mrb[0].mxu0 %v1787
    %v2163 = vpop.f32.mrb[0].mxu0
    %v2164 = vadd.f32 0.0, %v2163
    %v2165 = vpop.f32.mrb[0].mxu0
    %v2166 = vadd.f32 0.0, %v2165
    %2167 = vdwg.mxu0
    %2168 = vmatprep.subr.mxu0 %v131
    %2169 = vmatpush1.msra.mxu0 %v130
    %2170 = vmatprep.subr.mxu0 %v135
    %2171 = vmatpush1.msra.mxu0 %v134
    %2172 = vmatprep.subr.mxu0 %v139
    %2173 = vmatpush1.msra.mxu0 %v138
    %2174 = vmatprep.subr.mxu0 %v143
    %2175 = vmatpush1.msra.mxu0 %v142
    %2176 = vmatprep.subr.mxu0 %v147
    %2177 = vmatpush1.msra.mxu0 %v146
    %2178 = vmatprep.subr.mxu0 %v151
    %2179 = vmatpush1.msra.mxu0 %v150
    %2180 = vmatprep.subr.mxu0 %v155
    %2181 = vmatpush1.msra.mxu0 %v154
    %2182 = vmatprep.subr.mxu0 %v159
    %2183 = vmatpush1.msra.mxu0 %v158
    %2184 = vmatprep.subr.mxu0 %v163
    %2185 = vmatpush1.msra.mxu0 %v162
    %2186 = vmatprep.subr.mxu0 %v167
    %2187 = vmatpush1.msra.mxu0 %v166
    %2188 = vmatprep.subr.mxu0 %v171
    %2189 = vmatpush1.msra.mxu0 %v170
    %2190 = vmatprep.subr.mxu0 %v175
    %2191 = vmatpush1.msra.mxu0 %v174
    %2192 = vmatprep.subr.mxu0 %v179
    %2193 = vmatpush1.msra.mxu0 %v178
    %2194 = vmatprep.subr.mxu0 %v183
    %2195 = vmatpush1.msra.mxu0 %v182
    %2196 = vmatprep.subr.mxu0 %v187
    %2197 = vmatpush1.msra.mxu0 %v186
    %2198 = vmatprep.subr.mxu0 %v191
    %2199 = vmatpush1.msra.mxu0 %v190
    %2200 = vmatprep.subr.mxu0 0.0
    %2201 = vmatpush1.msra.mxu0 0.0
    %2202 = vmatprep.subr.mxu0 0.0
    %2203 = vmatpush1.msra.mxu0 0.0
    %2204 = vmatprep.subr.mxu0 0.0
    %2205 = vmatpush1.msra.mxu0 0.0
    %2206 = vmatprep.subr.mxu0 0.0
    %2207 = vmatpush1.msra.mxu0 0.0
    %2208 = vmatprep.subr.mxu0 0.0
    %2209 = vmatpush1.msra.mxu0 0.0
    %2210 = vmatprep.subr.mxu0 0.0
    %2211 = vmatpush1.msra.mxu0 0.0
    %2212 = vmatprep.subr.mxu0 0.0
    %2213 = vmatpush1.msra.mxu0 0.0
    %2214 = vmatprep.subr.mxu0 0.0
    %2215 = vmatpush1.msra.mxu0 0.0
    %2216 = vmatprep.subr.mxu0 0.0
    %2217 = vmatpush1.msra.mxu0 0.0
    %2218 = vmatprep.subr.mxu0 0.0
    %2219 = vmatpush1.msra.mxu0 0.0
    %2220 = vmatprep.subr.mxu0 0.0
    %2221 = vmatpush1.msra.mxu0 0.0
    %2222 = vmatprep.subr.mxu0 0.0
    %2223 = vmatpush1.msra.mxu0 0.0
    %2224 = vmatprep.subr.mxu0 0.0
    %2225 = vmatpush1.msra.mxu0 0.0
    %2226 = vmatprep.subr.mxu0 0.0
    %2227 = vmatpush1.msra.mxu0 0.0
    %2228 = vmatprep.subr.mxu0 0.0
    %2229 = vmatpush1.msra.mxu0 0.0
    %2230 = vmatprep.subr.mxu0 0.0
    %2231 = vmatpush1.msra.mxu0 0.0
    %2232 = vmatprep.mubr.f32.mxu0 0.0
    %2233 = vmatmul.mubr.f32.gmra.mrb[0].mxu0 %v1784
    %v2234 = vpop.f32.mrb[0].mxu0
    %v2235 = vadd.f32 0.0, %v2234
    %v2236 = vpop.f32.mrb[0].mxu0
    %v2237 = vadd.f32 0.0, %v2236
    %2238 = vmatprep.mubr.f32.mxu0 0.0
    %2239 = vmatmul.mubr.f32.gmra.mrb[0].mxu0 %v1785
    %v2240 = vpop.f32.mrb[0].mxu0
    %v2241 = vadd.f32 0.0, %v2240
    %v2242 = vpop.f32.mrb[0].mxu0
    %v2243 = vadd.f32 0.0, %v2242
    %2244 = vmatprep.mubr.f32.mxu0 0.0
    %2245 = vmatmul.mubr.f32.gmra.mrb[0].mxu0 %v1786
    %v2246 = vpop.f32.mrb[0].mxu0
    %v2247 = vadd.f32 0.0, %v2246
    %v2248 = vpop.f32.mrb[0].mxu0
    %v2249 = vadd.f32 0.0, %v2248
    %2250 = vmatprep.mubr.f32.mxu0 0.0
    %2251 = vmatmul.mubr.f32.gmra.mrb[0].mxu0 %v1787
    %v2252 = vpop.f32.mrb[0].mxu0
    %v2253 = vadd.f32 0.0, %v2252
    %v2254 = vpop.f32.mrb[0].mxu0
    %v2255 = vadd.f32 0.0, %v2254
    %2256 = vdwg.mxu0
    %v2257 = vadd.f32 %v2063, %v2146
    %v2258 = vadd.f32 %v2064, %v2148
    %v2259 = vadd.f32 %v2065, %v2235
    %v2260 = vadd.f32 %v2066, %v2237
    %v2261 = vadd.f32 %v2067, %v2152
    %v2262 = vadd.f32 %v2068, %v2154
    %v2263 = vadd.f32 %v2069, %v2241
    %v2264 = vadd.f32 %v2070, %v2243
    %v2265 = vadd.f32 %v2071, %v2158
    %v2266 = vadd.f32 %v2072, %v2160
    %v2267 = vadd.f32 %v2073, %v2247
    %v2268 = vadd.f32 %v2074, %v2249
    %v2269 = vadd.f32 %v2075, %v2164
    %v2270 = vadd.f32 %v2076, %v2166
    %v2271 = vadd.f32 %v2077, %v2253
    %v2272 = vadd.f32 %v2078, %v2255
    %v2273 = vxor.u32 %v2257, 2147483648
    %v2274 = vxor.u32 %v2258, 2147483648
    %v2275 = vxor.u32 %v2259, 2147483648
    %v2276 = vxor.u32 %v2261, 2147483648
    %v2277 = vxor.u32 %v2262, 2147483648
    %v2278 = vxor.u32 %v2263, 2147483648
    %v2279 = vxor.u32 %v2265, 2147483648
    %v2280 = vxor.u32 %v2266, 2147483648
    %v2281 = vxor.u32 %v2267, 2147483648
    %v2282 = vxor.u32 %v2269, 2147483648
    %v2283 = vxor.u32 %v2270, 2147483648
    %v2284 = vxor.u32 %v2271, 2147483648
    %v2285 = vmul.f32 %v2273, 1.442695
    %v2286 = vpow.pop %v2285
    %v2287 = vmul.f32 %v2274, 1.442695
    %v2288 = vpow.pop %v2287
    %v2289 = vmul.f32 %v2275, 1.442695
    %v2290 = vpow.pop %v2289
    %v2291 = vmul.f32 %v2276, 1.442695
    %v2292 = vpow.pop %v2291
    %v2293 = vmul.f32 %v2277, 1.442695
    %v2294 = vpow.pop %v2293
    %v2295 = vmul.f32 %v2278, 1.442695
    %v2296 = vpow.pop %v2295
    %v2297 = vmul.f32 %v2279, 1.442695
    %v2298 = vpow.pop %v2297
    %v2299 = vmul.f32 %v2280, 1.442695
    %v2300 = vpow.pop %v2299
    %v2301 = vmul.f32 %v2281, 1.442695
    %v2302 = vpow.pop %v2301
    %v2303 = vmul.f32 %v2282, 1.442695
    %v2304 = vpow.pop %v2303
    %v2305 = vmul.f32 %v2283, 1.442695
    %v2306 = vpow.pop %v2305
    %v2307 = vmul.f32 %v2284, 1.442695
    %v2308 = vpow.pop %v2307
    %v2309 = vadd.f32 %v2286, 1.0
    %v2310 = vadd.f32 %v2288, 1.0
    %v2311 = vadd.f32 %v2290, 1.0
    %v2312 = vadd.f32 %v2292, 1.0
    %v2313 = vadd.f32 %v2294, 1.0
    %v2314 = vadd.f32 %v2296, 1.0
    %v2315 = vadd.f32 %v2298, 1.0
    %v2316 = vadd.f32 %v2300, 1.0
    %v2317 = vadd.f32 %v2302, 1.0
    %v2318 = vadd.f32 %v2304, 1.0
    %v2319 = vadd.f32 %v2306, 1.0
    %v2320 = vadd.f32 %v2308, 1.0
    %v2321 = vrcp.pop %v2309
    %v2322 = vmul.f32 1.0, %v2321
    %v2323 = vrcp.pop %v2310
    %v2324 = vmul.f32 1.0, %v2323
    %v2325 = vrcp.pop %v2311
    %v2326 = vmul.f32 1.0, %v2325
    %v2327 = vrcp.pop %v2312
    %v2328 = vmul.f32 1.0, %v2327
    %v2329 = vrcp.pop %v2313
    %v2330 = vmul.f32 1.0, %v2329
    %v2331 = vrcp.pop %v2314
    %v2332 = vmul.f32 1.0, %v2331
    %v2333 = vrcp.pop %v2315
    %v2334 = vmul.f32 1.0, %v2333
    %v2335 = vrcp.pop %v2316
    %v2336 = vmul.f32 1.0, %v2335
    %v2337 = vrcp.pop %v2317
    %v2338 = vmul.f32 1.0, %v2337
    %v2339 = vrcp.pop %v2318
    %v2340 = vmul.f32 1.0, %v2339
    %v2341 = vrcp.pop %v2319
    %v2342 = vmul.f32 1.0, %v2341
    %v2343 = vrcp.pop %v2320
    %v2344 = vmul.f32 1.0, %v2343
    %v2345 = vtanh.pop %v2260
    %v2346 = vtanh.pop %v2264
    %v2347 = vtanh.pop %v2268
    %v2348 = vtanh.pop %v2272
    %v2349 = vmul.f32 %v2324, %v1776
    %v2350 = vmul.f32 %v2330, %v1777
    %v2351 = vmul.f32 %v2336, %v1778
    %v2352 = vmul.f32 %v2342, %v1779
    %v2353 = vmul.f32 %v2322, %v2345
    %v2354 = vmul.f32 %v2328, %v2346
    %v2355 = vmul.f32 %v2334, %v2347
    %v2356 = vmul.f32 %v2340, %v2348
    %v2357 = vadd.f32 %v2349, %v2353
    %v2358 = vadd.f32 %v2350, %v2354
    %v2359 = vadd.f32 %v2351, %v2355
    %v2360 = vadd.f32 %v2352, %v2356
    %v2361 = vtanh.pop %v2357
    %v2362 = vtanh.pop %v2358
    %v2363 = vtanh.pop %v2359
    %v2364 = vtanh.pop %v2360
    %v2365 = vmul.f32 %v2326, %v2361
    %v2366 = vmul.f32 %v2332, %v2362
    %v2367 = vmul.f32 %v2338, %v2363
    %v2368 = vmul.f32 %v2344, %v2364
    %2369 = vmatprep.subr.mxu0 %v483
    %2370 = vmatpush1.msra.mxu0 %v482
    %2371 = vmatprep.subr.mxu0 %v487
    %2372 = vmatpush1.msra.mxu0 %v486
    %2373 = vmatprep.subr.mxu0 %v491
    %2374 = vmatpush1.msra.mxu0 %v490
    %2375 = vmatprep.subr.mxu0 %v495
    %2376 = vmatpush1.msra.mxu0 %v494
    %2377 = vmatprep.subr.mxu0 %v499
    %2378 = vmatpush1.msra.mxu0 %v498
    %2379 = vmatprep.subr.mxu0 %v503
    %2380 = vmatpush1.msra.mxu0 %v502
    %2381 = vmatprep.subr.mxu0 %v507
    %2382 = vmatpush1.msra.mxu0 %v506
    %2383 = vmatprep.subr.mxu0 %v511
    %2384 = vmatpush1.msra.mxu0 %v510
    %2385 = vmatprep.subr.mxu0 %v515
    %2386 = vmatpush1.msra.mxu0 %v514
    %2387 = vmatprep.subr.mxu0 %v519
    %2388 = vmatpush1.msra.mxu0 %v518
    %2389 = vmatprep.subr.mxu0 %v523
    %2390 = vmatpush1.msra.mxu0 %v522
    %2391 = vmatprep.subr.mxu0 %v527
    %2392 = vmatpush1.msra.mxu0 %v526
    %2393 = vmatprep.subr.mxu0 %v531
    %2394 = vmatpush1.msra.mxu0 %v530
    %2395 = vmatprep.subr.mxu0 %v535
    %2396 = vmatpush1.msra.mxu0 %v534
    %2397 = vmatprep.subr.mxu0 %v539
    %2398 = vmatpush1.msra.mxu0 %v538
    %2399 = vmatprep.subr.mxu0 %v543
    %2400 = vmatpush1.msra.mxu0 %v542
    %2401 = vmatprep.subr.mxu0 %v547
    %2402 = vmatpush1.msra.mxu0 %v546
    %2403 = vmatprep.subr.mxu0 %v551
    %2404 = vmatpush1.msra.mxu0 %v550
    %2405 = vmatprep.subr.mxu0 %v555
    %2406 = vmatpush1.msra.mxu0 %v554
    %2407 = vmatprep.subr.mxu0 %v559
    %2408 = vmatpush1.msra.mxu0 %v558
    %2409 = vmatprep.subr.mxu0 %v563
    %2410 = vmatpush1.msra.mxu0 %v562
    %2411 = vmatprep.subr.mxu0 %v567
    %2412 = vmatpush1.msra.mxu0 %v566
    %2413 = vmatprep.subr.mxu0 %v571
    %2414 = vmatpush1.msra.mxu0 %v570
    %2415 = vmatprep.subr.mxu0 %v575
    %2416 = vmatpush1.msra.mxu0 %v574
    %2417 = vmatprep.subr.mxu0 %v579
    %2418 = vmatpush1.msra.mxu0 %v578
    %2419 = vmatprep.subr.mxu0 %v583
    %2420 = vmatpush1.msra.mxu0 %v582
    %2421 = vmatprep.subr.mxu0 %v587
    %2422 = vmatpush1.msra.mxu0 %v586
    %2423 = vmatprep.subr.mxu0 %v591
    %2424 = vmatpush1.msra.mxu0 %v590
    %2425 = vmatprep.subr.mxu0 %v595
    %2426 = vmatpush1.msra.mxu0 %v594
    %2427 = vmatprep.subr.mxu0 %v599
    %2428 = vmatpush1.msra.mxu0 %v598
    %2429 = vmatprep.subr.mxu0 %v603
    %2430 = vmatpush1.msra.mxu0 %v602
    %2431 = vmatprep.subr.mxu0 %v607
    %2432 = vmatpush1.msra.mxu0 %v606
    %2433 = vmatprep.mubr.f32.mxu0 %v2058
    %2434 = vmatmul.mubr.f32.gmra.mrb[0].mxu0 %v2365
    %v2435 = vpop.f32.mrb[0].mxu0
    %v2436 = vadd.f32 %v610, %v2435
    %v2437 = vpop.f32.mrb[0].mxu0
    %v2438 = vadd.f32 %v611, %v2437
    %2439 = vmatprep.mubr.f32.mxu0 %v2059
    %2440 = vmatmul.mubr.f32.gmra.mrb[0].mxu0 %v2366
    %v2441 = vpop.f32.mrb[0].mxu0
    %v2442 = vadd.f32 %v614, %v2441
    %v2443 = vpop.f32.mrb[0].mxu0
    %v2444 = vadd.f32 %v615, %v2443
    %2445 = vmatprep.mubr.f32.mxu0 %v2060
    %2446 = vmatmul.mubr.f32.gmra.mrb[0].mxu0 %v2367
    %v2447 = vpop.f32.mrb[0].mxu0
    %v2448 = vadd.f32 %v618, %v2447
    %v2449 = vpop.f32.mrb[0].mxu0
    %v2450 = vadd.f32 %v619, %v2449
    %2451 = vmatprep.mubr.f32.mxu0 %v2061
    %2452 = vmatmul.mubr.f32.gmra.mrb[0].mxu0 %v2368
    %v2453 = vpop.f32.mrb[0].mxu0
    %v2454 = vadd.f32 %v622, %v2453
    %v2455 = vpop.f32.mrb[0].mxu0
    %v2456 = vadd.f32 %v623, %v2455
    %2457 = vdwg.mxu0
    %2458 = vmatprep.subr.mxu0 %v485
    %2459 = vmatpush1.msra.mxu0 %v484
    %2460 = vmatprep.subr.mxu0 %v489
    %2461 = vmatpush1.msra.mxu0 %v488
    %2462 = vmatprep.subr.mxu0 %v493
    %2463 = vmatpush1.msra.mxu0 %v492
    %2464 = vmatprep.subr.mxu0 %v497
    %2465 = vmatpush1.msra.mxu0 %v496
    %2466 = vmatprep.subr.mxu0 %v501
    %2467 = vmatpush1.msra.mxu0 %v500
    %2468 = vmatprep.subr.mxu0 %v505
    %2469 = vmatpush1.msra.mxu0 %v504
    %2470 = vmatprep.subr.mxu0 %v509
    %2471 = vmatpush1.msra.mxu0 %v508
    %2472 = vmatprep.subr.mxu0 %v513
    %2473 = vmatpush1.msra.mxu0 %v512
    %2474 = vmatprep.subr.mxu0 %v517
    %2475 = vmatpush1.msra.mxu0 %v516
    %2476 = vmatprep.subr.mxu0 %v521
    %2477 = vmatpush1.msra.mxu0 %v520
    %2478 = vmatprep.subr.mxu0 %v525
    %2479 = vmatpush1.msra.mxu0 %v524
    %2480 = vmatprep.subr.mxu0 %v529
    %2481 = vmatpush1.msra.mxu0 %v528
    %2482 = vmatprep.subr.mxu0 %v533
    %2483 = vmatpush1.msra.mxu0 %v532
    %2484 = vmatprep.subr.mxu0 %v537
    %2485 = vmatpush1.msra.mxu0 %v536
    %2486 = vmatprep.subr.mxu0 %v541
    %2487 = vmatpush1.msra.mxu0 %v540
    %2488 = vmatprep.subr.mxu0 %v545
    %2489 = vmatpush1.msra.mxu0 %v544
    %2490 = vmatprep.subr.mxu0 %v549
    %2491 = vmatpush1.msra.mxu0 %v548
    %2492 = vmatprep.subr.mxu0 %v553
    %2493 = vmatpush1.msra.mxu0 %v552
    %2494 = vmatprep.subr.mxu0 %v557
    %2495 = vmatpush1.msra.mxu0 %v556
    %2496 = vmatprep.subr.mxu0 %v561
    %2497 = vmatpush1.msra.mxu0 %v560
    %2498 = vmatprep.subr.mxu0 %v565
    %2499 = vmatpush1.msra.mxu0 %v564
    %2500 = vmatprep.subr.mxu0 %v569
    %2501 = vmatpush1.msra.mxu0 %v568
    %2502 = vmatprep.subr.mxu0 %v573
    %2503 = vmatpush1.msra.mxu0 %v572
    %2504 = vmatprep.subr.mxu0 %v577
    %2505 = vmatpush1.msra.mxu0 %v576
    %2506 = vmatprep.subr.mxu0 %v581
    %2507 = vmatpush1.msra.mxu0 %v580
    %2508 = vmatprep.subr.mxu0 %v585
    %2509 = vmatpush1.msra.mxu0 %v584
    %2510 = vmatprep.subr.mxu0 %v589
    %2511 = vmatpush1.msra.mxu0 %v588
    %2512 = vmatprep.subr.mxu0 %v593
    %2513 = vmatpush1.msra.mxu0 %v592
    %2514 = vmatprep.subr.mxu0 %v597
    %2515 = vmatpush1.msra.mxu0 %v596
    %2516 = vmatprep.subr.mxu0 %v601
    %2517 = vmatpush1.msra.mxu0 %v600
    %2518 = vmatprep.subr.mxu0 %v605
    %2519 = vmatpush1.msra.mxu0 %v604
    %2520 = vmatprep.subr.mxu0 %v609
    %2521 = vmatpush1.msra.mxu0 %v608
    %2522 = vmatprep.mubr.f32.mxu0 %v2058
    %2523 = vmatmul.mubr.f32.gmra.mrb[0].mxu0 %v2365
    %v2524 = vpop.f32.mrb[0].mxu0
    %v2525 = vadd.f32 %v612, %v2524
    %v2526 = vpop.f32.mrb[0].mxu0
    %v2527 = vadd.f32 %v613, %v2526
    %2528 = vmatprep.mubr.f32.mxu0 %v2059
    %2529 = vmatmul.mubr.f32.gmra.mrb[0].mxu0 %v2366
    %v2530 = vpop.f32.mrb[0].mxu0
    %v2531 = vadd.f32 %v616, %v2530
    %v2532 = vpop.f32.mrb[0].mxu0
    %v2533 = vadd.f32 %v617, %v2532
    %2534 = vmatprep.mubr.f32.mxu0 %v2060
    %2535 = vmatmul.mubr.f32.gmra.mrb[0].mxu0 %v2367
    %v2536 = vpop.f32.mrb[0].mxu0
    %v2537 = vadd.f32 %v620, %v2536
    %v2538 = vpop.f32.mrb[0].mxu0
    %v2539 = vadd.f32 %v621, %v2538
    %2540 = vmatprep.mubr.f32.mxu0 %v2061
    %2541 = vmatmul.mubr.f32.gmra.mrb[0].mxu0 %v2368
    %v2542 = vpop.f32.mrb[0].mxu0
    %v2543 = vadd.f32 %v624, %v2542
    %v2544 = vpop.f32.mrb[0].mxu0
    %v2545 = vadd.f32 %v625, %v2544
    %2546 = vdwg.mxu0
    %v2547 = vxor.u32 %v2436, 2147483648
    %v2548 = vxor.u32 %v2438, 2147483648
    %v2549 = vxor.u32 %v2525, 2147483648
    %v2550 = vxor.u32 %v2442, 2147483648
    %v2551 = vxor.u32 %v2444, 2147483648
    %v2552 = vxor.u32 %v2531, 2147483648
    %v2553 = vxor.u32 %v2448, 2147483648
    %v2554 = vxor.u32 %v2450, 2147483648
    %v2555 = vxor.u32 %v2537, 2147483648
    %v2556 = vxor.u32 %v2454, 2147483648
    %v2557 = vxor.u32 %v2456, 2147483648
    %v2558 = vxor.u32 %v2543, 2147483648
    %v2559 = vmul.f32 %v2547, 1.442695
    %v2560 = vpow.pop %v2559
    %v2561 = vmul.f32 %v2548, 1.442695
    %v2562 = vpow.pop %v2561
    %v2563 = vmul.f32 %v2549, 1.442695
    %v2564 = vpow.pop %v2563
    %v2565 = vmul.f32 %v2550, 1.442695
    %v2566 = vpow.pop %v2565
    %v2567 = vmul.f32 %v2551, 1.442695
    %v2568 = vpow.pop %v2567
    %v2569 = vmul.f32 %v2552, 1.442695
    %v2570 = vpow.pop %v2569
    %v2571 = vmul.f32 %v2553, 1.442695
    %v2572 = vpow.pop %v2571
    %v2573 = vmul.f32 %v2554, 1.442695
    %v2574 = vpow.pop %v2573
    %v2575 = vmul.f32 %v2555, 1.442695
    %v2576 = vpow.pop %v2575
    %v2577 = vmul.f32 %v2556, 1.442695
    %v2578 = vpow.pop %v2577
    %v2579 = vmul.f32 %v2557, 1.442695
    %v2580 = vpow.pop %v2579
    %v2581 = vmul.f32 %v2558, 1.442695
    %v2582 = vpow.pop %v2581
    %v2583 = vadd.f32 %v2560, 1.0
    %v2584 = vadd.f32 %v2562, 1.0
    %v2585 = vadd.f32 %v2564, 1.0
    %v2586 = vadd.f32 %v2566, 1.0
    %v2587 = vadd.f32 %v2568, 1.0
    %v2588 = vadd.f32 %v2570, 1.0
    %v2589 = vadd.f32 %v2572, 1.0
    %v2590 = vadd.f32 %v2574, 1.0
    %v2591 = vadd.f32 %v2576, 1.0
    %v2592 = vadd.f32 %v2578, 1.0
    %v2593 = vadd.f32 %v2580, 1.0
    %v2594 = vadd.f32 %v2582, 1.0
    %v2595 = vrcp.pop %v2583
    %v2596 = vmul.f32 1.0, %v2595
    %v2597 = vrcp.pop %v2584
    %v2598 = vmul.f32 1.0, %v2597
    %v2599 = vrcp.pop %v2585
    %v2600 = vmul.f32 1.0, %v2599
    %v2601 = vrcp.pop %v2586
    %v2602 = vmul.f32 1.0, %v2601
    %v2603 = vrcp.pop %v2587
    %v2604 = vmul.f32 1.0, %v2603
    %v2605 = vrcp.pop %v2588
    %v2606 = vmul.f32 1.0, %v2605
    %v2607 = vrcp.pop %v2589
    %v2608 = vmul.f32 1.0, %v2607
    %v2609 = vrcp.pop %v2590
    %v2610 = vmul.f32 1.0, %v2609
    %v2611 = vrcp.pop %v2591
    %v2612 = vmul.f32 1.0, %v2611
    %v2613 = vrcp.pop %v2592
    %v2614 = vmul.f32 1.0, %v2613
    %v2615 = vrcp.pop %v2593
    %v2616 = vmul.f32 1.0, %v2615
    %v2617 = vrcp.pop %v2594
    %v2618 = vmul.f32 1.0, %v2617
    %v2619 = vtanh.pop %v2527
    %v2620 = vtanh.pop %v2533
    %v2621 = vtanh.pop %v2539
    %v2622 = vtanh.pop %v2545
    %v2623 = vmul.f32 %v2598, %v2050
    %v2624 = vmul.f32 %v2604, %v2051
    %v2625 = vmul.f32 %v2610, %v2052
    %v2626 = vmul.f32 %v2616, %v2053
    %v2627 = vmul.f32 %v2596, %v2619
    %v2628 = vmul.f32 %v2602, %v2620
    %v2629 = vmul.f32 %v2608, %v2621
    %v2630 = vmul.f32 %v2614, %v2622
    %v2631 = vadd.f32 %v2623, %v2627
    %v2632 = vadd.f32 %v2624, %v2628
    %v2633 = vadd.f32 %v2625, %v2629
    %v2634 = vadd.f32 %v2626, %v2630
    %v2635 = vtanh.pop %v2631
    %v2636 = vtanh.pop %v2632
    %v2637 = vtanh.pop %v2633
    %v2638 = vtanh.pop %v2634
    %v2639 = vmul.f32 %v2600, %v2635
    %v2640 = vmul.f32 %v2606, %v2636
    %v2641 = vmul.f32 %v2612, %v2637
    %v2642 = vmul.f32 %v2618, %v2638
    %s2643 = scalar_lea.vmem [#allocation2], 512
    %v2644 = vld [vmem:[%s2643] sm:$0xff]
    %v2645 = vld [vmem:[%s2643 + $0x8] sm:$0xff]
    %v2646 = vld [vmem:[%s2643 + $0x10] sm:$0xff]
    %v2647 = vld [vmem:[%s2643 + $0x18] sm:$0xff]
    %v2648 = vld [vmem:[%s2643 + $0x20] sm:$0xff]
    %v2649 = vld [vmem:[%s2643 + $0x28] sm:$0xff]
    %v2650 = vld [vmem:[%s2643 + $0x30] sm:$0xff]
    %v2651 = vld [vmem:[%s2643 + $0x38] sm:$0xff]
    %v2652 = vld [vmem:[%s2643 + $0x40] sm:$0xff]
    %v2653 = vld [vmem:[%s2643 + $0x48] sm:$0xff]
    %v2654 = vld [vmem:[%s2643 + $0x50] sm:$0xff]
    %v2655 = vld [vmem:[%s2643 + $0x58] sm:$0xff]
    %v2656 = vld [vmem:[%s2643 + $0x60] sm:$0xff]
    %v2657 = vld [vmem:[%s2643 + $0x68] sm:$0xff]
    %v2658 = vld [vmem:[%s2643 + $0x70] sm:$0xff]
    %v2659 = vld [vmem:[%s2643 + $0x78] sm:$0xff]
    %2660 = vmatprep.subr.mxu0 %v129
    %2661 = vmatpush1.msra.mxu0 %v128
    %2662 = vmatprep.subr.mxu0 %v133
    %2663 = vmatpush1.msra.mxu0 %v132
    %2664 = vmatprep.subr.mxu0 %v137
    %2665 = vmatpush1.msra.mxu0 %v136
    %2666 = vmatprep.subr.mxu0 %v141
    %2667 = vmatpush1.msra.mxu0 %v140
    %2668 = vmatprep.subr.mxu0 %v145
    %2669 = vmatpush1.msra.mxu0 %v144
    %2670 = vmatprep.subr.mxu0 %v149
    %2671 = vmatpush1.msra.mxu0 %v148
    %2672 = vmatprep.subr.mxu0 %v153
    %2673 = vmatpush1.msra.mxu0 %v152
    %2674 = vmatprep.subr.mxu0 %v157
    %2675 = vmatpush1.msra.mxu0 %v156
    %2676 = vmatprep.subr.mxu0 %v161
    %2677 = vmatpush1.msra.mxu0 %v160
    %2678 = vmatprep.subr.mxu0 %v165
    %2679 = vmatpush1.msra.mxu0 %v164
    %2680 = vmatprep.subr.mxu0 %v169
    %2681 = vmatpush1.msra.mxu0 %v168
    %2682 = vmatprep.subr.mxu0 %v173
    %2683 = vmatpush1.msra.mxu0 %v172
    %2684 = vmatprep.subr.mxu0 %v177
    %2685 = vmatpush1.msra.mxu0 %v176
    %2686 = vmatprep.subr.mxu0 %v181
    %2687 = vmatpush1.msra.mxu0 %v180
    %2688 = vmatprep.subr.mxu0 %v185
    %2689 = vmatpush1.msra.mxu0 %v184
    %2690 = vmatprep.subr.mxu0 %v189
    %2691 = vmatpush1.msra.mxu0 %v188
    %2692 = vmatprep.subr.mxu0 0.0
    %2693 = vmatpush1.msra.mxu0 0.0
    %2694 = vmatprep.subr.mxu0 0.0
    %2695 = vmatpush1.msra.mxu0 0.0
    %2696 = vmatprep.subr.mxu0 0.0
    %2697 = vmatpush1.msra.mxu0 0.0
    %2698 = vmatprep.subr.mxu0 0.0
    %2699 = vmatpush1.msra.mxu0 0.0
    %2700 = vmatprep.subr.mxu0 0.0
    %2701 = vmatpush1.msra.mxu0 0.0
    %2702 = vmatprep.subr.mxu0 0.0
    %2703 = vmatpush1.msra.mxu0 0.0
    %2704 = vmatprep.subr.mxu0 0.0
    %2705 = vmatpush1.msra.mxu0 0.0
    %2706 = vmatprep.subr.mxu0 0.0
    %2707 = vmatpush1.msra.mxu0 0.0
    %2708 = vmatprep.subr.mxu0 0.0
    %2709 = vmatpush1.msra.mxu0 0.0
    %2710 = vmatprep.subr.mxu0 0.0
    %2711 = vmatpush1.msra.mxu0 0.0
    %2712 = vmatprep.subr.mxu0 0.0
    %2713 = vmatpush1.msra.mxu0 0.0
    %2714 = vmatprep.subr.mxu0 0.0
    %2715 = vmatpush1.msra.mxu0 0.0
    %2716 = vmatprep.subr.mxu0 0.0
    %2717 = vmatpush1.msra.mxu0 0.0
    %2718 = vmatprep.subr.mxu0 0.0
    %2719 = vmatpush1.msra.mxu0 0.0
    %2720 = vmatprep.subr.mxu0 0.0
    %2721 = vmatpush1.msra.mxu0 0.0
    %2722 = vmatprep.subr.mxu0 0.0
    %2723 = vmatpush1.msra.mxu0 0.0
    %2724 = vmatprep.mubr.f32.mxu0 0.0
    %2725 = vmatmul.mubr.f32.gmra.mrb[0].mxu0 %v2365
    %v2726 = vpop.f32.mrb[0].mxu0
    %v2727 = vadd.f32 0.0, %v2726
    %v2728 = vpop.f32.mrb[0].mxu0
    %v2729 = vadd.f32 0.0, %v2728
    %2730 = vmatprep.mubr.f32.mxu0 0.0
    %2731 = vmatmul.mubr.f32.gmra.mrb[0].mxu0 %v2366
    %v2732 = vpop.f32.mrb[0].mxu0
    %v2733 = vadd.f32 0.0, %v2732
    %v2734 = vpop.f32.mrb[0].mxu0
    %v2735 = vadd.f32 0.0, %v2734
    %2736 = vmatprep.mubr.f32.mxu0 0.0
    %2737 = vmatmul.mubr.f32.gmra.mrb[0].mxu0 %v2367
    %v2738 = vpop.f32.mrb[0].mxu0
    %v2739 = vadd.f32 0.0, %v2738
    %v2740 = vpop.f32.mrb[0].mxu0
    %v2741 = vadd.f32 0.0, %v2740
    %2742 = vmatprep.mubr.f32.mxu0 0.0
    %2743 = vmatmul.mubr.f32.gmra.mrb[0].mxu0 %v2368
    %v2744 = vpop.f32.mrb[0].mxu0
    %v2745 = vadd.f32 0.0, %v2744
    %v2746 = vpop.f32.mrb[0].mxu0
    %v2747 = vadd.f32 0.0, %v2746
    %2748 = vdwg.mxu0
    %2749 = vmatprep.subr.mxu0 %v131
    %2750 = vmatpush1.msra.mxu0 %v130
    %2751 = vmatprep.subr.mxu0 %v135
    %2752 = vmatpush1.msra.mxu0 %v134
    %2753 = vmatprep.subr.mxu0 %v139
    %2754 = vmatpush1.msra.mxu0 %v138
    %2755 = vmatprep.subr.mxu0 %v143
    %2756 = vmatpush1.msra.mxu0 %v142
    %2757 = vmatprep.subr.mxu0 %v147
    %2758 = vmatpush1.msra.mxu0 %v146
    %2759 = vmatprep.subr.mxu0 %v151
    %2760 = vmatpush1.msra.mxu0 %v150
    %2761 = vmatprep.subr.mxu0 %v155
    %2762 = vmatpush1.msra.mxu0 %v154
    %2763 = vmatprep.subr.mxu0 %v159
    %2764 = vmatpush1.msra.mxu0 %v158
    %2765 = vmatprep.subr.mxu0 %v163
    %2766 = vmatpush1.msra.mxu0 %v162
    %2767 = vmatprep.subr.mxu0 %v167
    %2768 = vmatpush1.msra.mxu0 %v166
    %2769 = vmatprep.subr.mxu0 %v171
    %2770 = vmatpush1.msra.mxu0 %v170
    %2771 = vmatprep.subr.mxu0 %v175
    %2772 = vmatpush1.msra.mxu0 %v174
    %2773 = vmatprep.subr.mxu0 %v179
    %2774 = vmatpush1.msra.mxu0 %v178
    %2775 = vmatprep.subr.mxu0 %v183
    %2776 = vmatpush1.msra.mxu0 %v182
    %2777 = vmatprep.subr.mxu0 %v187
    %2778 = vmatpush1.msra.mxu0 %v186
    %2779 = vmatprep.subr.mxu0 %v191
    %2780 = vmatpush1.msra.mxu0 %v190
    %2781 = vmatprep.subr.mxu0 0.0
    %2782 = vmatpush1.msra.mxu0 0.0
    %2783 = vmatprep.subr.mxu0 0.0
    %2784 = vmatpush1.msra.mxu0 0.0
    %2785 = vmatprep.subr.mxu0 0.0
    %2786 = vmatpush1.msra.mxu0 0.0
    %2787 = vmatprep.subr.mxu0 0.0
    %2788 = vmatpush1.msra.mxu0 0.0
    %2789 = vmatprep.subr.mxu0 0.0
    %2790 = vmatpush1.msra.mxu0 0.0
    %2791 = vmatprep.subr.mxu0 0.0
    %2792 = vmatpush1.msra.mxu0 0.0
    %2793 = vmatprep.subr.mxu0 0.0
    %2794 = vmatpush1.msra.mxu0 0.0
    %2795 = vmatprep.subr.mxu0 0.0
    %2796 = vmatpush1.msra.mxu0 0.0
    %2797 = vmatprep.subr.mxu0 0.0
    %2798 = vmatpush1.msra.mxu0 0.0
    %2799 = vmatprep.subr.mxu0 0.0
    %2800 = vmatpush1.msra.mxu0 0.0
    %2801 = vmatprep.subr.mxu0 0.0
    %2802 = vmatpush1.msra.mxu0 0.0
    %2803 = vmatprep.subr.mxu0 0.0
    %2804 = vmatpush1.msra.mxu0 0.0
    %2805 = vmatprep.subr.mxu0 0.0
    %2806 = vmatpush1.msra.mxu0 0.0
    %2807 = vmatprep.subr.mxu0 0.0
    %2808 = vmatpush1.msra.mxu0 0.0
    %2809 = vmatprep.subr.mxu0 0.0
    %2810 = vmatpush1.msra.mxu0 0.0
    %2811 = vmatprep.subr.mxu0 0.0
    %2812 = vmatpush1.msra.mxu0 0.0
    %2813 = vmatprep.mubr.f32.mxu0 0.0
    %2814 = vmatmul.mubr.f32.gmra.mrb[0].mxu0 %v2365
    %v2815 = vpop.f32.mrb[0].mxu0
    %v2816 = vadd.f32 0.0, %v2815
    %v2817 = vpop.f32.mrb[0].mxu0
    %v2818 = vadd.f32 0.0, %v2817
    %2819 = vmatprep.mubr.f32.mxu0 0.0
    %2820 = vmatmul.mubr.f32.gmra.mrb[0].mxu0 %v2366
    %v2821 = vpop.f32.mrb[0].mxu0
    %v2822 = vadd.f32 0.0, %v2821
    %v2823 = vpop.f32.mrb[0].mxu0
    %v2824 = vadd.f32 0.0, %v2823
    %2825 = vmatprep.mubr.f32.mxu0 0.0
    %2826 = vmatmul.mubr.f32.gmra.mrb[0].mxu0 %v2367
    %v2827 = vpop.f32.mrb[0].mxu0
    %v2828 = vadd.f32 0.0, %v2827
    %v2829 = vpop.f32.mrb[0].mxu0
    %v2830 = vadd.f32 0.0, %v2829
    %2831 = vmatprep.mubr.f32.mxu0 0.0
    %2832 = vmatmul.mubr.f32.gmra.mrb[0].mxu0 %v2368
    %v2833 = vpop.f32.mrb[0].mxu0
    %v2834 = vadd.f32 0.0, %v2833
    %v2835 = vpop.f32.mrb[0].mxu0
    %v2836 = vadd.f32 0.0, %v2835
    %2837 = vdwg.mxu0
    %v2838 = vadd.f32 %v2644, %v2727
    %v2839 = vadd.f32 %v2645, %v2729
    %v2840 = vadd.f32 %v2646, %v2816
    %v2841 = vadd.f32 %v2647, %v2818
    %v2842 = vadd.f32 %v2648, %v2733
    %v2843 = vadd.f32 %v2649, %v2735
    %v2844 = vadd.f32 %v2650, %v2822
    %v2845 = vadd.f32 %v2651, %v2824
    %v2846 = vadd.f32 %v2652, %v2739
    %v2847 = vadd.f32 %v2653, %v2741
    %v2848 = vadd.f32 %v2654, %v2828
    %v2849 = vadd.f32 %v2655, %v2830
    %v2850 = vadd.f32 %v2656, %v2745
    %v2851 = vadd.f32 %v2657, %v2747
    %v2852 = vadd.f32 %v2658, %v2834
    %v2853 = vadd.f32 %v2659, %v2836
    %v2854 = vxor.u32 %v2838, 2147483648
    %v2855 = vxor.u32 %v2839, 2147483648
    %v2856 = vxor.u32 %v2840, 2147483648
    %v2857 = vxor.u32 %v2842, 2147483648
    %v2858 = vxor.u32 %v2843, 2147483648
    %v2859 = vxor.u32 %v2844, 2147483648
    %v2860 = vxor.u32 %v2846, 2147483648
    %v2861 = vxor.u32 %v2847, 2147483648
    %v2862 = vxor.u32 %v2848, 2147483648
    %v2863 = vxor.u32 %v2850, 2147483648
    %v2864 = vxor.u32 %v2851, 2147483648
    %v2865 = vxor.u32 %v2852, 2147483648
    %v2866 = vmul.f32 %v2854, 1.442695
    %v2867 = vpow.pop %v2866
    %v2868 = vmul.f32 %v2855, 1.442695
    %v2869 = vpow.pop %v2868
    %v2870 = vmul.f32 %v2856, 1.442695
    %v2871 = vpow.pop %v2870
    %v2872 = vmul.f32 %v2857, 1.442695
    %v2873 = vpow.pop %v2872
    %v2874 = vmul.f32 %v2858, 1.442695
    %v2875 = vpow.pop %v2874
    %v2876 = vmul.f32 %v2859, 1.442695
    %v2877 = vpow.pop %v2876
    %v2878 = vmul.f32 %v2860, 1.442695
    %v2879 = vpow.pop %v2878
    %v2880 = vmul.f32 %v2861, 1.442695
    %v2881 = vpow.pop %v2880
    %v2882 = vmul.f32 %v2862, 1.442695
    %v2883 = vpow.pop %v2882
    %v2884 = vmul.f32 %v2863, 1.442695
    %v2885 = vpow.pop %v2884
    %v2886 = vmul.f32 %v2864, 1.442695
    %v2887 = vpow.pop %v2886
    %v2888 = vmul.f32 %v2865, 1.442695
    %v2889 = vpow.pop %v2888
    %v2890 = vadd.f32 %v2867, 1.0
    %v2891 = vadd.f32 %v2869, 1.0
    %v2892 = vadd.f32 %v2871, 1.0
    %v2893 = vadd.f32 %v2873, 1.0
    %v2894 = vadd.f32 %v2875, 1.0
    %v2895 = vadd.f32 %v2877, 1.0
    %v2896 = vadd.f32 %v2879, 1.0
    %v2897 = vadd.f32 %v2881, 1.0
    %v2898 = vadd.f32 %v2883, 1.0
    %v2899 = vadd.f32 %v2885, 1.0
    %v2900 = vadd.f32 %v2887, 1.0
    %v2901 = vadd.f32 %v2889, 1.0
    %v2902 = vrcp.pop %v2890
    %v2903 = vmul.f32 1.0, %v2902
    %v2904 = vrcp.pop %v2891
    %v2905 = vmul.f32 1.0, %v2904
    %v2906 = vrcp.pop %v2892
    %v2907 = vmul.f32 1.0, %v2906
    %v2908 = vrcp.pop %v2893
    %v2909 = vmul.f32 1.0, %v2908
    %v2910 = vrcp.pop %v2894
    %v2911 = vmul.f32 1.0, %v2910
    %v2912 = vrcp.pop %v2895
    %v2913 = vmul.f32 1.0, %v2912
    %v2914 = vrcp.pop %v2896
    %v2915 = vmul.f32 1.0, %v2914
    %v2916 = vrcp.pop %v2897
    %v2917 = vmul.f32 1.0, %v2916
    %v2918 = vrcp.pop %v2898
    %v2919 = vmul.f32 1.0, %v2918
    %v2920 = vrcp.pop %v2899
    %v2921 = vmul.f32 1.0, %v2920
    %v2922 = vrcp.pop %v2900
    %v2923 = vmul.f32 1.0, %v2922
    %v2924 = vrcp.pop %v2901
    %v2925 = vmul.f32 1.0, %v2924
    %v2926 = vtanh.pop %v2841
    %v2927 = vtanh.pop %v2845
    %v2928 = vtanh.pop %v2849
    %v2929 = vtanh.pop %v2853
    %v2930 = vmul.f32 %v2905, %v2357
    %v2931 = vmul.f32 %v2911, %v2358
    %v2932 = vmul.f32 %v2917, %v2359
    %v2933 = vmul.f32 %v2923, %v2360
    %v2934 = vmul.f32 %v2903, %v2926
    %v2935 = vmul.f32 %v2909, %v2927
    %v2936 = vmul.f32 %v2915, %v2928
    %v2937 = vmul.f32 %v2921, %v2929
    %v2938 = vadd.f32 %v2930, %v2934
    %v2939 = vadd.f32 %v2931, %v2935
    %v2940 = vadd.f32 %v2932, %v2936
    %v2941 = vadd.f32 %v2933, %v2937
    %v2942 = vtanh.pop %v2938
    %v2943 = vtanh.pop %v2939
    %v2944 = vtanh.pop %v2940
    %v2945 = vtanh.pop %v2941
    %v2946 = vmul.f32 %v2907, %v2942
    %v2947 = vmul.f32 %v2913, %v2943
    %v2948 = vmul.f32 %v2919, %v2944
    %v2949 = vmul.f32 %v2925, %v2945
    %2950 = vmatprep.subr.mxu0 %v483
    %2951 = vmatpush1.msra.mxu0 %v482
    %2952 = vmatprep.subr.mxu0 %v487
    %2953 = vmatpush1.msra.mxu0 %v486
    %2954 = vmatprep.subr.mxu0 %v491
    %2955 = vmatpush1.msra.mxu0 %v490
    %2956 = vmatprep.subr.mxu0 %v495
    %2957 = vmatpush1.msra.mxu0 %v494
    %2958 = vmatprep.subr.mxu0 %v499
    %2959 = vmatpush1.msra.mxu0 %v498
    %2960 = vmatprep.subr.mxu0 %v503
    %2961 = vmatpush1.msra.mxu0 %v502
    %2962 = vmatprep.subr.mxu0 %v507
    %2963 = vmatpush1.msra.mxu0 %v506
    %2964 = vmatprep.subr.mxu0 %v511
    %2965 = vmatpush1.msra.mxu0 %v510
    %2966 = vmatprep.subr.mxu0 %v515
    %2967 = vmatpush1.msra.mxu0 %v514
    %2968 = vmatprep.subr.mxu0 %v519
    %2969 = vmatpush1.msra.mxu0 %v518
    %2970 = vmatprep.subr.mxu0 %v523
    %2971 = vmatpush1.msra.mxu0 %v522
    %2972 = vmatprep.subr.mxu0 %v527
    %2973 = vmatpush1.msra.mxu0 %v526
    %2974 = vmatprep.subr.mxu0 %v531
    %2975 = vmatpush1.msra.mxu0 %v530
    %2976 = vmatprep.subr.mxu0 %v535
    %2977 = vmatpush1.msra.mxu0 %v534
    %2978 = vmatprep.subr.mxu0 %v539
    %2979 = vmatpush1.msra.mxu0 %v538
    %2980 = vmatprep.subr.mxu0 %v543
    %2981 = vmatpush1.msra.mxu0 %v542
    %2982 = vmatprep.subr.mxu0 %v547
    %2983 = vmatpush1.msra.mxu0 %v546
    %2984 = vmatprep.subr.mxu0 %v551
    %2985 = vmatpush1.msra.mxu0 %v550
    %2986 = vmatprep.subr.mxu0 %v555
    %2987 = vmatpush1.msra.mxu0 %v554
    %2988 = vmatprep.subr.mxu0 %v559
    %2989 = vmatpush1.msra.mxu0 %v558
    %2990 = vmatprep.subr.mxu0 %v563
    %2991 = vmatpush1.msra.mxu0 %v562
    %2992 = vmatprep.subr.mxu0 %v567
    %2993 = vmatpush1.msra.mxu0 %v566
    %2994 = vmatprep.subr.mxu0 %v571
    %2995 = vmatpush1.msra.mxu0 %v570
    %2996 = vmatprep.subr.mxu0 %v575
    %2997 = vmatpush1.msra.mxu0 %v574
    %2998 = vmatprep.subr.mxu0 %v579
    %2999 = vmatpush1.msra.mxu0 %v578
    %3000 = vmatprep.subr.mxu0 %v583
    %3001 = vmatpush1.msra.mxu0 %v582
    %3002 = vmatprep.subr.mxu0 %v587
    %3003 = vmatpush1.msra.mxu0 %v586
    %3004 = vmatprep.subr.mxu0 %v591
    %3005 = vmatpush1.msra.mxu0 %v590
    %3006 = vmatprep.subr.mxu0 %v595
    %3007 = vmatpush1.msra.mxu0 %v594
    %3008 = vmatprep.subr.mxu0 %v599
    %3009 = vmatpush1.msra.mxu0 %v598
    %3010 = vmatprep.subr.mxu0 %v603
    %3011 = vmatpush1.msra.mxu0 %v602
    %3012 = vmatprep.subr.mxu0 %v607
    %3013 = vmatpush1.msra.mxu0 %v606
    %3014 = vmatprep.mubr.f32.mxu0 %v2639
    %3015 = vmatmul.mubr.f32.gmra.mrb[0].mxu0 %v2946
    %v3016 = vpop.f32.mrb[0].mxu0
    %v3017 = vadd.f32 %v610, %v3016
    %v3018 = vpop.f32.mrb[0].mxu0
    %v3019 = vadd.f32 %v611, %v3018
    %3020 = vmatprep.mubr.f32.mxu0 %v2640
    %3021 = vmatmul.mubr.f32.gmra.mrb[0].mxu0 %v2947
    %v3022 = vpop.f32.mrb[0].mxu0
    %v3023 = vadd.f32 %v614, %v3022
    %v3024 = vpop.f32.mrb[0].mxu0
    %v3025 = vadd.f32 %v615, %v3024
    %3026 = vmatprep.mubr.f32.mxu0 %v2641
    %3027 = vmatmul.mubr.f32.gmra.mrb[0].mxu0 %v2948
    %v3028 = vpop.f32.mrb[0].mxu0
    %v3029 = vadd.f32 %v618, %v3028
    %v3030 = vpop.f32.mrb[0].mxu0
    %v3031 = vadd.f32 %v619, %v3030
    %3032 = vmatprep.mubr.f32.mxu0 %v2642
    %3033 = vmatmul.mubr.f32.gmra.mrb[0].mxu0 %v2949
    %v3034 = vpop.f32.mrb[0].mxu0
    %v3035 = vadd.f32 %v622, %v3034
    %v3036 = vpop.f32.mrb[0].mxu0
    %v3037 = vadd.f32 %v623, %v3036
    %3038 = vdwg.mxu0
    %3039 = vmatprep.subr.mxu0 %v485
    %3040 = vmatpush1.msra.mxu0 %v484
    %3041 = vmatprep.subr.mxu0 %v489
    %3042 = vmatpush1.msra.mxu0 %v488
    %3043 = vmatprep.subr.mxu0 %v493
    %3044 = vmatpush1.msra.mxu0 %v492
    %3045 = vmatprep.subr.mxu0 %v497
    %3046 = vmatpush1.msra.mxu0 %v496
    %3047 = vmatprep.subr.mxu0 %v501
    %3048 = vmatpush1.msra.mxu0 %v500
    %3049 = vmatprep.subr.mxu0 %v505
    %3050 = vmatpush1.msra.mxu0 %v504
    %3051 = vmatprep.subr.mxu0 %v509
    %3052 = vmatpush1.msra.mxu0 %v508
    %3053 = vmatprep.subr.mxu0 %v513
    %3054 = vmatpush1.msra.mxu0 %v512
    %3055 = vmatprep.subr.mxu0 %v517
    %3056 = vmatpush1.msra.mxu0 %v516
    %3057 = vmatprep.subr.mxu0 %v521
    %3058 = vmatpush1.msra.mxu0 %v520
    %3059 = vmatprep.subr.mxu0 %v525
    %3060 = vmatpush1.msra.mxu0 %v524
    %3061 = vmatprep.subr.mxu0 %v529
    %3062 = vmatpush1.msra.mxu0 %v528
    %3063 = vmatprep.subr.mxu0 %v533
    %3064 = vmatpush1.msra.mxu0 %v532
    %3065 = vmatprep.subr.mxu0 %v537
    %3066 = vmatpush1.msra.mxu0 %v536
    %3067 = vmatprep.subr.mxu0 %v541
    %3068 = vmatpush1.msra.mxu0 %v540
    %3069 = vmatprep.subr.mxu0 %v545
    %3070 = vmatpush1.msra.mxu0 %v544
    %3071 = vmatprep.subr.mxu0 %v549
    %3072 = vmatpush1.msra.mxu0 %v548
    %3073 = vmatprep.subr.mxu0 %v553
    %3074 = vmatpush1.msra.mxu0 %v552
    %3075 = vmatprep.subr.mxu0 %v557
    %3076 = vmatpush1.msra.mxu0 %v556
    %3077 = vmatprep.subr.mxu0 %v561
    %3078 = vmatpush1.msra.mxu0 %v560
    %3079 = vmatprep.subr.mxu0 %v565
    %3080 = vmatpush1.msra.mxu0 %v564
    %3081 = vmatprep.subr.mxu0 %v569
    %3082 = vmatpush1.msra.mxu0 %v568
    %3083 = vmatprep.subr.mxu0 %v573
    %3084 = vmatpush1.msra.mxu0 %v572
    %3085 = vmatprep.subr.mxu0 %v577
    %3086 = vmatpush1.msra.mxu0 %v576
    %3087 = vmatprep.subr.mxu0 %v581
    %3088 = vmatpush1.msra.mxu0 %v580
    %3089 = vmatprep.subr.mxu0 %v585
    %3090 = vmatpush1.msra.mxu0 %v584
    %3091 = vmatprep.subr.mxu0 %v589
    %3092 = vmatpush1.msra.mxu0 %v588
    %3093 = vmatprep.subr.mxu0 %v593
    %3094 = vmatpush1.msra.mxu0 %v592
    %3095 = vmatprep.subr.mxu0 %v597
    %3096 = vmatpush1.msra.mxu0 %v596
    %3097 = vmatprep.subr.mxu0 %v601
    %3098 = vmatpush1.msra.mxu0 %v600
    %3099 = vmatprep.subr.mxu0 %v605
    %3100 = vmatpush1.msra.mxu0 %v604
    %3101 = vmatprep.subr.mxu0 %v609
    %3102 = vmatpush1.msra.mxu0 %v608
    %3103 = vmatprep.mubr.f32.mxu0 %v2639
    %3104 = vmatmul.mubr.f32.gmra.mrb[0].mxu0 %v2946
    %v3105 = vpop.f32.mrb[0].mxu0
    %v3106 = vadd.f32 %v612, %v3105
    %v3107 = vpop.f32.mrb[0].mxu0
    %v3108 = vadd.f32 %v613, %v3107
    %3109 = vmatprep.mubr.f32.mxu0 %v2640
    %3110 = vmatmul.mubr.f32.gmra.mrb[0].mxu0 %v2947
    %v3111 = vpop.f32.mrb[0].mxu0
    %v3112 = vadd.f32 %v616, %v3111
    %v3113 = vpop.f32.mrb[0].mxu0
    %v3114 = vadd.f32 %v617, %v3113
    %3115 = vmatprep.mubr.f32.mxu0 %v2641
    %3116 = vmatmul.mubr.f32.gmra.mrb[0].mxu0 %v2948
    %v3117 = vpop.f32.mrb[0].mxu0
    %v3118 = vadd.f32 %v620, %v3117
    %v3119 = vpop.f32.mrb[0].mxu0
    %v3120 = vadd.f32 %v621, %v3119
    %3121 = vmatprep.mubr.f32.mxu0 %v2642
    %3122 = vmatmul.mubr.f32.gmra.mrb[0].mxu0 %v2949
    %v3123 = vpop.f32.mrb[0].mxu0
    %v3124 = vadd.f32 %v624, %v3123
    %v3125 = vpop.f32.mrb[0].mxu0
    %v3126 = vadd.f32 %v625, %v3125
    %3127 = vdwg.mxu0
    %v3128 = vxor.u32 %v3017, 2147483648
    %v3129 = vxor.u32 %v3019, 2147483648
    %v3130 = vxor.u32 %v3106, 2147483648
    %v3131 = vxor.u32 %v3023, 2147483648
    %v3132 = vxor.u32 %v3025, 2147483648
    %v3133 = vxor.u32 %v3112, 2147483648
    %v3134 = vxor.u32 %v3029, 2147483648
    %v3135 = vxor.u32 %v3031, 2147483648
    %v3136 = vxor.u32 %v3118, 2147483648
    %v3137 = vxor.u32 %v3035, 2147483648
    %v3138 = vxor.u32 %v3037, 2147483648
    %v3139 = vxor.u32 %v3124, 2147483648
    %v3140 = vmul.f32 %v3128, 1.442695
    %v3141 = vpow.pop %v3140
    %v3142 = vmul.f32 %v3129, 1.442695
    %v3143 = vpow.pop %v3142
    %v3144 = vmul.f32 %v3130, 1.442695
    %v3145 = vpow.pop %v3144
    %v3146 = vmul.f32 %v3131, 1.442695
    %v3147 = vpow.pop %v3146
    %v3148 = vmul.f32 %v3132, 1.442695
    %v3149 = vpow.pop %v3148
    %v3150 = vmul.f32 %v3133, 1.442695
    %v3151 = vpow.pop %v3150
    %v3152 = vmul.f32 %v3134, 1.442695
    %v3153 = vpow.pop %v3152
    %v3154 = vmul.f32 %v3135, 1.442695
    %v3155 = vpow.pop %v3154
    %v3156 = vmul.f32 %v3136, 1.442695
    %v3157 = vpow.pop %v3156
    %v3158 = vmul.f32 %v3137, 1.442695
    %v3159 = vpow.pop %v3158
    %v3160 = vmul.f32 %v3138, 1.442695
    %v3161 = vpow.pop %v3160
    %v3162 = vmul.f32 %v3139, 1.442695
    %v3163 = vpow.pop %v3162
    %v3164 = vadd.f32 %v3141, 1.0
    %v3165 = vadd.f32 %v3143, 1.0
    %v3166 = vadd.f32 %v3145, 1.0
    %v3167 = vadd.f32 %v3147, 1.0
    %v3168 = vadd.f32 %v3149, 1.0
    %v3169 = vadd.f32 %v3151, 1.0
    %v3170 = vadd.f32 %v3153, 1.0
    %v3171 = vadd.f32 %v3155, 1.0
    %v3172 = vadd.f32 %v3157, 1.0
    %v3173 = vadd.f32 %v3159, 1.0
    %v3174 = vadd.f32 %v3161, 1.0
    %v3175 = vadd.f32 %v3163, 1.0
    %v3176 = vrcp.pop %v3164
    %v3177 = vmul.f32 1.0, %v3176
    %v3178 = vrcp.pop %v3165
    %v3179 = vmul.f32 1.0, %v3178
    %v3180 = vrcp.pop %v3166
    %v3181 = vmul.f32 1.0, %v3180
    %v3182 = vrcp.pop %v3167
    %v3183 = vmul.f32 1.0, %v3182
    %v3184 = vrcp.pop %v3168
    %v3185 = vmul.f32 1.0, %v3184
    %v3186 = vrcp.pop %v3169
    %v3187 = vmul.f32 1.0, %v3186
    %v3188 = vrcp.pop %v3170
    %v3189 = vmul.f32 1.0, %v3188
    %v3190 = vrcp.pop %v3171
    %v3191 = vmul.f32 1.0, %v3190
    %v3192 = vrcp.pop %v3172
    %v3193 = vmul.f32 1.0, %v3192
    %v3194 = vrcp.pop %v3173
    %v3195 = vmul.f32 1.0, %v3194
    %v3196 = vrcp.pop %v3174
    %v3197 = vmul.f32 1.0, %v3196
    %v3198 = vrcp.pop %v3175
    %v3199 = vmul.f32 1.0, %v3198
    %v3200 = vtanh.pop %v3108
    %v3201 = vtanh.pop %v3114
    %v3202 = vtanh.pop %v3120
    %v3203 = vtanh.pop %v3126
    %v3204 = vmul.f32 %v3179, %v2631
    %v3205 = vmul.f32 %v3185, %v2632
    %v3206 = vmul.f32 %v3191, %v2633
    %v3207 = vmul.f32 %v3197, %v2634
    %v3208 = vmul.f32 %v3177, %v3200
    %v3209 = vmul.f32 %v3183, %v3201
    %v3210 = vmul.f32 %v3189, %v3202
    %v3211 = vmul.f32 %v3195, %v3203
    %v3212 = vadd.f32 %v3204, %v3208
    %v3213 = vadd.f32 %v3205, %v3209
    %v3214 = vadd.f32 %v3206, %v3210
    %v3215 = vadd.f32 %v3207, %v3211
    %v3216 = vtanh.pop %v3212
    %v3217 = vtanh.pop %v3213
    %v3218 = vtanh.pop %v3214
    %v3219 = vtanh.pop %v3215
    %v3220 = vmul.f32 %v3181, %v3216
    %v3221 = vmul.f32 %v3187, %v3217
    %v3222 = vmul.f32 %v3193, %v3218
    %v3223 = vmul.f32 %v3199, %v3219
    %s3224 = scalar_lea.vmem [#allocation2], 640
    %v3225 = vld [vmem:[%s3224] sm:$0xff]
    %v3226 = vld [vmem:[%s3224 + $0x8] sm:$0xff]
    %v3227 = vld [vmem:[%s3224 + $0x10] sm:$0xff]
    %v3228 = vld [vmem:[%s3224 + $0x18] sm:$0xff]
    %v3229 = vld [vmem:[%s3224 + $0x20] sm:$0xff]
    %v3230 = vld [vmem:[%s3224 + $0x28] sm:$0xff]
    %v3231 = vld [vmem:[%s3224 + $0x30] sm:$0xff]
    %v3232 = vld [vmem:[%s3224 + $0x38] sm:$0xff]
    %v3233 = vld [vmem:[%s3224 + $0x40] sm:$0xff]
    %v3234 = vld [vmem:[%s3224 + $0x48] sm:$0xff]
    %v3235 = vld [vmem:[%s3224 + $0x50] sm:$0xff]
    %v3236 = vld [vmem:[%s3224 + $0x58] sm:$0xff]
    %v3237 = vld [vmem:[%s3224 + $0x60] sm:$0xff]
    %v3238 = vld [vmem:[%s3224 + $0x68] sm:$0xff]
    %v3239 = vld [vmem:[%s3224 + $0x70] sm:$0xff]
    %v3240 = vld [vmem:[%s3224 + $0x78] sm:$0xff]
    %3241 = vmatprep.subr.mxu0 %v129
    %3242 = vmatpush1.msra.mxu0 %v128
    %3243 = vmatprep.subr.mxu0 %v133
    %3244 = vmatpush1.msra.mxu0 %v132
    %3245 = vmatprep.subr.mxu0 %v137
    %3246 = vmatpush1.msra.mxu0 %v136
    %3247 = vmatprep.subr.mxu0 %v141
    %3248 = vmatpush1.msra.mxu0 %v140
    %3249 = vmatprep.subr.mxu0 %v145
    %3250 = vmatpush1.msra.mxu0 %v144
    %3251 = vmatprep.subr.mxu0 %v149
    %3252 = vmatpush1.msra.mxu0 %v148
    %3253 = vmatprep.subr.mxu0 %v153
    %3254 = vmatpush1.msra.mxu0 %v152
    %3255 = vmatprep.subr.mxu0 %v157
    %3256 = vmatpush1.msra.mxu0 %v156
    %3257 = vmatprep.subr.mxu0 %v161
    %3258 = vmatpush1.msra.mxu0 %v160
    %3259 = vmatprep.subr.mxu0 %v165
    %3260 = vmatpush1.msra.mxu0 %v164
    %3261 = vmatprep.subr.mxu0 %v169
    %3262 = vmatpush1.msra.mxu0 %v168
    %3263 = vmatprep.subr.mxu0 %v173
    %3264 = vmatpush1.msra.mxu0 %v172
    %3265 = vmatprep.subr.mxu0 %v177
    %3266 = vmatpush1.msra.mxu0 %v176
    %3267 = vmatprep.subr.mxu0 %v181
    %3268 = vmatpush1.msra.mxu0 %v180
    %3269 = vmatprep.subr.mxu0 %v185
    %3270 = vmatpush1.msra.mxu0 %v184
    %3271 = vmatprep.subr.mxu0 %v189
    %3272 = vmatpush1.msra.mxu0 %v188
    %3273 = vmatprep.subr.mxu0 0.0
    %3274 = vmatpush1.msra.mxu0 0.0
    %3275 = vmatprep.subr.mxu0 0.0
    %3276 = vmatpush1.msra.mxu0 0.0
    %3277 = vmatprep.subr.mxu0 0.0
    %3278 = vmatpush1.msra.mxu0 0.0
    %3279 = vmatprep.subr.mxu0 0.0
    %3280 = vmatpush1.msra.mxu0 0.0
    %3281 = vmatprep.subr.mxu0 0.0
    %3282 = vmatpush1.msra.mxu0 0.0
    %3283 = vmatprep.subr.mxu0 0.0
    %3284 = vmatpush1.msra.mxu0 0.0
    %3285 = vmatprep.subr.mxu0 0.0
    %3286 = vmatpush1.msra.mxu0 0.0
    %3287 = vmatprep.subr.mxu0 0.0
    %3288 = vmatpush1.msra.mxu0 0.0
    %3289 = vmatprep.subr.mxu0 0.0
    %3290 = vmatpush1.msra.mxu0 0.0
    %3291 = vmatprep.subr.mxu0 0.0
    %3292 = vmatpush1.msra.mxu0 0.0
    %3293 = vmatprep.subr.mxu0 0.0
    %3294 = vmatpush1.msra.mxu0 0.0
    %3295 = vmatprep.subr.mxu0 0.0
    %3296 = vmatpush1.msra.mxu0 0.0
    %3297 = vmatprep.subr.mxu0 0.0
    %3298 = vmatpush1.msra.mxu0 0.0
    %3299 = vmatprep.subr.mxu0 0.0
    %3300 = vmatpush1.msra.mxu0 0.0
    %3301 = vmatprep.subr.mxu0 0.0
    %3302 = vmatpush1.msra.mxu0 0.0
    %3303 = vmatprep.subr.mxu0 0.0
    %3304 = vmatpush1.msra.mxu0 0.0
    %3305 = vmatprep.mubr.f32.mxu0 0.0
    %3306 = vmatmul.mubr.f32.gmra.mrb[0].mxu0 %v2946
    %v3307 = vpop.f32.mrb[0].mxu0
    %v3308 = vadd.f32 0.0, %v3307
    %v3309 = vpop.f32.mrb[0].mxu0
    %v3310 = vadd.f32 0.0, %v3309
    %3311 = vmatprep.mubr.f32.mxu0 0.0
    %3312 = vmatmul.mubr.f32.gmra.mrb[0].mxu0 %v2947
    %v3313 = vpop.f32.mrb[0].mxu0
    %v3314 = vadd.f32 0.0, %v3313
    %v3315 = vpop.f32.mrb[0].mxu0
    %v3316 = vadd.f32 0.0, %v3315
    %3317 = vmatprep.mubr.f32.mxu0 0.0
    %3318 = vmatmul.mubr.f32.gmra.mrb[0].mxu0 %v2948
    %v3319 = vpop.f32.mrb[0].mxu0
    %v3320 = vadd.f32 0.0, %v3319
    %v3321 = vpop.f32.mrb[0].mxu0
    %v3322 = vadd.f32 0.0, %v3321
    %3323 = vmatprep.mubr.f32.mxu0 0.0
    %3324 = vmatmul.mubr.f32.gmra.mrb[0].mxu0 %v2949
    %v3325 = vpop.f32.mrb[0].mxu0
    %v3326 = vadd.f32 0.0, %v3325
    %v3327 = vpop.f32.mrb[0].mxu0
    %v3328 = vadd.f32 0.0, %v3327
    %3329 = vdwg.mxu0
    %3330 = vmatprep.subr.mxu0 %v131
    %3331 = vmatpush1.msra.mxu0 %v130
    %3332 = vmatprep.subr.mxu0 %v135
    %3333 = vmatpush1.msra.mxu0 %v134
    %3334 = vmatprep.subr.mxu0 %v139
    %3335 = vmatpush1.msra.mxu0 %v138
    %3336 = vmatprep.subr.mxu0 %v143
    %3337 = vmatpush1.msra.mxu0 %v142
    %3338 = vmatprep.subr.mxu0 %v147
    %3339 = vmatpush1.msra.mxu0 %v146
    %3340 = vmatprep.subr.mxu0 %v151
    %3341 = vmatpush1.msra.mxu0 %v150
    %3342 = vmatprep.subr.mxu0 %v155
    %3343 = vmatpush1.msra.mxu0 %v154
    %3344 = vmatprep.subr.mxu0 %v159
    %3345 = vmatpush1.msra.mxu0 %v158
    %3346 = vmatprep.subr.mxu0 %v163
    %3347 = vmatpush1.msra.mxu0 %v162
    %3348 = vmatprep.subr.mxu0 %v167
    %3349 = vmatpush1.msra.mxu0 %v166
    %3350 = vmatprep.subr.mxu0 %v171
    %3351 = vmatpush1.msra.mxu0 %v170
    %3352 = vmatprep.subr.mxu0 %v175
    %3353 = vmatpush1.msra.mxu0 %v174
    %3354 = vmatprep.subr.mxu0 %v179
    %3355 = vmatpush1.msra.mxu0 %v178
    %3356 = vmatprep.subr.mxu0 %v183
    %3357 = vmatpush1.msra.mxu0 %v182
    %3358 = vmatprep.subr.mxu0 %v187
    %3359 = vmatpush1.msra.mxu0 %v186
    %3360 = vmatprep.subr.mxu0 %v191
    %3361 = vmatpush1.msra.mxu0 %v190
    %3362 = vmatprep.subr.mxu0 0.0
    %3363 = vmatpush1.msra.mxu0 0.0
    %3364 = vmatprep.subr.mxu0 0.0
    %3365 = vmatpush1.msra.mxu0 0.0
    %3366 = vmatprep.subr.mxu0 0.0
    %3367 = vmatpush1.msra.mxu0 0.0
    %3368 = vmatprep.subr.mxu0 0.0
    %3369 = vmatpush1.msra.mxu0 0.0
    %3370 = vmatprep.subr.mxu0 0.0
    %3371 = vmatpush1.msra.mxu0 0.0
    %3372 = vmatprep.subr.mxu0 0.0
    %3373 = vmatpush1.msra.mxu0 0.0
    %3374 = vmatprep.subr.mxu0 0.0
    %3375 = vmatpush1.msra.mxu0 0.0
    %3376 = vmatprep.subr.mxu0 0.0
    %3377 = vmatpush1.msra.mxu0 0.0
    %3378 = vmatprep.subr.mxu0 0.0
    %3379 = vmatpush1.msra.mxu0 0.0
    %3380 = vmatprep.subr.mxu0 0.0
    %3381 = vmatpush1.msra.mxu0 0.0
    %3382 = vmatprep.subr.mxu0 0.0
    %3383 = vmatpush1.msra.mxu0 0.0
    %3384 = vmatprep.subr.mxu0 0.0
    %3385 = vmatpush1.msra.mxu0 0.0
    %3386 = vmatprep.subr.mxu0 0.0
    %3387 = vmatpush1.msra.mxu0 0.0
    %3388 = vmatprep.subr.mxu0 0.0
    %3389 = vmatpush1.msra.mxu0 0.0
    %3390 = vmatprep.subr.mxu0 0.0
    %3391 = vmatpush1.msra.mxu0 0.0
    %3392 = vmatprep.subr.mxu0 0.0
    %3393 = vmatpush1.msra.mxu0 0.0
    %3394 = vmatprep.mubr.f32.mxu0 0.0
    %3395 = vmatmul.mubr.f32.gmra.mrb[0].mxu0 %v2946
    %v3396 = vpop.f32.mrb[0].mxu0
    %v3397 = vadd.f32 0.0, %v3396
    %v3398 = vpop.f32.mrb[0].mxu0
    %v3399 = vadd.f32 0.0, %v3398
    %3400 = vmatprep.mubr.f32.mxu0 0.0
    %3401 = vmatmul.mubr.f32.gmra.mrb[0].mxu0 %v2947
    %v3402 = vpop.f32.mrb[0].mxu0
    %v3403 = vadd.f32 0.0, %v3402
    %v3404 = vpop.f32.mrb[0].mxu0
    %v3405 = vadd.f32 0.0, %v3404
    %3406 = vmatprep.mubr.f32.mxu0 0.0
    %3407 = vmatmul.mubr.f32.gmra.mrb[0].mxu0 %v2948
    %v3408 = vpop.f32.mrb[0].mxu0
    %v3409 = vadd.f32 0.0, %v3408
    %v3410 = vpop.f32.mrb[0].mxu0
    %v3411 = vadd.f32 0.0, %v3410
    %3412 = vmatprep.mubr.f32.mxu0 0.0
    %3413 = vmatmul.mubr.f32.gmra.mrb[0].mxu0 %v2949
    %v3414 = vpop.f32.mrb[0].mxu0
    %v3415 = vadd.f32 0.0, %v3414
    %v3416 = vpop.f32.mrb[0].mxu0
    %v3417 = vadd.f32 0.0, %v3416
    %3418 = vdwg.mxu0
    %v3419 = vadd.f32 %v3225, %v3308
    %v3420 = vadd.f32 %v3226, %v3310
    %v3421 = vadd.f32 %v3227, %v3397
    %v3422 = vadd.f32 %v3228, %v3399
    %v3423 = vadd.f32 %v3229, %v3314
    %v3424 = vadd.f32 %v3230, %v3316
    %v3425 = vadd.f32 %v3231, %v3403
    %v3426 = vadd.f32 %v3232, %v3405
    %v3427 = vadd.f32 %v3233, %v3320
    %v3428 = vadd.f32 %v3234, %v3322
    %v3429 = vadd.f32 %v3235, %v3409
    %v3430 = vadd.f32 %v3236, %v3411
    %v3431 = vadd.f32 %v3237, %v3326
    %v3432 = vadd.f32 %v3238, %v3328
    %v3433 = vadd.f32 %v3239, %v3415
    %v3434 = vadd.f32 %v3240, %v3417
    %v3435 = vxor.u32 %v3419, 2147483648
    %v3436 = vxor.u32 %v3420, 2147483648
    %v3437 = vxor.u32 %v3421, 2147483648
    %v3438 = vxor.u32 %v3423, 2147483648
    %v3439 = vxor.u32 %v3424, 2147483648
    %v3440 = vxor.u32 %v3425, 2147483648
    %v3441 = vxor.u32 %v3427, 2147483648
    %v3442 = vxor.u32 %v3428, 2147483648
    %v3443 = vxor.u32 %v3429, 2147483648
    %v3444 = vxor.u32 %v3431, 2147483648
    %v3445 = vxor.u32 %v3432, 2147483648
    %v3446 = vxor.u32 %v3433, 2147483648
    %v3447 = vmul.f32 %v3435, 1.442695
    %v3448 = vpow.pop %v3447
    %v3449 = vmul.f32 %v3436, 1.442695
    %v3450 = vpow.pop %v3449
    %v3451 = vmul.f32 %v3437, 1.442695
    %v3452 = vpow.pop %v3451
    %v3453 = vmul.f32 %v3438, 1.442695
    %v3454 = vpow.pop %v3453
    %v3455 = vmul.f32 %v3439, 1.442695
    %v3456 = vpow.pop %v3455
    %v3457 = vmul.f32 %v3440, 1.442695
    %v3458 = vpow.pop %v3457
    %v3459 = vmul.f32 %v3441, 1.442695
    %v3460 = vpow.pop %v3459
    %v3461 = vmul.f32 %v3442, 1.442695
    %v3462 = vpow.pop %v3461
    %v3463 = vmul.f32 %v3443, 1.442695
    %v3464 = vpow.pop %v3463
    %v3465 = vmul.f32 %v3444, 1.442695
    %v3466 = vpow.pop %v3465
    %v3467 = vmul.f32 %v3445, 1.442695
    %v3468 = vpow.pop %v3467
    %v3469 = vmul.f32 %v3446, 1.442695
    %v3470 = vpow.pop %v3469
    %v3471 = vadd.f32 %v3448, 1.0
    %v3472 = vadd.f32 %v3450, 1.0
    %v3473 = vadd.f32 %v3452, 1.0
    %v3474 = vadd.f32 %v3454, 1.0
    %v3475 = vadd.f32 %v3456, 1.0
    %v3476 = vadd.f32 %v3458, 1.0
    %v3477 = vadd.f32 %v3460, 1.0
    %v3478 = vadd.f32 %v3462, 1.0
    %v3479 = vadd.f32 %v3464, 1.0
    %v3480 = vadd.f32 %v3466, 1.0
    %v3481 = vadd.f32 %v3468, 1.0
    %v3482 = vadd.f32 %v3470, 1.0
    %v3483 = vrcp.pop %v3471
    %v3484 = vmul.f32 1.0, %v3483
    %v3485 = vrcp.pop %v3472
    %v3486 = vmul.f32 1.0, %v3485
    %v3487 = vrcp.pop %v3473
    %v3488 = vmul.f32 1.0, %v3487
    %v3489 = vrcp.pop %v3474
    %v3490 = vmul.f32 1.0, %v3489
    %v3491 = vrcp.pop %v3475
    %v3492 = vmul.f32 1.0, %v3491
    %v3493 = vrcp.pop %v3476
    %v3494 = vmul.f32 1.0, %v3493
    %v3495 = vrcp.pop %v3477
    %v3496 = vmul.f32 1.0, %v3495
    %v3497 = vrcp.pop %v3478
    %v3498 = vmul.f32 1.0, %v3497
    %v3499 = vrcp.pop %v3479
    %v3500 = vmul.f32 1.0, %v3499
    %v3501 = vrcp.pop %v3480
    %v3502 = vmul.f32 1.0, %v3501
    %v3503 = vrcp.pop %v3481
    %v3504 = vmul.f32 1.0, %v3503
    %v3505 = vrcp.pop %v3482
    %v3506 = vmul.f32 1.0, %v3505
    %v3507 = vtanh.pop %v3422
    %v3508 = vtanh.pop %v3426
    %v3509 = vtanh.pop %v3430
    %v3510 = vtanh.pop %v3434
    %v3511 = vmul.f32 %v3486, %v2938
    %v3512 = vmul.f32 %v3492, %v2939
    %v3513 = vmul.f32 %v3498, %v2940
    %v3514 = vmul.f32 %v3504, %v2941
    %v3515 = vmul.f32 %v3484, %v3507
    %v3516 = vmul.f32 %v3490, %v3508
    %v3517 = vmul.f32 %v3496, %v3509
    %v3518 = vmul.f32 %v3502, %v3510
    %v3519 = vadd.f32 %v3511, %v3515
    %v3520 = vadd.f32 %v3512, %v3516
    %v3521 = vadd.f32 %v3513, %v3517
    %v3522 = vadd.f32 %v3514, %v3518
    %v3523 = vtanh.pop %v3519
    %v3524 = vtanh.pop %v3520
    %v3525 = vtanh.pop %v3521
    %v3526 = vtanh.pop %v3522
    %v3527 = vmul.f32 %v3488, %v3523
    %v3528 = vmul.f32 %v3494, %v3524
    %v3529 = vmul.f32 %v3500, %v3525
    %v3530 = vmul.f32 %v3506, %v3526
    %3531 = vmatprep.subr.mxu0 %v483
    %3532 = vmatpush1.msra.mxu0 %v482
    %3533 = vmatprep.subr.mxu0 %v487
    %3534 = vmatpush1.msra.mxu0 %v486
    %3535 = vmatprep.subr.mxu0 %v491
    %3536 = vmatpush1.msra.mxu0 %v490
    %3537 = vmatprep.subr.mxu0 %v495
    %3538 = vmatpush1.msra.mxu0 %v494
    %3539 = vmatprep.subr.mxu0 %v499
    %3540 = vmatpush1.msra.mxu0 %v498
    %3541 = vmatprep.subr.mxu0 %v503
    %3542 = vmatpush1.msra.mxu0 %v502
    %3543 = vmatprep.subr.mxu0 %v507
    %3544 = vmatpush1.msra.mxu0 %v506
    %3545 = vmatprep.subr.mxu0 %v511
    %3546 = vmatpush1.msra.mxu0 %v510
    %3547 = vmatprep.subr.mxu0 %v515
    %3548 = vmatpush1.msra.mxu0 %v514
    %3549 = vmatprep.subr.mxu0 %v519
    %3550 = vmatpush1.msra.mxu0 %v518
    %3551 = vmatprep.subr.mxu0 %v523
    %3552 = vmatpush1.msra.mxu0 %v522
    %3553 = vmatprep.subr.mxu0 %v527
    %3554 = vmatpush1.msra.mxu0 %v526
    %3555 = vmatprep.subr.mxu0 %v531
    %3556 = vmatpush1.msra.mxu0 %v530
    %3557 = vmatprep.subr.mxu0 %v535
    %3558 = vmatpush1.msra.mxu0 %v534
    %3559 = vmatprep.subr.mxu0 %v539
    %3560 = vmatpush1.msra.mxu0 %v538
    %3561 = vmatprep.subr.mxu0 %v543
    %3562 = vmatpush1.msra.mxu0 %v542
    %3563 = vmatprep.subr.mxu0 %v547
    %3564 = vmatpush1.msra.mxu0 %v546
    %3565 = vmatprep.subr.mxu0 %v551
    %3566 = vmatpush1.msra.mxu0 %v550
    %3567 = vmatprep.subr.mxu0 %v555
    %3568 = vmatpush1.msra.mxu0 %v554
    %3569 = vmatprep.subr.mxu0 %v559
    %3570 = vmatpush1.msra.mxu0 %v558
    %3571 = vmatprep.subr.mxu0 %v563
    %3572 = vmatpush1.msra.mxu0 %v562
    %3573 = vmatprep.subr.mxu0 %v567
    %3574 = vmatpush1.msra.mxu0 %v566
    %3575 = vmatprep.subr.mxu0 %v571
    %3576 = vmatpush1.msra.mxu0 %v570
    %3577 = vmatprep.subr.mxu0 %v575
    %3578 = vmatpush1.msra.mxu0 %v574
    %3579 = vmatprep.subr.mxu0 %v579
    %3580 = vmatpush1.msra.mxu0 %v578
    %3581 = vmatprep.subr.mxu0 %v583
    %3582 = vmatpush1.msra.mxu0 %v582
    %3583 = vmatprep.subr.mxu0 %v587
    %3584 = vmatpush1.msra.mxu0 %v586
    %3585 = vmatprep.subr.mxu0 %v591
    %3586 = vmatpush1.msra.mxu0 %v590
    %3587 = vmatprep.subr.mxu0 %v595
    %3588 = vmatpush1.msra.mxu0 %v594
    %3589 = vmatprep.subr.mxu0 %v599
    %3590 = vmatpush1.msra.mxu0 %v598
    %3591 = vmatprep.subr.mxu0 %v603
    %3592 = vmatpush1.msra.mxu0 %v602
    %3593 = vmatprep.subr.mxu0 %v607
    %3594 = vmatpush1.msra.mxu0 %v606
    %3595 = vmatprep.mubr.f32.mxu0 %v3220
    %3596 = vmatmul.mubr.f32.gmra.mrb[0].mxu0 %v3527
    %v3597 = vpop.f32.mrb[0].mxu0
    %v3598 = vadd.f32 %v610, %v3597
    %v3599 = vpop.f32.mrb[0].mxu0
    %v3600 = vadd.f32 %v611, %v3599
    %3601 = vmatprep.mubr.f32.mxu0 %v3221
    %3602 = vmatmul.mubr.f32.gmra.mrb[0].mxu0 %v3528
    %v3603 = vpop.f32.mrb[0].mxu0
    %v3604 = vadd.f32 %v614, %v3603
    %v3605 = vpop.f32.mrb[0].mxu0
    %v3606 = vadd.f32 %v615, %v3605
    %3607 = vmatprep.mubr.f32.mxu0 %v3222
    %3608 = vmatmul.mubr.f32.gmra.mrb[0].mxu0 %v3529
    %v3609 = vpop.f32.mrb[0].mxu0
    %v3610 = vadd.f32 %v618, %v3609
    %v3611 = vpop.f32.mrb[0].mxu0
    %v3612 = vadd.f32 %v619, %v3611
    %3613 = vmatprep.mubr.f32.mxu0 %v3223
    %3614 = vmatmul.mubr.f32.gmra.mrb[0].mxu0 %v3530
    %v3615 = vpop.f32.mrb[0].mxu0
    %v3616 = vadd.f32 %v622, %v3615
    %v3617 = vpop.f32.mrb[0].mxu0
    %v3618 = vadd.f32 %v623, %v3617
    %3619 = vdwg.mxu0
    %3620 = vmatprep.subr.mxu0 %v485
    %3621 = vmatpush1.msra.mxu0 %v484
    %3622 = vmatprep.subr.mxu0 %v489
    %3623 = vmatpush1.msra.mxu0 %v488
    %3624 = vmatprep.subr.mxu0 %v493
    %3625 = vmatpush1.msra.mxu0 %v492
    %3626 = vmatprep.subr.mxu0 %v497
    %3627 = vmatpush1.msra.mxu0 %v496
    %3628 = vmatprep.subr.mxu0 %v501
    %3629 = vmatpush1.msra.mxu0 %v500
    %3630 = vmatprep.subr.mxu0 %v505
    %3631 = vmatpush1.msra.mxu0 %v504
    %3632 = vmatprep.subr.mxu0 %v509
    %3633 = vmatpush1.msra.mxu0 %v508
    %3634 = vmatprep.subr.mxu0 %v513
    %3635 = vmatpush1.msra.mxu0 %v512
    %3636 = vmatprep.subr.mxu0 %v517
    %3637 = vmatpush1.msra.mxu0 %v516
    %3638 = vmatprep.subr.mxu0 %v521
    %3639 = vmatpush1.msra.mxu0 %v520
    %3640 = vmatprep.subr.mxu0 %v525
    %3641 = vmatpush1.msra.mxu0 %v524
    %3642 = vmatprep.subr.mxu0 %v529
    %3643 = vmatpush1.msra.mxu0 %v528
    %3644 = vmatprep.subr.mxu0 %v533
    %3645 = vmatpush1.msra.mxu0 %v532
    %3646 = vmatprep.subr.mxu0 %v537
    %3647 = vmatpush1.msra.mxu0 %v536
    %3648 = vmatprep.subr.mxu0 %v541
    %3649 = vmatpush1.msra.mxu0 %v540
    %3650 = vmatprep.subr.mxu0 %v545
    %3651 = vmatpush1.msra.mxu0 %v544
    %3652 = vmatprep.subr.mxu0 %v549
    %3653 = vmatpush1.msra.mxu0 %v548
    %3654 = vmatprep.subr.mxu0 %v553
    %3655 = vmatpush1.msra.mxu0 %v552
    %3656 = vmatprep.subr.mxu0 %v557
    %3657 = vmatpush1.msra.mxu0 %v556
    %3658 = vmatprep.subr.mxu0 %v561
    %3659 = vmatpush1.msra.mxu0 %v560
    %3660 = vmatprep.subr.mxu0 %v565
    %3661 = vmatpush1.msra.mxu0 %v564
    %3662 = vmatprep.subr.mxu0 %v569
    %3663 = vmatpush1.msra.mxu0 %v568
    %3664 = vmatprep.subr.mxu0 %v573
    %3665 = vmatpush1.msra.mxu0 %v572
    %3666 = vmatprep.subr.mxu0 %v577
    %3667 = vmatpush1.msra.mxu0 %v576
    %3668 = vmatprep.subr.mxu0 %v581
    %3669 = vmatpush1.msra.mxu0 %v580
    %3670 = vmatprep.subr.mxu0 %v585
    %3671 = vmatpush1.msra.mxu0 %v584
    %3672 = vmatprep.subr.mxu0 %v589
    %3673 = vmatpush1.msra.mxu0 %v588
    %3674 = vmatprep.subr.mxu0 %v593
    %3675 = vmatpush1.msra.mxu0 %v592
    %3676 = vmatprep.subr.mxu0 %v597
    %3677 = vmatpush1.msra.mxu0 %v596
    %3678 = vmatprep.subr.mxu0 %v601
    %3679 = vmatpush1.msra.mxu0 %v600
    %3680 = vmatprep.subr.mxu0 %v605
    %3681 = vmatpush1.msra.mxu0 %v604
    %3682 = vmatprep.subr.mxu0 %v609
    %3683 = vmatpush1.msra.mxu0 %v608
    %3684 = vmatprep.mubr.f32.mxu0 %v3220
    %3685 = vmatmul.mubr.f32.gmra.mrb[0].mxu0 %v3527
    %v3686 = vpop.f32.mrb[0].mxu0
    %v3687 = vadd.f32 %v612, %v3686
    %v3688 = vpop.f32.mrb[0].mxu0
    %v3689 = vadd.f32 %v613, %v3688
    %3690 = vmatprep.mubr.f32.mxu0 %v3221
    %3691 = vmatmul.mubr.f32.gmra.mrb[0].mxu0 %v3528
    %v3692 = vpop.f32.mrb[0].mxu0
    %v3693 = vadd.f32 %v616, %v3692
    %v3694 = vpop.f32.mrb[0].mxu0
    %v3695 = vadd.f32 %v617, %v3694
    %3696 = vmatprep.mubr.f32.mxu0 %v3222
    %3697 = vmatmul.mubr.f32.gmra.mrb[0].mxu0 %v3529
    %v3698 = vpop.f32.mrb[0].mxu0
    %v3699 = vadd.f32 %v620, %v3698
    %v3700 = vpop.f32.mrb[0].mxu0
    %v3701 = vadd.f32 %v621, %v3700
    %3702 = vmatprep.mubr.f32.mxu0 %v3223
    %3703 = vmatmul.mubr.f32.gmra.mrb[0].mxu0 %v3530
    %v3704 = vpop.f32.mrb[0].mxu0
    %v3705 = vadd.f32 %v624, %v3704
    %v3706 = vpop.f32.mrb[0].mxu0
    %v3707 = vadd.f32 %v625, %v3706
    %3708 = vdwg.mxu0
    %v3709 = vxor.u32 %v3598, 2147483648
    %v3710 = vxor.u32 %v3600, 2147483648
    %v3711 = vxor.u32 %v3687, 2147483648
    %v3712 = vxor.u32 %v3604, 2147483648
    %v3713 = vxor.u32 %v3606, 2147483648
    %v3714 = vxor.u32 %v3693, 2147483648
    %v3715 = vxor.u32 %v3610, 2147483648
    %v3716 = vxor.u32 %v3612, 2147483648
    %v3717 = vxor.u32 %v3699, 2147483648
    %v3718 = vxor.u32 %v3616, 2147483648
    %v3719 = vxor.u32 %v3618, 2147483648
    %v3720 = vxor.u32 %v3705, 2147483648
    %v3721 = vmul.f32 %v3709, 1.442695
    %v3722 = vpow.pop %v3721
    %v3723 = vmul.f32 %v3710, 1.442695
    %v3724 = vpow.pop %v3723
    %v3725 = vmul.f32 %v3711, 1.442695
    %v3726 = vpow.pop %v3725
    %v3727 = vmul.f32 %v3712, 1.442695
    %v3728 = vpow.pop %v3727
    %v3729 = vmul.f32 %v3713, 1.442695
    %v3730 = vpow.pop %v3729
    %v3731 = vmul.f32 %v3714, 1.442695
    %v3732 = vpow.pop %v3731
    %v3733 = vmul.f32 %v3715, 1.442695
    %v3734 = vpow.pop %v3733
    %v3735 = vmul.f32 %v3716, 1.442695
    %v3736 = vpow.pop %v3735
    %v3737 = vmul.f32 %v3717, 1.442695
    %v3738 = vpow.pop %v3737
    %v3739 = vmul.f32 %v3718, 1.442695
    %v3740 = vpow.pop %v3739
    %v3741 = vmul.f32 %v3719, 1.442695
    %v3742 = vpow.pop %v3741
    %v3743 = vmul.f32 %v3720, 1.442695
    %v3744 = vpow.pop %v3743
    %v3745 = vadd.f32 %v3722, 1.0
    %v3746 = vadd.f32 %v3724, 1.0
    %v3747 = vadd.f32 %v3726, 1.0
    %v3748 = vadd.f32 %v3728, 1.0
    %v3749 = vadd.f32 %v3730, 1.0
    %v3750 = vadd.f32 %v3732, 1.0
    %v3751 = vadd.f32 %v3734, 1.0
    %v3752 = vadd.f32 %v3736, 1.0
    %v3753 = vadd.f32 %v3738, 1.0
    %v3754 = vadd.f32 %v3740, 1.0
    %v3755 = vadd.f32 %v3742, 1.0
    %v3756 = vadd.f32 %v3744, 1.0
    %v3757 = vrcp.pop %v3745
    %v3758 = vmul.f32 1.0, %v3757
    %v3759 = vrcp.pop %v3746
    %v3760 = vmul.f32 1.0, %v3759
    %v3761 = vrcp.pop %v3747
    %v3762 = vmul.f32 1.0, %v3761
    %v3763 = vrcp.pop %v3748
    %v3764 = vmul.f32 1.0, %v3763
    %v3765 = vrcp.pop %v3749
    %v3766 = vmul.f32 1.0, %v3765
    %v3767 = vrcp.pop %v3750
    %v3768 = vmul.f32 1.0, %v3767
    %v3769 = vrcp.pop %v3751
    %v3770 = vmul.f32 1.0, %v3769
    %v3771 = vrcp.pop %v3752
    %v3772 = vmul.f32 1.0, %v3771
    %v3773 = vrcp.pop %v3753
    %v3774 = vmul.f32 1.0, %v3773
    %v3775 = vrcp.pop %v3754
    %v3776 = vmul.f32 1.0, %v3775
    %v3777 = vrcp.pop %v3755
    %v3778 = vmul.f32 1.0, %v3777
    %v3779 = vrcp.pop %v3756
    %v3780 = vmul.f32 1.0, %v3779
    %v3781 = vtanh.pop %v3689
    %v3782 = vtanh.pop %v3695
    %v3783 = vtanh.pop %v3701
    %v3784 = vtanh.pop %v3707
    %v3785 = vmul.f32 %v3760, %v3212
    %v3786 = vmul.f32 %v3766, %v3213
    %v3787 = vmul.f32 %v3772, %v3214
    %v3788 = vmul.f32 %v3778, %v3215
    %v3789 = vmul.f32 %v3758, %v3781
    %v3790 = vmul.f32 %v3764, %v3782
    %v3791 = vmul.f32 %v3770, %v3783
    %v3792 = vmul.f32 %v3776, %v3784
    %v3793 = vadd.f32 %v3785, %v3789
    %v3794 = vadd.f32 %v3786, %v3790
    %v3795 = vadd.f32 %v3787, %v3791
    %v3796 = vadd.f32 %v3788, %v3792
    %v3797 = vtanh.pop %v3793
    %v3798 = vtanh.pop %v3794
    %v3799 = vtanh.pop %v3795
    %v3800 = vtanh.pop %v3796
    %v3801 = vmul.f32 %v3762, %v3797
    %v3802 = vmul.f32 %v3768, %v3798
    %v3803 = vmul.f32 %v3774, %v3799
    %v3804 = vmul.f32 %v3780, %v3800
    %s3805 = scalar_lea.vmem [#allocation2], 768
    %v3806 = vld [vmem:[%s3805] sm:$0xff]
    %v3807 = vld [vmem:[%s3805 + $0x8] sm:$0xff]
    %v3808 = vld [vmem:[%s3805 + $0x10] sm:$0xff]
    %v3809 = vld [vmem:[%s3805 + $0x18] sm:$0xff]
    %v3810 = vld [vmem:[%s3805 + $0x20] sm:$0xff]
    %v3811 = vld [vmem:[%s3805 + $0x28] sm:$0xff]
    %v3812 = vld [vmem:[%s3805 + $0x30] sm:$0xff]
    %v3813 = vld [vmem:[%s3805 + $0x38] sm:$0xff]
    %v3814 = vld [vmem:[%s3805 + $0x40] sm:$0xff]
    %v3815 = vld [vmem:[%s3805 + $0x48] sm:$0xff]
    %v3816 = vld [vmem:[%s3805 + $0x50] sm:$0xff]
    %v3817 = vld [vmem:[%s3805 + $0x58] sm:$0xff]
    %v3818 = vld [vmem:[%s3805 + $0x60] sm:$0xff]
    %v3819 = vld [vmem:[%s3805 + $0x68] sm:$0xff]
    %v3820 = vld [vmem:[%s3805 + $0x70] sm:$0xff]
    %v3821 = vld [vmem:[%s3805 + $0x78] sm:$0xff]
    %3822 = vmatprep.subr.mxu0 %v129
    %3823 = vmatpush1.msra.mxu0 %v128
    %3824 = vmatprep.subr.mxu0 %v133
    %3825 = vmatpush1.msra.mxu0 %v132
    %3826 = vmatprep.subr.mxu0 %v137
    %3827 = vmatpush1.msra.mxu0 %v136
    %3828 = vmatprep.subr.mxu0 %v141
    %3829 = vmatpush1.msra.mxu0 %v140
    %3830 = vmatprep.subr.mxu0 %v145
    %3831 = vmatpush1.msra.mxu0 %v144
    %3832 = vmatprep.subr.mxu0 %v149
    %3833 = vmatpush1.msra.mxu0 %v148
    %3834 = vmatprep.subr.mxu0 %v153
    %3835 = vmatpush1.msra.mxu0 %v152
    %3836 = vmatprep.subr.mxu0 %v157
    %3837 = vmatpush1.msra.mxu0 %v156
    %3838 = vmatprep.subr.mxu0 %v161
    %3839 = vmatpush1.msra.mxu0 %v160
    %3840 = vmatprep.subr.mxu0 %v165
    %3841 = vmatpush1.msra.mxu0 %v164
    %3842 = vmatprep.subr.mxu0 %v169
    %3843 = vmatpush1.msra.mxu0 %v168
    %3844 = vmatprep.subr.mxu0 %v173
    %3845 = vmatpush1.msra.mxu0 %v172
    %3846 = vmatprep.subr.mxu0 %v177
    %3847 = vmatpush1.msra.mxu0 %v176
    %3848 = vmatprep.subr.mxu0 %v181
    %3849 = vmatpush1.msra.mxu0 %v180
    %3850 = vmatprep.subr.mxu0 %v185
    %3851 = vmatpush1.msra.mxu0 %v184
    %3852 = vmatprep.subr.mxu0 %v189
    %3853 = vmatpush1.msra.mxu0 %v188
    %3854 = vmatprep.subr.mxu0 0.0
    %3855 = vmatpush1.msra.mxu0 0.0
    %3856 = vmatprep.subr.mxu0 0.0
    %3857 = vmatpush1.msra.mxu0 0.0
    %3858 = vmatprep.subr.mxu0 0.0
    %3859 = vmatpush1.msra.mxu0 0.0
    %3860 = vmatprep.subr.mxu0 0.0
    %3861 = vmatpush1.msra.mxu0 0.0
    %3862 = vmatprep.subr.mxu0 0.0
    %3863 = vmatpush1.msra.mxu0 0.0
    %3864 = vmatprep.subr.mxu0 0.0
    %3865 = vmatpush1.msra.mxu0 0.0
    %3866 = vmatprep.subr.mxu0 0.0
    %3867 = vmatpush1.msra.mxu0 0.0
    %3868 = vmatprep.subr.mxu0 0.0
    %3869 = vmatpush1.msra.mxu0 0.0
    %3870 = vmatprep.subr.mxu0 0.0
    %3871 = vmatpush1.msra.mxu0 0.0
    %3872 = vmatprep.subr.mxu0 0.0
    %3873 = vmatpush1.msra.mxu0 0.0
    %3874 = vmatprep.subr.mxu0 0.0
    %3875 = vmatpush1.msra.mxu0 0.0
    %3876 = vmatprep.subr.mxu0 0.0
    %3877 = vmatpush1.msra.mxu0 0.0
    %3878 = vmatprep.subr.mxu0 0.0
    %3879 = vmatpush1.msra.mxu0 0.0
    %3880 = vmatprep.subr.mxu0 0.0
    %3881 = vmatpush1.msra.mxu0 0.0
    %3882 = vmatprep.subr.mxu0 0.0
    %3883 = vmatpush1.msra.mxu0 0.0
    %3884 = vmatprep.subr.mxu0 0.0
    %3885 = vmatpush1.msra.mxu0 0.0
    %3886 = vmatprep.mubr.f32.mxu0 0.0
    %3887 = vmatmul.mubr.f32.gmra.mrb[0].mxu0 %v3527
    %v3888 = vpop.f32.mrb[0].mxu0
    %v3889 = vadd.f32 0.0, %v3888
    %v3890 = vpop.f32.mrb[0].mxu0
    %v3891 = vadd.f32 0.0, %v3890
    %3892 = vmatprep.mubr.f32.mxu0 0.0
    %3893 = vmatmul.mubr.f32.gmra.mrb[0].mxu0 %v3528
    %v3894 = vpop.f32.mrb[0].mxu0
    %v3895 = vadd.f32 0.0, %v3894
    %v3896 = vpop.f32.mrb[0].mxu0
    %v3897 = vadd.f32 0.0, %v3896
    %3898 = vmatprep.mubr.f32.mxu0 0.0
    %3899 = vmatmul.mubr.f32.gmra.mrb[0].mxu0 %v3529
    %v3900 = vpop.f32.mrb[0].mxu0
    %v3901 = vadd.f32 0.0, %v3900
    %v3902 = vpop.f32.mrb[0].mxu0
    %v3903 = vadd.f32 0.0, %v3902
    %3904 = vmatprep.mubr.f32.mxu0 0.0
    %3905 = vmatmul.mubr.f32.gmra.mrb[0].mxu0 %v3530
    %v3906 = vpop.f32.mrb[0].mxu0
    %v3907 = vadd.f32 0.0, %v3906
    %v3908 = vpop.f32.mrb[0].mxu0
    %v3909 = vadd.f32 0.0, %v3908
    %3910 = vdwg.mxu0
    %3911 = vmatprep.subr.mxu0 %v131
    %3912 = vmatpush1.msra.mxu0 %v130
    %3913 = vmatprep.subr.mxu0 %v135
    %3914 = vmatpush1.msra.mxu0 %v134
    %3915 = vmatprep.subr.mxu0 %v139
    %3916 = vmatpush1.msra.mxu0 %v138
    %3917 = vmatprep.subr.mxu0 %v143
    %3918 = vmatpush1.msra.mxu0 %v142
    %3919 = vmatprep.subr.mxu0 %v147
    %3920 = vmatpush1.msra.mxu0 %v146
    %3921 = vmatprep.subr.mxu0 %v151
    %3922 = vmatpush1.msra.mxu0 %v150
    %3923 = vmatprep.subr.mxu0 %v155
    %3924 = vmatpush1.msra.mxu0 %v154
    %3925 = vmatprep.subr.mxu0 %v159
    %3926 = vmatpush1.msra.mxu0 %v158
    %3927 = vmatprep.subr.mxu0 %v163
    %3928 = vmatpush1.msra.mxu0 %v162
    %3929 = vmatprep.subr.mxu0 %v167
    %3930 = vmatpush1.msra.mxu0 %v166
    %3931 = vmatprep.subr.mxu0 %v171
    %3932 = vmatpush1.msra.mxu0 %v170
    %3933 = vmatprep.subr.mxu0 %v175
    %3934 = vmatpush1.msra.mxu0 %v174
    %3935 = vmatprep.subr.mxu0 %v179
    %3936 = vmatpush1.msra.mxu0 %v178
    %3937 = vmatprep.subr.mxu0 %v183
    %3938 = vmatpush1.msra.mxu0 %v182
    %3939 = vmatprep.subr.mxu0 %v187
    %3940 = vmatpush1.msra.mxu0 %v186
    %3941 = vmatprep.subr.mxu0 %v191
    %3942 = vmatpush1.msra.mxu0 %v190
    %3943 = vmatprep.subr.mxu0 0.0
    %3944 = vmatpush1.msra.mxu0 0.0
    %3945 = vmatprep.subr.mxu0 0.0
    %3946 = vmatpush1.msra.mxu0 0.0
    %3947 = vmatprep.subr.mxu0 0.0
    %3948 = vmatpush1.msra.mxu0 0.0
    %3949 = vmatprep.subr.mxu0 0.0
    %3950 = vmatpush1.msra.mxu0 0.0
    %3951 = vmatprep.subr.mxu0 0.0
    %3952 = vmatpush1.msra.mxu0 0.0
    %3953 = vmatprep.subr.mxu0 0.0
    %3954 = vmatpush1.msra.mxu0 0.0
    %3955 = vmatprep.subr.mxu0 0.0
    %3956 = vmatpush1.msra.mxu0 0.0
    %3957 = vmatprep.subr.mxu0 0.0
    %3958 = vmatpush1.msra.mxu0 0.0
    %3959 = vmatprep.subr.mxu0 0.0
    %3960 = vmatpush1.msra.mxu0 0.0
    %3961 = vmatprep.subr.mxu0 0.0
    %3962 = vmatpush1.msra.mxu0 0.0
    %3963 = vmatprep.subr.mxu0 0.0
    %3964 = vmatpush1.msra.mxu0 0.0
    %3965 = vmatprep.subr.mxu0 0.0
    %3966 = vmatpush1.msra.mxu0 0.0
    %3967 = vmatprep.subr.mxu0 0.0
    %3968 = vmatpush1.msra.mxu0 0.0
    %3969 = vmatprep.subr.mxu0 0.0
    %3970 = vmatpush1.msra.mxu0 0.0
    %3971 = vmatprep.subr.mxu0 0.0
    %3972 = vmatpush1.msra.mxu0 0.0
    %3973 = vmatprep.subr.mxu0 0.0
    %3974 = vmatpush1.msra.mxu0 0.0
    %3975 = vmatprep.mubr.f32.mxu0 0.0
    %3976 = vmatmul.mubr.f32.gmra.mrb[0].mxu0 %v3527
    %v3977 = vpop.f32.mrb[0].mxu0
    %v3978 = vadd.f32 0.0, %v3977
    %v3979 = vpop.f32.mrb[0].mxu0
    %v3980 = vadd.f32 0.0, %v3979
    %3981 = vmatprep.mubr.f32.mxu0 0.0
    %3982 = vmatmul.mubr.f32.gmra.mrb[0].mxu0 %v3528
    %v3983 = vpop.f32.mrb[0].mxu0
    %v3984 = vadd.f32 0.0, %v3983
    %v3985 = vpop.f32.mrb[0].mxu0
    %v3986 = vadd.f32 0.0, %v3985
    %3987 = vmatprep.mubr.f32.mxu0 0.0
    %3988 = vmatmul.mubr.f32.gmra.mrb[0].mxu0 %v3529
    %v3989 = vpop.f32.mrb[0].mxu0
    %v3990 = vadd.f32 0.0, %v3989
    %v3991 = vpop.f32.mrb[0].mxu0
    %v3992 = vadd.f32 0.0, %v3991
    %3993 = vmatprep.mubr.f32.mxu0 0.0
    %3994 = vmatmul.mubr.f32.gmra.mrb[0].mxu0 %v3530
    %v3995 = vpop.f32.mrb[0].mxu0
    %v3996 = vadd.f32 0.0, %v3995
    %v3997 = vpop.f32.mrb[0].mxu0
    %v3998 = vadd.f32 0.0, %v3997
    %3999 = vdwg.mxu0
    %v4000 = vadd.f32 %v3806, %v3889
    %v4001 = vadd.f32 %v3807, %v3891
    %v4002 = vadd.f32 %v3808, %v3978
    %v4003 = vadd.f32 %v3809, %v3980
    %v4004 = vadd.f32 %v3810, %v3895
    %v4005 = vadd.f32 %v3811, %v3897
    %v4006 = vadd.f32 %v3812, %v3984
    %v4007 = vadd.f32 %v3813, %v3986
    %v4008 = vadd.f32 %v3814, %v3901
    %v4009 = vadd.f32 %v3815, %v3903
    %v4010 = vadd.f32 %v3816, %v3990
    %v4011 = vadd.f32 %v3817, %v3992
    %v4012 = vadd.f32 %v3818, %v3907
    %v4013 = vadd.f32 %v3819, %v3909
    %v4014 = vadd.f32 %v3820, %v3996
    %v4015 = vadd.f32 %v3821, %v3998
    %v4016 = vxor.u32 %v4000, 2147483648
    %v4017 = vxor.u32 %v4001, 2147483648
    %v4018 = vxor.u32 %v4002, 2147483648
    %v4019 = vxor.u32 %v4004, 2147483648
    %v4020 = vxor.u32 %v4005, 2147483648
    %v4021 = vxor.u32 %v4006, 2147483648
    %v4022 = vxor.u32 %v4008, 2147483648
    %v4023 = vxor.u32 %v4009, 2147483648
    %v4024 = vxor.u32 %v4010, 2147483648
    %v4025 = vxor.u32 %v4012, 2147483648
    %v4026 = vxor.u32 %v4013, 2147483648
    %v4027 = vxor.u32 %v4014, 2147483648
    %v4028 = vmul.f32 %v4016, 1.442695
    %v4029 = vpow.pop %v4028
    %v4030 = vmul.f32 %v4017, 1.442695
    %v4031 = vpow.pop %v4030
    %v4032 = vmul.f32 %v4018, 1.442695
    %v4033 = vpow.pop %v4032
    %v4034 = vmul.f32 %v4019, 1.442695
    %v4035 = vpow.pop %v4034
    %v4036 = vmul.f32 %v4020, 1.442695
    %v4037 = vpow.pop %v4036
    %v4038 = vmul.f32 %v4021, 1.442695
    %v4039 = vpow.pop %v4038
    %v4040 = vmul.f32 %v4022, 1.442695
    %v4041 = vpow.pop %v4040
    %v4042 = vmul.f32 %v4023, 1.442695
    %v4043 = vpow.pop %v4042
    %v4044 = vmul.f32 %v4024, 1.442695
    %v4045 = vpow.pop %v4044
    %v4046 = vmul.f32 %v4025, 1.442695
    %v4047 = vpow.pop %v4046
    %v4048 = vmul.f32 %v4026, 1.442695
    %v4049 = vpow.pop %v4048
    %v4050 = vmul.f32 %v4027, 1.442695
    %v4051 = vpow.pop %v4050
    %v4052 = vadd.f32 %v4029, 1.0
    %v4053 = vadd.f32 %v4031, 1.0
    %v4054 = vadd.f32 %v4033, 1.0
    %v4055 = vadd.f32 %v4035, 1.0
    %v4056 = vadd.f32 %v4037, 1.0
    %v4057 = vadd.f32 %v4039, 1.0
    %v4058 = vadd.f32 %v4041, 1.0
    %v4059 = vadd.f32 %v4043, 1.0
    %v4060 = vadd.f32 %v4045, 1.0
    %v4061 = vadd.f32 %v4047, 1.0
    %v4062 = vadd.f32 %v4049, 1.0
    %v4063 = vadd.f32 %v4051, 1.0
    %v4064 = vrcp.pop %v4052
    %v4065 = vmul.f32 1.0, %v4064
    %v4066 = vrcp.pop %v4053
    %v4067 = vmul.f32 1.0, %v4066
    %v4068 = vrcp.pop %v4054
    %v4069 = vmul.f32 1.0, %v4068
    %v4070 = vrcp.pop %v4055
    %v4071 = vmul.f32 1.0, %v4070
    %v4072 = vrcp.pop %v4056
    %v4073 = vmul.f32 1.0, %v4072
    %v4074 = vrcp.pop %v4057
    %v4075 = vmul.f32 1.0, %v4074
    %v4076 = vrcp.pop %v4058
    %v4077 = vmul.f32 1.0, %v4076
    %v4078 = vrcp.pop %v4059
    %v4079 = vmul.f32 1.0, %v4078
    %v4080 = vrcp.pop %v4060
    %v4081 = vmul.f32 1.0, %v4080
    %v4082 = vrcp.pop %v4061
    %v4083 = vmul.f32 1.0, %v4082
    %v4084 = vrcp.pop %v4062
    %v4085 = vmul.f32 1.0, %v4084
    %v4086 = vrcp.pop %v4063
    %v4087 = vmul.f32 1.0, %v4086
    %v4088 = vtanh.pop %v4003
    %v4089 = vtanh.pop %v4007
    %v4090 = vtanh.pop %v4011
    %v4091 = vtanh.pop %v4015
    %v4092 = vmul.f32 %v4067, %v3519
    %v4093 = vmul.f32 %v4073, %v3520
    %v4094 = vmul.f32 %v4079, %v3521
    %v4095 = vmul.f32 %v4085, %v3522
    %v4096 = vmul.f32 %v4065, %v4088
    %v4097 = vmul.f32 %v4071, %v4089
    %v4098 = vmul.f32 %v4077, %v4090
    %v4099 = vmul.f32 %v4083, %v4091
    %v4100 = vadd.f32 %v4092, %v4096
    %v4101 = vadd.f32 %v4093, %v4097
    %v4102 = vadd.f32 %v4094, %v4098
    %v4103 = vadd.f32 %v4095, %v4099
    %v4104 = vtanh.pop %v4100
    %v4105 = vtanh.pop %v4101
    %v4106 = vtanh.pop %v4102
    %v4107 = vtanh.pop %v4103
    %v4108 = vmul.f32 %v4069, %v4104
    %v4109 = vmul.f32 %v4075, %v4105
    %v4110 = vmul.f32 %v4081, %v4106
    %v4111 = vmul.f32 %v4087, %v4107
    %4112 = vmatprep.subr.mxu0 %v483
    %4113 = vmatpush1.msra.mxu0 %v482
    %4114 = vmatprep.subr.mxu0 %v487
    %4115 = vmatpush1.msra.mxu0 %v486
    %4116 = vmatprep.subr.mxu0 %v491
    %4117 = vmatpush1.msra.mxu0 %v490
    %4118 = vmatprep.subr.mxu0 %v495
    %4119 = vmatpush1.msra.mxu0 %v494
    %4120 = vmatprep.subr.mxu0 %v499
    %4121 = vmatpush1.msra.mxu0 %v498
    %4122 = vmatprep.subr.mxu0 %v503
    %4123 = vmatpush1.msra.mxu0 %v502
    %4124 = vmatprep.subr.mxu0 %v507
    %4125 = vmatpush1.msra.mxu0 %v506
    %4126 = vmatprep.subr.mxu0 %v511
    %4127 = vmatpush1.msra.mxu0 %v510
    %4128 = vmatprep.subr.mxu0 %v515
    %4129 = vmatpush1.msra.mxu0 %v514
    %4130 = vmatprep.subr.mxu0 %v519
    %4131 = vmatpush1.msra.mxu0 %v518
    %4132 = vmatprep.subr.mxu0 %v523
    %4133 = vmatpush1.msra.mxu0 %v522
    %4134 = vmatprep.subr.mxu0 %v527
    %4135 = vmatpush1.msra.mxu0 %v526
    %4136 = vmatprep.subr.mxu0 %v531
    %4137 = vmatpush1.msra.mxu0 %v530
    %4138 = vmatprep.subr.mxu0 %v535
    %4139 = vmatpush1.msra.mxu0 %v534
    %4140 = vmatprep.subr.mxu0 %v539
    %4141 = vmatpush1.msra.mxu0 %v538
    %4142 = vmatprep.subr.mxu0 %v543
    %4143 = vmatpush1.msra.mxu0 %v542
    %4144 = vmatprep.subr.mxu0 %v547
    %4145 = vmatpush1.msra.mxu0 %v546
    %4146 = vmatprep.subr.mxu0 %v551
    %4147 = vmatpush1.msra.mxu0 %v550
    %4148 = vmatprep.subr.mxu0 %v555
    %4149 = vmatpush1.msra.mxu0 %v554
    %4150 = vmatprep.subr.mxu0 %v559
    %4151 = vmatpush1.msra.mxu0 %v558
    %4152 = vmatprep.subr.mxu0 %v563
    %4153 = vmatpush1.msra.mxu0 %v562
    %4154 = vmatprep.subr.mxu0 %v567
    %4155 = vmatpush1.msra.mxu0 %v566
    %4156 = vmatprep.subr.mxu0 %v571
    %4157 = vmatpush1.msra.mxu0 %v570
    %4158 = vmatprep.subr.mxu0 %v575
    %4159 = vmatpush1.msra.mxu0 %v574
    %4160 = vmatprep.subr.mxu0 %v579
    %4161 = vmatpush1.msra.mxu0 %v578
    %4162 = vmatprep.subr.mxu0 %v583
    %4163 = vmatpush1.msra.mxu0 %v582
    %4164 = vmatprep.subr.mxu0 %v587
    %4165 = vmatpush1.msra.mxu0 %v586
    %4166 = vmatprep.subr.mxu0 %v591
    %4167 = vmatpush1.msra.mxu0 %v590
    %4168 = vmatprep.subr.mxu0 %v595
    %4169 = vmatpush1.msra.mxu0 %v594
    %4170 = vmatprep.subr.mxu0 %v599
    %4171 = vmatpush1.msra.mxu0 %v598
    %4172 = vmatprep.subr.mxu0 %v603
    %4173 = vmatpush1.msra.mxu0 %v602
    %4174 = vmatprep.subr.mxu0 %v607
    %4175 = vmatpush1.msra.mxu0 %v606
    %4176 = vmatprep.mubr.f32.mxu0 %v3801
    %4177 = vmatmul.mubr.f32.gmra.mrb[0].mxu0 %v4108
    %v4178 = vpop.f32.mrb[0].mxu0
    %v4179 = vadd.f32 %v610, %v4178
    %v4180 = vpop.f32.mrb[0].mxu0
    %v4181 = vadd.f32 %v611, %v4180
    %4182 = vmatprep.mubr.f32.mxu0 %v3802
    %4183 = vmatmul.mubr.f32.gmra.mrb[0].mxu0 %v4109
    %v4184 = vpop.f32.mrb[0].mxu0
    %v4185 = vadd.f32 %v614, %v4184
    %v4186 = vpop.f32.mrb[0].mxu0
    %v4187 = vadd.f32 %v615, %v4186
    %4188 = vmatprep.mubr.f32.mxu0 %v3803
    %4189 = vmatmul.mubr.f32.gmra.mrb[0].mxu0 %v4110
    %v4190 = vpop.f32.mrb[0].mxu0
    %v4191 = vadd.f32 %v618, %v4190
    %v4192 = vpop.f32.mrb[0].mxu0
    %v4193 = vadd.f32 %v619, %v4192
    %4194 = vmatprep.mubr.f32.mxu0 %v3804
    %4195 = vmatmul.mubr.f32.gmra.mrb[0].mxu0 %v4111
    %v4196 = vpop.f32.mrb[0].mxu0
    %v4197 = vadd.f32 %v622, %v4196
    %v4198 = vpop.f32.mrb[0].mxu0
    %v4199 = vadd.f32 %v623, %v4198
    %4200 = vdwg.mxu0
    %4201 = vmatprep.subr.mxu0 %v485
    %4202 = vmatpush1.msra.mxu0 %v484
    %4203 = vmatprep.subr.mxu0 %v489
    %4204 = vmatpush1.msra.mxu0 %v488
    %4205 = vmatprep.subr.mxu0 %v493
    %4206 = vmatpush1.msra.mxu0 %v492
    %4207 = vmatprep.subr.mxu0 %v497
    %4208 = vmatpush1.msra.mxu0 %v496
    %4209 = vmatprep.subr.mxu0 %v501
    %4210 = vmatpush1.msra.mxu0 %v500
    %4211 = vmatprep.subr.mxu0 %v505
    %4212 = vmatpush1.msra.mxu0 %v504
    %4213 = vmatprep.subr.mxu0 %v509
    %4214 = vmatpush1.msra.mxu0 %v508
    %4215 = vmatprep.subr.mxu0 %v513
    %4216 = vmatpush1.msra.mxu0 %v512
    %4217 = vmatprep.subr.mxu0 %v517
    %4218 = vmatpush1.msra.mxu0 %v516
    %4219 = vmatprep.subr.mxu0 %v521
    %4220 = vmatpush1.msra.mxu0 %v520
    %4221 = vmatprep.subr.mxu0 %v525
    %4222 = vmatpush1.msra.mxu0 %v524
    %4223 = vmatprep.subr.mxu0 %v529
    %4224 = vmatpush1.msra.mxu0 %v528
    %4225 = vmatprep.subr.mxu0 %v533
    %4226 = vmatpush1.msra.mxu0 %v532
    %4227 = vmatprep.subr.mxu0 %v537
    %4228 = vmatpush1.msra.mxu0 %v536
    %4229 = vmatprep.subr.mxu0 %v541
    %4230 = vmatpush1.msra.mxu0 %v540
    %4231 = vmatprep.subr.mxu0 %v545
    %4232 = vmatpush1.msra.mxu0 %v544
    %4233 = vmatprep.subr.mxu0 %v549
    %4234 = vmatpush1.msra.mxu0 %v548
    %4235 = vmatprep.subr.mxu0 %v553
    %4236 = vmatpush1.msra.mxu0 %v552
    %4237 = vmatprep.subr.mxu0 %v557
    %4238 = vmatpush1.msra.mxu0 %v556
    %4239 = vmatprep.subr.mxu0 %v561
    %4240 = vmatpush1.msra.mxu0 %v560
    %4241 = vmatprep.subr.mxu0 %v565
    %4242 = vmatpush1.msra.mxu0 %v564
    %4243 = vmatprep.subr.mxu0 %v569
    %4244 = vmatpush1.msra.mxu0 %v568
    %4245 = vmatprep.subr.mxu0 %v573
    %4246 = vmatpush1.msra.mxu0 %v572
    %4247 = vmatprep.subr.mxu0 %v577
    %4248 = vmatpush1.msra.mxu0 %v576
    %4249 = vmatprep.subr.mxu0 %v581
    %4250 = vmatpush1.msra.mxu0 %v580
    %4251 = vmatprep.subr.mxu0 %v585
    %4252 = vmatpush1.msra.mxu0 %v584
    %4253 = vmatprep.subr.mxu0 %v589
    %4254 = vmatpush1.msra.mxu0 %v588
    %4255 = vmatprep.subr.mxu0 %v593
    %4256 = vmatpush1.msra.mxu0 %v592
    %4257 = vmatprep.subr.mxu0 %v597
    %4258 = vmatpush1.msra.mxu0 %v596
    %4259 = vmatprep.subr.mxu0 %v601
    %4260 = vmatpush1.msra.mxu0 %v600
    %4261 = vmatprep.subr.mxu0 %v605
    %4262 = vmatpush1.msra.mxu0 %v604
    %4263 = vmatprep.subr.mxu0 %v609
    %4264 = vmatpush1.msra.mxu0 %v608
    %4265 = vmatprep.mubr.f32.mxu0 %v3801
    %4266 = vmatmul.mubr.f32.gmra.mrb[0].mxu0 %v4108
    %v4267 = vpop.f32.mrb[0].mxu0
    %v4268 = vadd.f32 %v612, %v4267
    %v4269 = vpop.f32.mrb[0].mxu0
    %v4270 = vadd.f32 %v613, %v4269
    %4271 = vmatprep.mubr.f32.mxu0 %v3802
    %4272 = vmatmul.mubr.f32.gmra.mrb[0].mxu0 %v4109
    %v4273 = vpop.f32.mrb[0].mxu0
    %v4274 = vadd.f32 %v616, %v4273
    %v4275 = vpop.f32.mrb[0].mxu0
    %v4276 = vadd.f32 %v617, %v4275
    %4277 = vmatprep.mubr.f32.mxu0 %v3803
    %4278 = vmatmul.mubr.f32.gmra.mrb[0].mxu0 %v4110
    %v4279 = vpop.f32.mrb[0].mxu0
    %v4280 = vadd.f32 %v620, %v4279
    %v4281 = vpop.f32.mrb[0].mxu0
    %v4282 = vadd.f32 %v621, %v4281
    %4283 = vmatprep.mubr.f32.mxu0 %v3804
    %4284 = vmatmul.mubr.f32.gmra.mrb[0].mxu0 %v4111
    %v4285 = vpop.f32.mrb[0].mxu0
    %v4286 = vadd.f32 %v624, %v4285
    %v4287 = vpop.f32.mrb[0].mxu0
    %v4288 = vadd.f32 %v625, %v4287
    %4289 = vdwg.mxu0
    %v4290 = vxor.u32 %v4179, 2147483648
    %v4291 = vxor.u32 %v4181, 2147483648
    %v4292 = vxor.u32 %v4268, 2147483648
    %v4293 = vxor.u32 %v4185, 2147483648
    %v4294 = vxor.u32 %v4187, 2147483648
    %v4295 = vxor.u32 %v4274, 2147483648
    %v4296 = vxor.u32 %v4191, 2147483648
    %v4297 = vxor.u32 %v4193, 2147483648
    %v4298 = vxor.u32 %v4280, 2147483648
    %v4299 = vxor.u32 %v4197, 2147483648
    %v4300 = vxor.u32 %v4199, 2147483648
    %v4301 = vxor.u32 %v4286, 2147483648
    %v4302 = vmul.f32 %v4290, 1.442695
    %v4303 = vpow.pop %v4302
    %v4304 = vmul.f32 %v4291, 1.442695
    %v4305 = vpow.pop %v4304
    %v4306 = vmul.f32 %v4292, 1.442695
    %v4307 = vpow.pop %v4306
    %v4308 = vmul.f32 %v4293, 1.442695
    %v4309 = vpow.pop %v4308
    %v4310 = vmul.f32 %v4294, 1.442695
    %v4311 = vpow.pop %v4310
    %v4312 = vmul.f32 %v4295, 1.442695
    %v4313 = vpow.pop %v4312
    %v4314 = vmul.f32 %v4296, 1.442695
    %v4315 = vpow.pop %v4314
    %v4316 = vmul.f32 %v4297, 1.442695
    %v4317 = vpow.pop %v4316
    %v4318 = vmul.f32 %v4298, 1.442695
    %v4319 = vpow.pop %v4318
    %v4320 = vmul.f32 %v4299, 1.442695
    %v4321 = vpow.pop %v4320
    %v4322 = vmul.f32 %v4300, 1.442695
    %v4323 = vpow.pop %v4322
    %v4324 = vmul.f32 %v4301, 1.442695
    %v4325 = vpow.pop %v4324
    %v4326 = vadd.f32 %v4303, 1.0
    %v4327 = vadd.f32 %v4305, 1.0
    %v4328 = vadd.f32 %v4307, 1.0
    %v4329 = vadd.f32 %v4309, 1.0
    %v4330 = vadd.f32 %v4311, 1.0
    %v4331 = vadd.f32 %v4313, 1.0
    %v4332 = vadd.f32 %v4315, 1.0
    %v4333 = vadd.f32 %v4317, 1.0
    %v4334 = vadd.f32 %v4319, 1.0
    %v4335 = vadd.f32 %v4321, 1.0
    %v4336 = vadd.f32 %v4323, 1.0
    %v4337 = vadd.f32 %v4325, 1.0
    %v4338 = vrcp.pop %v4326
    %v4339 = vmul.f32 1.0, %v4338
    %v4340 = vrcp.pop %v4327
    %v4341 = vmul.f32 1.0, %v4340
    %v4342 = vrcp.pop %v4328
    %v4343 = vmul.f32 1.0, %v4342
    %v4344 = vrcp.pop %v4329
    %v4345 = vmul.f32 1.0, %v4344
    %v4346 = vrcp.pop %v4330
    %v4347 = vmul.f32 1.0, %v4346
    %v4348 = vrcp.pop %v4331
    %v4349 = vmul.f32 1.0, %v4348
    %v4350 = vrcp.pop %v4332
    %v4351 = vmul.f32 1.0, %v4350
    %v4352 = vrcp.pop %v4333
    %v4353 = vmul.f32 1.0, %v4352
    %v4354 = vrcp.pop %v4334
    %v4355 = vmul.f32 1.0, %v4354
    %v4356 = vrcp.pop %v4335
    %v4357 = vmul.f32 1.0, %v4356
    %v4358 = vrcp.pop %v4336
    %v4359 = vmul.f32 1.0, %v4358
    %v4360 = vrcp.pop %v4337
    %v4361 = vmul.f32 1.0, %v4360
    %v4362 = vtanh.pop %v4270
    %v4363 = vtanh.pop %v4276
    %v4364 = vtanh.pop %v4282
    %v4365 = vtanh.pop %v4288
    %v4366 = vmul.f32 %v4341, %v3793
    %v4367 = vmul.f32 %v4347, %v3794
    %v4368 = vmul.f32 %v4353, %v3795
    %v4369 = vmul.f32 %v4359, %v3796
    %v4370 = vmul.f32 %v4339, %v4362
    %v4371 = vmul.f32 %v4345, %v4363
    %v4372 = vmul.f32 %v4351, %v4364
    %v4373 = vmul.f32 %v4357, %v4365
    %v4374 = vadd.f32 %v4366, %v4370
    %v4375 = vadd.f32 %v4367, %v4371
    %v4376 = vadd.f32 %v4368, %v4372
    %v4377 = vadd.f32 %v4369, %v4373
    %v4378 = vtanh.pop %v4374
    %v4379 = vtanh.pop %v4375
    %v4380 = vtanh.pop %v4376
    %v4381 = vtanh.pop %v4377
    %v4382 = vmul.f32 %v4343, %v4378
    %v4383 = vmul.f32 %v4349, %v4379
    %v4384 = vmul.f32 %v4355, %v4380
    %v4385 = vmul.f32 %v4361, %v4381
    %s4386 = scalar_lea.vmem [#allocation2], 896
    %v4387 = vld [vmem:[%s4386] sm:$0xff]
    %v4388 = vld [vmem:[%s4386 + $0x8] sm:$0xff]
    %v4389 = vld [vmem:[%s4386 + $0x10] sm:$0xff]
    %v4390 = vld [vmem:[%s4386 + $0x18] sm:$0xff]
    %v4391 = vld [vmem:[%s4386 + $0x20] sm:$0xff]
    %v4392 = vld [vmem:[%s4386 + $0x28] sm:$0xff]
    %v4393 = vld [vmem:[%s4386 + $0x30] sm:$0xff]
    %v4394 = vld [vmem:[%s4386 + $0x38] sm:$0xff]
    %v4395 = vld [vmem:[%s4386 + $0x40] sm:$0xff]
    %v4396 = vld [vmem:[%s4386 + $0x48] sm:$0xff]
    %v4397 = vld [vmem:[%s4386 + $0x50] sm:$0xff]
    %v4398 = vld [vmem:[%s4386 + $0x58] sm:$0xff]
    %v4399 = vld [vmem:[%s4386 + $0x60] sm:$0xff]
    %v4400 = vld [vmem:[%s4386 + $0x68] sm:$0xff]
    %v4401 = vld [vmem:[%s4386 + $0x70] sm:$0xff]
    %v4402 = vld [vmem:[%s4386 + $0x78] sm:$0xff]
    %4403 = vmatprep.subr.mxu0 %v129
    %4404 = vmatpush1.msra.mxu0 %v128
    %4405 = vmatprep.subr.mxu0 %v133
    %4406 = vmatpush1.msra.mxu0 %v132
    %4407 = vmatprep.subr.mxu0 %v137
    %4408 = vmatpush1.msra.mxu0 %v136
    %4409 = vmatprep.subr.mxu0 %v141
    %4410 = vmatpush1.msra.mxu0 %v140
    %4411 = vmatprep.subr.mxu0 %v145
    %4412 = vmatpush1.msra.mxu0 %v144
    %4413 = vmatprep.subr.mxu0 %v149
    %4414 = vmatpush1.msra.mxu0 %v148
    %4415 = vmatprep.subr.mxu0 %v153
    %4416 = vmatpush1.msra.mxu0 %v152
    %4417 = vmatprep.subr.mxu0 %v157
    %4418 = vmatpush1.msra.mxu0 %v156
    %4419 = vmatprep.subr.mxu0 %v161
    %4420 = vmatpush1.msra.mxu0 %v160
    %4421 = vmatprep.subr.mxu0 %v165
    %4422 = vmatpush1.msra.mxu0 %v164
    %4423 = vmatprep.subr.mxu0 %v169
    %4424 = vmatpush1.msra.mxu0 %v168
    %4425 = vmatprep.subr.mxu0 %v173
    %4426 = vmatpush1.msra.mxu0 %v172
    %4427 = vmatprep.subr.mxu0 %v177
    %4428 = vmatpush1.msra.mxu0 %v176
    %4429 = vmatprep.subr.mxu0 %v181
    %4430 = vmatpush1.msra.mxu0 %v180
    %4431 = vmatprep.subr.mxu0 %v185
    %4432 = vmatpush1.msra.mxu0 %v184
    %4433 = vmatprep.subr.mxu0 %v189
    %4434 = vmatpush1.msra.mxu0 %v188
    %4435 = vmatprep.subr.mxu0 0.0
    %4436 = vmatpush1.msra.mxu0 0.0
    %4437 = vmatprep.subr.mxu0 0.0
    %4438 = vmatpush1.msra.mxu0 0.0
    %4439 = vmatprep.subr.mxu0 0.0
    %4440 = vmatpush1.msra.mxu0 0.0
    %4441 = vmatprep.subr.mxu0 0.0
    %4442 = vmatpush1.msra.mxu0 0.0
    %4443 = vmatprep.subr.mxu0 0.0
    %4444 = vmatpush1.msra.mxu0 0.0
    %4445 = vmatprep.subr.mxu0 0.0
    %4446 = vmatpush1.msra.mxu0 0.0
    %4447 = vmatprep.subr.mxu0 0.0
    %4448 = vmatpush1.msra.mxu0 0.0
    %4449 = vmatprep.subr.mxu0 0.0
    %4450 = vmatpush1.msra.mxu0 0.0
    %4451 = vmatprep.subr.mxu0 0.0
    %4452 = vmatpush1.msra.mxu0 0.0
    %4453 = vmatprep.subr.mxu0 0.0
    %4454 = vmatpush1.msra.mxu0 0.0
    %4455 = vmatprep.subr.mxu0 0.0
    %4456 = vmatpush1.msra.mxu0 0.0
    %4457 = vmatprep.subr.mxu0 0.0
    %4458 = vmatpush1.msra.mxu0 0.0
    %4459 = vmatprep.subr.mxu0 0.0
    %4460 = vmatpush1.msra.mxu0 0.0
    %4461 = vmatprep.subr.mxu0 0.0
    %4462 = vmatpush1.msra.mxu0 0.0
    %4463 = vmatprep.subr.mxu0 0.0
    %4464 = vmatpush1.msra.mxu0 0.0
    %4465 = vmatprep.subr.mxu0 0.0
    %4466 = vmatpush1.msra.mxu0 0.0
    %4467 = vmatprep.mubr.f32.mxu0 0.0
    %4468 = vmatmul.mubr.f32.gmra.mrb[0].mxu0 %v4108
    %v4469 = vpop.f32.mrb[0].mxu0
    %v4470 = vadd.f32 0.0, %v4469
    %v4471 = vpop.f32.mrb[0].mxu0
    %v4472 = vadd.f32 0.0, %v4471
    %4473 = vmatprep.mubr.f32.mxu0 0.0
    %4474 = vmatmul.mubr.f32.gmra.mrb[0].mxu0 %v4109
    %v4475 = vpop.f32.mrb[0].mxu0
    %v4476 = vadd.f32 0.0, %v4475
    %v4477 = vpop.f32.mrb[0].mxu0
    %v4478 = vadd.f32 0.0, %v4477
    %4479 = vmatprep.mubr.f32.mxu0 0.0
    %4480 = vmatmul.mubr.f32.gmra.mrb[0].mxu0 %v4110
    %v4481 = vpop.f32.mrb[0].mxu0
    %v4482 = vadd.f32 0.0, %v4481
    %v4483 = vpop.f32.mrb[0].mxu0
    %v4484 = vadd.f32 0.0, %v4483
    %4485 = vmatprep.mubr.f32.mxu0 0.0
    %4486 = vmatmul.mubr.f32.gmra.mrb[0].mxu0 %v4111
    %v4487 = vpop.f32.mrb[0].mxu0
    %v4488 = vadd.f32 0.0, %v4487
    %v4489 = vpop.f32.mrb[0].mxu0
    %v4490 = vadd.f32 0.0, %v4489
    %4491 = vdwg.mxu0
    %4492 = vmatprep.subr.mxu0 %v131
    %4493 = vmatpush1.msra.mxu0 %v130
    %4494 = vmatprep.subr.mxu0 %v135
    %4495 = vmatpush1.msra.mxu0 %v134
    %4496 = vmatprep.subr.mxu0 %v139
    %4497 = vmatpush1.msra.mxu0 %v138
    %4498 = vmatprep.subr.mxu0 %v143
    %4499 = vmatpush1.msra.mxu0 %v142
    %4500 = vmatprep.subr.mxu0 %v147
    %4501 = vmatpush1.msra.mxu0 %v146
    %4502 = vmatprep.subr.mxu0 %v151
    %4503 = vmatpush1.msra.mxu0 %v150
    %4504 = vmatprep.subr.mxu0 %v155
    %4505 = vmatpush1.msra.mxu0 %v154
    %4506 = vmatprep.subr.mxu0 %v159
    %4507 = vmatpush1.msra.mxu0 %v158
    %4508 = vmatprep.subr.mxu0 %v163
    %4509 = vmatpush1.msra.mxu0 %v162
    %4510 = vmatprep.subr.mxu0 %v167
    %4511 = vmatpush1.msra.mxu0 %v166
    %4512 = vmatprep.subr.mxu0 %v171
    %4513 = vmatpush1.msra.mxu0 %v170
    %4514 = vmatprep.subr.mxu0 %v175
    %4515 = vmatpush1.msra.mxu0 %v174
    %4516 = vmatprep.subr.mxu0 %v179
    %4517 = vmatpush1.msra.mxu0 %v178
    %4518 = vmatprep.subr.mxu0 %v183
    %4519 = vmatpush1.msra.mxu0 %v182
    %4520 = vmatprep.subr.mxu0 %v187
    %4521 = vmatpush1.msra.mxu0 %v186
    %4522 = vmatprep.subr.mxu0 %v191
    %4523 = vmatpush1.msra.mxu0 %v190
    %4524 = vmatprep.subr.mxu0 0.0
    %4525 = vmatpush1.msra.mxu0 0.0
    %4526 = vmatprep.subr.mxu0 0.0
    %4527 = vmatpush1.msra.mxu0 0.0
    %4528 = vmatprep.subr.mxu0 0.0
    %4529 = vmatpush1.msra.mxu0 0.0
    %4530 = vmatprep.subr.mxu0 0.0
    %4531 = vmatpush1.msra.mxu0 0.0
    %4532 = vmatprep.subr.mxu0 0.0
    %4533 = vmatpush1.msra.mxu0 0.0
    %4534 = vmatprep.subr.mxu0 0.0
    %4535 = vmatpush1.msra.mxu0 0.0
    %4536 = vmatprep.subr.mxu0 0.0
    %4537 = vmatpush1.msra.mxu0 0.0
    %4538 = vmatprep.subr.mxu0 0.0
    %4539 = vmatpush1.msra.mxu0 0.0
    %4540 = vmatprep.subr.mxu0 0.0
    %4541 = vmatpush1.msra.mxu0 0.0
    %4542 = vmatprep.subr.mxu0 0.0
    %4543 = vmatpush1.msra.mxu0 0.0
    %4544 = vmatprep.subr.mxu0 0.0
    %4545 = vmatpush1.msra.mxu0 0.0
    %4546 = vmatprep.subr.mxu0 0.0
    %4547 = vmatpush1.msra.mxu0 0.0
    %4548 = vmatprep.subr.mxu0 0.0
    %4549 = vmatpush1.msra.mxu0 0.0
    %4550 = vmatprep.subr.mxu0 0.0
    %4551 = vmatpush1.msra.mxu0 0.0
    %4552 = vmatprep.subr.mxu0 0.0
    %4553 = vmatpush1.msra.mxu0 0.0
    %4554 = vmatprep.subr.mxu0 0.0
    %4555 = vmatpush1.msra.mxu0 0.0
    %4556 = vmatprep.mubr.f32.mxu0 0.0
    %4557 = vmatmul.mubr.f32.gmra.mrb[0].mxu0 %v4108
    %v4558 = vpop.f32.mrb[0].mxu0
    %v4559 = vadd.f32 0.0, %v4558
    %v4560 = vpop.f32.mrb[0].mxu0
    %v4561 = vadd.f32 0.0, %v4560
    %4562 = vmatprep.mubr.f32.mxu0 0.0
    %4563 = vmatmul.mubr.f32.gmra.mrb[0].mxu0 %v4109
    %v4564 = vpop.f32.mrb[0].mxu0
    %v4565 = vadd.f32 0.0, %v4564
    %v4566 = vpop.f32.mrb[0].mxu0
    %v4567 = vadd.f32 0.0, %v4566
    %4568 = vmatprep.mubr.f32.mxu0 0.0
    %4569 = vmatmul.mubr.f32.gmra.mrb[0].mxu0 %v4110
    %v4570 = vpop.f32.mrb[0].mxu0
    %v4571 = vadd.f32 0.0, %v4570
    %v4572 = vpop.f32.mrb[0].mxu0
    %v4573 = vadd.f32 0.0, %v4572
    %4574 = vmatprep.mubr.f32.mxu0 0.0
    %4575 = vmatmul.mubr.f32.gmra.mrb[0].mxu0 %v4111
    %v4576 = vpop.f32.mrb[0].mxu0
    %v4577 = vadd.f32 0.0, %v4576
    %v4578 = vpop.f32.mrb[0].mxu0
    %v4579 = vadd.f32 0.0, %v4578
    %4580 = vdwg.mxu0
    %v4581 = vadd.f32 %v4387, %v4470
    %v4582 = vadd.f32 %v4388, %v4472
    %v4583 = vadd.f32 %v4389, %v4559
    %v4584 = vadd.f32 %v4390, %v4561
    %v4585 = vadd.f32 %v4391, %v4476
    %v4586 = vadd.f32 %v4392, %v4478
    %v4587 = vadd.f32 %v4393, %v4565
    %v4588 = vadd.f32 %v4394, %v4567
    %v4589 = vadd.f32 %v4395, %v4482
    %v4590 = vadd.f32 %v4396, %v4484
    %v4591 = vadd.f32 %v4397, %v4571
    %v4592 = vadd.f32 %v4398, %v4573
    %v4593 = vadd.f32 %v4399, %v4488
    %v4594 = vadd.f32 %v4400, %v4490
    %v4595 = vadd.f32 %v4401, %v4577
    %v4596 = vadd.f32 %v4402, %v4579
    %v4597 = vxor.u32 %v4581, 2147483648
    %v4598 = vxor.u32 %v4582, 2147483648
    %v4599 = vxor.u32 %v4583, 2147483648
    %v4600 = vxor.u32 %v4585, 2147483648
    %v4601 = vxor.u32 %v4586, 2147483648
    %v4602 = vxor.u32 %v4587, 2147483648
    %v4603 = vxor.u32 %v4589, 2147483648
    %v4604 = vxor.u32 %v4590, 2147483648
    %v4605 = vxor.u32 %v4591, 2147483648
    %v4606 = vxor.u32 %v4593, 2147483648
    %v4607 = vxor.u32 %v4594, 2147483648
    %v4608 = vxor.u32 %v4595, 2147483648
    %v4609 = vmul.f32 %v4597, 1.442695
    %v4610 = vpow.pop %v4609
    %v4611 = vmul.f32 %v4598, 1.442695
    %v4612 = vpow.pop %v4611
    %v4613 = vmul.f32 %v4599, 1.442695
    %v4614 = vpow.pop %v4613
    %v4615 = vmul.f32 %v4600, 1.442695
    %v4616 = vpow.pop %v4615
    %v4617 = vmul.f32 %v4601, 1.442695
    %v4618 = vpow.pop %v4617
    %v4619 = vmul.f32 %v4602, 1.442695
    %v4620 = vpow.pop %v4619
    %v4621 = vmul.f32 %v4603, 1.442695
    %v4622 = vpow.pop %v4621
    %v4623 = vmul.f32 %v4604, 1.442695
    %v4624 = vpow.pop %v4623
    %v4625 = vmul.f32 %v4605, 1.442695
    %v4626 = vpow.pop %v4625
    %v4627 = vmul.f32 %v4606, 1.442695
    %v4628 = vpow.pop %v4627
    %v4629 = vmul.f32 %v4607, 1.442695
    %v4630 = vpow.pop %v4629
    %v4631 = vmul.f32 %v4608, 1.442695
    %v4632 = vpow.pop %v4631
    %v4633 = vadd.f32 %v4610, 1.0
    %v4634 = vadd.f32 %v4612, 1.0
    %v4635 = vadd.f32 %v4614, 1.0
    %v4636 = vadd.f32 %v4616, 1.0
    %v4637 = vadd.f32 %v4618, 1.0
    %v4638 = vadd.f32 %v4620, 1.0
    %v4639 = vadd.f32 %v4622, 1.0
    %v4640 = vadd.f32 %v4624, 1.0
    %v4641 = vadd.f32 %v4626, 1.0
    %v4642 = vadd.f32 %v4628, 1.0
    %v4643 = vadd.f32 %v4630, 1.0
    %v4644 = vadd.f32 %v4632, 1.0
    %v4645 = vrcp.pop %v4633
    %v4646 = vmul.f32 1.0, %v4645
    %v4647 = vrcp.pop %v4634
    %v4648 = vmul.f32 1.0, %v4647
    %v4649 = vrcp.pop %v4635
    %v4650 = vmul.f32 1.0, %v4649
    %v4651 = vrcp.pop %v4636
    %v4652 = vmul.f32 1.0, %v4651
    %v4653 = vrcp.pop %v4637
    %v4654 = vmul.f32 1.0, %v4653
    %v4655 = vrcp.pop %v4638
    %v4656 = vmul.f32 1.0, %v4655
    %v4657 = vrcp.pop %v4639
    %v4658 = vmul.f32 1.0, %v4657
    %v4659 = vrcp.pop %v4640
    %v4660 = vmul.f32 1.0, %v4659
    %v4661 = vrcp.pop %v4641
    %v4662 = vmul.f32 1.0, %v4661
    %v4663 = vrcp.pop %v4642
    %v4664 = vmul.f32 1.0, %v4663
    %v4665 = vrcp.pop %v4643
    %v4666 = vmul.f32 1.0, %v4665
    %v4667 = vrcp.pop %v4644
    %v4668 = vmul.f32 1.0, %v4667
    %v4669 = vtanh.pop %v4584
    %v4670 = vtanh.pop %v4588
    %v4671 = vtanh.pop %v4592
    %v4672 = vtanh.pop %v4596
    %v4673 = vmul.f32 %v4648, %v4100
    %v4674 = vmul.f32 %v4654, %v4101
    %v4675 = vmul.f32 %v4660, %v4102
    %v4676 = vmul.f32 %v4666, %v4103
    %v4677 = vmul.f32 %v4646, %v4669
    %v4678 = vmul.f32 %v4652, %v4670
    %v4679 = vmul.f32 %v4658, %v4671
    %v4680 = vmul.f32 %v4664, %v4672
    %v4681 = vadd.f32 %v4673, %v4677
    %v4682 = vadd.f32 %v4674, %v4678
    %v4683 = vadd.f32 %v4675, %v4679
    %v4684 = vadd.f32 %v4676, %v4680
    %v4685 = vtanh.pop %v4681
    %v4686 = vtanh.pop %v4682
    %v4687 = vtanh.pop %v4683
    %v4688 = vtanh.pop %v4684
    %v4689 = vmul.f32 %v4650, %v4685
    %v4690 = vmul.f32 %v4656, %v4686
    %v4691 = vmul.f32 %v4662, %v4687
    %v4692 = vmul.f32 %v4668, %v4688
    %4693 = vmatprep.subr.mxu0 %v483
    %4694 = vmatpush1.msra.mxu0 %v482
    %4695 = vmatprep.subr.mxu0 %v487
    %4696 = vmatpush1.msra.mxu0 %v486
    %4697 = vmatprep.subr.mxu0 %v491
    %4698 = vmatpush1.msra.mxu0 %v490
    %4699 = vmatprep.subr.mxu0 %v495
    %4700 = vmatpush1.msra.mxu0 %v494
    %4701 = vmatprep.subr.mxu0 %v499
    %4702 = vmatpush1.msra.mxu0 %v498
    %4703 = vmatprep.subr.mxu0 %v503
    %4704 = vmatpush1.msra.mxu0 %v502
    %4705 = vmatprep.subr.mxu0 %v507
    %4706 = vmatpush1.msra.mxu0 %v506
    %4707 = vmatprep.subr.mxu0 %v511
    %4708 = vmatpush1.msra.mxu0 %v510
    %4709 = vmatprep.subr.mxu0 %v515
    %4710 = vmatpush1.msra.mxu0 %v514
    %4711 = vmatprep.subr.mxu0 %v519
    %4712 = vmatpush1.msra.mxu0 %v518
    %4713 = vmatprep.subr.mxu0 %v523
    %4714 = vmatpush1.msra.mxu0 %v522
    %4715 = vmatprep.subr.mxu0 %v527
    %4716 = vmatpush1.msra.mxu0 %v526
    %4717 = vmatprep.subr.mxu0 %v531
    %4718 = vmatpush1.msra.mxu0 %v530
    %4719 = vmatprep.subr.mxu0 %v535
    %4720 = vmatpush1.msra.mxu0 %v534
    %4721 = vmatprep.subr.mxu0 %v539
    %4722 = vmatpush1.msra.mxu0 %v538
    %4723 = vmatprep.subr.mxu0 %v543
    %4724 = vmatpush1.msra.mxu0 %v542
    %4725 = vmatprep.subr.mxu0 %v547
    %4726 = vmatpush1.msra.mxu0 %v546
    %4727 = vmatprep.subr.mxu0 %v551
    %4728 = vmatpush1.msra.mxu0 %v550
    %4729 = vmatprep.subr.mxu0 %v555
    %4730 = vmatpush1.msra.mxu0 %v554
    %4731 = vmatprep.subr.mxu0 %v559
    %4732 = vmatpush1.msra.mxu0 %v558
    %4733 = vmatprep.subr.mxu0 %v563
    %4734 = vmatpush1.msra.mxu0 %v562
    %4735 = vmatprep.subr.mxu0 %v567
    %4736 = vmatpush1.msra.mxu0 %v566
    %4737 = vmatprep.subr.mxu0 %v571
    %4738 = vmatpush1.msra.mxu0 %v570
    %4739 = vmatprep.subr.mxu0 %v575
    %4740 = vmatpush1.msra.mxu0 %v574
    %4741 = vmatprep.subr.mxu0 %v579
    %4742 = vmatpush1.msra.mxu0 %v578
    %4743 = vmatprep.subr.mxu0 %v583
    %4744 = vmatpush1.msra.mxu0 %v582
    %4745 = vmatprep.subr.mxu0 %v587
    %4746 = vmatpush1.msra.mxu0 %v586
    %4747 = vmatprep.subr.mxu0 %v591
    %4748 = vmatpush1.msra.mxu0 %v590
    %4749 = vmatprep.subr.mxu0 %v595
    %4750 = vmatpush1.msra.mxu0 %v594
    %4751 = vmatprep.subr.mxu0 %v599
    %4752 = vmatpush1.msra.mxu0 %v598
    %4753 = vmatprep.subr.mxu0 %v603
    %4754 = vmatpush1.msra.mxu0 %v602
    %4755 = vmatprep.subr.mxu0 %v607
    %4756 = vmatpush1.msra.mxu0 %v606
    %4757 = vmatprep.mubr.f32.mxu0 %v4382
    %4758 = vmatmul.mubr.f32.gmra.mrb[0].mxu0 %v4689
    %v4759 = vpop.f32.mrb[0].mxu0
    %v4760 = vadd.f32 %v610, %v4759
    %v4761 = vpop.f32.mrb[0].mxu0
    %v4762 = vadd.f32 %v611, %v4761
    %4763 = vmatprep.mubr.f32.mxu0 %v4383
    %4764 = vmatmul.mubr.f32.gmra.mrb[0].mxu0 %v4690
    %v4765 = vpop.f32.mrb[0].mxu0
    %v4766 = vadd.f32 %v614, %v4765
    %v4767 = vpop.f32.mrb[0].mxu0
    %v4768 = vadd.f32 %v615, %v4767
    %4769 = vmatprep.mubr.f32.mxu0 %v4384
    %4770 = vmatmul.mubr.f32.gmra.mrb[0].mxu0 %v4691
    %v4771 = vpop.f32.mrb[0].mxu0
    %v4772 = vadd.f32 %v618, %v4771
    %v4773 = vpop.f32.mrb[0].mxu0
    %v4774 = vadd.f32 %v619, %v4773
    %4775 = vmatprep.mubr.f32.mxu0 %v4385
    %4776 = vmatmul.mubr.f32.gmra.mrb[0].mxu0 %v4692
    %v4777 = vpop.f32.mrb[0].mxu0
    %v4778 = vadd.f32 %v622, %v4777
    %v4779 = vpop.f32.mrb[0].mxu0
    %v4780 = vadd.f32 %v623, %v4779
    %4781 = vdwg.mxu0
    %4782 = vmatprep.subr.mxu0 %v485
    %4783 = vmatpush1.msra.mxu0 %v484
    %4784 = vmatprep.subr.mxu0 %v489
    %4785 = vmatpush1.msra.mxu0 %v488
    %4786 = vmatprep.subr.mxu0 %v493
    %4787 = vmatpush1.msra.mxu0 %v492
    %4788 = vmatprep.subr.mxu0 %v497
    %4789 = vmatpush1.msra.mxu0 %v496
    %4790 = vmatprep.subr.mxu0 %v501
    %4791 = vmatpush1.msra.mxu0 %v500
    %4792 = vmatprep.subr.mxu0 %v505
    %4793 = vmatpush1.msra.mxu0 %v504
    %4794 = vmatprep.subr.mxu0 %v509
    %4795 = vmatpush1.msra.mxu0 %v508
    %4796 = vmatprep.subr.mxu0 %v513
    %4797 = vmatpush1.msra.mxu0 %v512
    %4798 = vmatprep.subr.mxu0 %v517
    %4799 = vmatpush1.msra.mxu0 %v516
    %4800 = vmatprep.subr.mxu0 %v521
    %4801 = vmatpush1.msra.mxu0 %v520
    %4802 = vmatprep.subr.mxu0 %v525
    %4803 = vmatpush1.msra.mxu0 %v524
    %4804 = vmatprep.subr.mxu0 %v529
    %4805 = vmatpush1.msra.mxu0 %v528
    %4806 = vmatprep.subr.mxu0 %v533
    %4807 = vmatpush1.msra.mxu0 %v532
    %4808 = vmatprep.subr.mxu0 %v537
    %4809 = vmatpush1.msra.mxu0 %v536
    %4810 = vmatprep.subr.mxu0 %v541
    %4811 = vmatpush1.msra.mxu0 %v540
    %4812 = vmatprep.subr.mxu0 %v545
    %4813 = vmatpush1.msra.mxu0 %v544
    %4814 = vmatprep.subr.mxu0 %v549
    %4815 = vmatpush1.msra.mxu0 %v548
    %4816 = vmatprep.subr.mxu0 %v553
    %4817 = vmatpush1.msra.mxu0 %v552
    %4818 = vmatprep.subr.mxu0 %v557
    %4819 = vmatpush1.msra.mxu0 %v556
    %4820 = vmatprep.subr.mxu0 %v561
    %4821 = vmatpush1.msra.mxu0 %v560
    %4822 = vmatprep.subr.mxu0 %v565
    %4823 = vmatpush1.msra.mxu0 %v564
    %4824 = vmatprep.subr.mxu0 %v569
    %4825 = vmatpush1.msra.mxu0 %v568
    %4826 = vmatprep.subr.mxu0 %v573
    %4827 = vmatpush1.msra.mxu0 %v572
    %4828 = vmatprep.subr.mxu0 %v577
    %4829 = vmatpush1.msra.mxu0 %v576
    %4830 = vmatprep.subr.mxu0 %v581
    %4831 = vmatpush1.msra.mxu0 %v580
    %4832 = vmatprep.subr.mxu0 %v585
    %4833 = vmatpush1.msra.mxu0 %v584
    %4834 = vmatprep.subr.mxu0 %v589
    %4835 = vmatpush1.msra.mxu0 %v588
    %4836 = vmatprep.subr.mxu0 %v593
    %4837 = vmatpush1.msra.mxu0 %v592
    %4838 = vmatprep.subr.mxu0 %v597
    %4839 = vmatpush1.msra.mxu0 %v596
    %4840 = vmatprep.subr.mxu0 %v601
    %4841 = vmatpush1.msra.mxu0 %v600
    %4842 = vmatprep.subr.mxu0 %v605
    %4843 = vmatpush1.msra.mxu0 %v604
    %4844 = vmatprep.subr.mxu0 %v609
    %4845 = vmatpush1.msra.mxu0 %v608
    %4846 = vmatprep.mubr.f32.mxu0 %v4382
    %4847 = vmatmul.mubr.f32.gmra.mrb[0].mxu0 %v4689
    %v4848 = vpop.f32.mrb[0].mxu0
    %v4849 = vadd.f32 %v612, %v4848
    %v4850 = vpop.f32.mrb[0].mxu0
    %v4851 = vadd.f32 %v613, %v4850
    %4852 = vmatprep.mubr.f32.mxu0 %v4383
    %4853 = vmatmul.mubr.f32.gmra.mrb[0].mxu0 %v4690
    %v4854 = vpop.f32.mrb[0].mxu0
    %v4855 = vadd.f32 %v616, %v4854
    %v4856 = vpop.f32.mrb[0].mxu0
    %v4857 = vadd.f32 %v617, %v4856
    %4858 = vmatprep.mubr.f32.mxu0 %v4384
    %4859 = vmatmul.mubr.f32.gmra.mrb[0].mxu0 %v4691
    %v4860 = vpop.f32.mrb[0].mxu0
    %v4861 = vadd.f32 %v620, %v4860
    %v4862 = vpop.f32.mrb[0].mxu0
    %v4863 = vadd.f32 %v621, %v4862
    %4864 = vmatprep.mubr.f32.mxu0 %v4385
    %4865 = vmatmul.mubr.f32.gmra.mrb[0].mxu0 %v4692
    %v4866 = vpop.f32.mrb[0].mxu0
    %v4867 = vadd.f32 %v624, %v4866
    %v4868 = vpop.f32.mrb[0].mxu0
    %v4869 = vadd.f32 %v625, %v4868
    %4870 = vdwg.mxu0
    %v4871 = vxor.u32 %v4760, 2147483648
    %v4872 = vxor.u32 %v4762, 2147483648
    %v4873 = vxor.u32 %v4849, 2147483648
    %v4874 = vxor.u32 %v4766, 2147483648
    %v4875 = vxor.u32 %v4768, 2147483648
    %v4876 = vxor.u32 %v4855, 2147483648
    %v4877 = vxor.u32 %v4772, 2147483648
    %v4878 = vxor.u32 %v4774, 2147483648
    %v4879 = vxor.u32 %v4861, 2147483648
    %v4880 = vxor.u32 %v4778, 2147483648
    %v4881 = vxor.u32 %v4780, 2147483648
    %v4882 = vxor.u32 %v4867, 2147483648
    %v4883 = vmul.f32 %v4871, 1.442695
    %v4884 = vpow.pop %v4883
    %v4885 = vmul.f32 %v4872, 1.442695
    %v4886 = vpow.pop %v4885
    %v4887 = vmul.f32 %v4873, 1.442695
    %v4888 = vpow.pop %v4887
    %v4889 = vmul.f32 %v4874, 1.442695
    %v4890 = vpow.pop %v4889
    %v4891 = vmul.f32 %v4875, 1.442695
    %v4892 = vpow.pop %v4891
    %v4893 = vmul.f32 %v4876, 1.442695
    %v4894 = vpow.pop %v4893
    %v4895 = vmul.f32 %v4877, 1.442695
    %v4896 = vpow.pop %v4895
    %v4897 = vmul.f32 %v4878, 1.442695
    %v4898 = vpow.pop %v4897
    %v4899 = vmul.f32 %v4879, 1.442695
    %v4900 = vpow.pop %v4899
    %v4901 = vmul.f32 %v4880, 1.442695
    %v4902 = vpow.pop %v4901
    %v4903 = vmul.f32 %v4881, 1.442695
    %v4904 = vpow.pop %v4903
    %v4905 = vmul.f32 %v4882, 1.442695
    %v4906 = vpow.pop %v4905
    %v4907 = vadd.f32 %v4884, 1.0
    %v4908 = vadd.f32 %v4886, 1.0
    %v4909 = vadd.f32 %v4888, 1.0
    %v4910 = vadd.f32 %v4890, 1.0
    %v4911 = vadd.f32 %v4892, 1.0
    %v4912 = vadd.f32 %v4894, 1.0
    %v4913 = vadd.f32 %v4896, 1.0
    %v4914 = vadd.f32 %v4898, 1.0
    %v4915 = vadd.f32 %v4900, 1.0
    %v4916 = vadd.f32 %v4902, 1.0
    %v4917 = vadd.f32 %v4904, 1.0
    %v4918 = vadd.f32 %v4906, 1.0
    %v4919 = vrcp.pop %v4907
    %v4920 = vmul.f32 1.0, %v4919
    %v4921 = vrcp.pop %v4908
    %v4922 = vmul.f32 1.0, %v4921
    %v4923 = vrcp.pop %v4909
    %v4924 = vmul.f32 1.0, %v4923
    %v4925 = vrcp.pop %v4910
    %v4926 = vmul.f32 1.0, %v4925
    %v4927 = vrcp.pop %v4911
    %v4928 = vmul.f32 1.0, %v4927
    %v4929 = vrcp.pop %v4912
    %v4930 = vmul.f32 1.0, %v4929
    %v4931 = vrcp.pop %v4913
    %v4932 = vmul.f32 1.0, %v4931
    %v4933 = vrcp.pop %v4914
    %v4934 = vmul.f32 1.0, %v4933
    %v4935 = vrcp.pop %v4915
    %v4936 = vmul.f32 1.0, %v4935
    %v4937 = vrcp.pop %v4916
    %v4938 = vmul.f32 1.0, %v4937
    %v4939 = vrcp.pop %v4917
    %v4940 = vmul.f32 1.0, %v4939
    %v4941 = vrcp.pop %v4918
    %v4942 = vmul.f32 1.0, %v4941
    %v4943 = vtanh.pop %v4851
    %v4944 = vtanh.pop %v4857
    %v4945 = vtanh.pop %v4863
    %v4946 = vtanh.pop %v4869
    %v4947 = vmul.f32 %v4922, %v4374
    %v4948 = vmul.f32 %v4928, %v4375
    %v4949 = vmul.f32 %v4934, %v4376
    %v4950 = vmul.f32 %v4940, %v4377
    %v4951 = vmul.f32 %v4920, %v4943
    %v4952 = vmul.f32 %v4926, %v4944
    %v4953 = vmul.f32 %v4932, %v4945
    %v4954 = vmul.f32 %v4938, %v4946
    %v4955 = vadd.f32 %v4947, %v4951
    %v4956 = vadd.f32 %v4948, %v4952
    %v4957 = vadd.f32 %v4949, %v4953
    %v4958 = vadd.f32 %v4950, %v4954
    %v4959 = vtanh.pop %v4955
    %v4960 = vtanh.pop %v4956
    %v4961 = vtanh.pop %v4957
    %v4962 = vtanh.pop %v4958
    %v4963 = vmul.f32 %v4924, %v4959
    %v4964 = vmul.f32 %v4930, %v4960
    %v4965 = vmul.f32 %v4936, %v4961
    %v4966 = vmul.f32 %v4942, %v4962
    %v4967 = vld [vmem:[#allocation10] sm:$0xff]
    %v4968 = vld [vmem:[#allocation10 + $0x8] sm:$0xff]
    %v4969 = vld [vmem:[#allocation10 + $0x10] sm:$0xff]
    %v4970 = vld [vmem:[#allocation10 + $0x18] sm:$0xff]
    %v4971 = vld [vmem:[#allocation10 + $0x20] sm:$0xff]
    %v4972 = vld [vmem:[#allocation10 + $0x28] sm:$0xff]
    %v4973 = vld [vmem:[#allocation10 + $0x30] sm:$0xff]
    %v4974 = vld [vmem:[#allocation10 + $0x38] sm:$0xff]
    %v4975 = vld [vmem:[#allocation10 + $0x40] sm:$0xff]
    %v4976 = vld [vmem:[#allocation10 + $0x48] sm:$0xff]
    %v4977 = vld [vmem:[#allocation10 + $0x50] sm:$0xff]
    %v4978 = vld [vmem:[#allocation10 + $0x58] sm:$0xff]
    %v4979 = vld [vmem:[#allocation10 + $0x60] sm:$0xff]
    %v4980 = vld [vmem:[#allocation10 + $0x68] sm:$0xff]
    %v4981 = vld [vmem:[#allocation10 + $0x70] sm:$0xff]
    %v4982 = vld [vmem:[#allocation10 + $0x78] sm:$0xff]
    %v4983 = vld [vmem:[%s5] sm:$0x1]
    %v4985 = vlaneseq
    %v4986 = vshrl.u32 %v4985, 7
    %v4987 = vsub.s32 0, %v4986
    %v4988 = vrot.slane %v4983, %v4987
    %4990 = vmatprep.subr.mxu0 0.0
    %4991 = vmatpush1.msra.mxu0 %v4967
    %4992 = vmatprep.subr.mxu0 0.0
    %4993 = vmatpush1.msra.mxu0 %v4968
    %4994 = vmatprep.subr.mxu0 0.0
    %4995 = vmatpush1.msra.mxu0 %v4969
    %4996 = vmatprep.subr.mxu0 0.0
    %4997 = vmatpush1.msra.mxu0 %v4970
    %4998 = vmatprep.subr.mxu0 0.0
    %4999 = vmatpush1.msra.mxu0 %v4971
    %5000 = vmatprep.subr.mxu0 0.0
    %5001 = vmatpush1.msra.mxu0 %v4972
    %5002 = vmatprep.subr.mxu0 0.0
    %5003 = vmatpush1.msra.mxu0 %v4973
    %5004 = vmatprep.subr.mxu0 0.0
    %5005 = vmatpush1.msra.mxu0 %v4974
    %5006 = vmatprep.subr.mxu0 0.0
    %5007 = vmatpush1.msra.mxu0 %v4975
    %5008 = vmatprep.subr.mxu0 0.0
    %5009 = vmatpush1.msra.mxu0 %v4976
    %5010 = vmatprep.subr.mxu0 0.0
    %5011 = vmatpush1.msra.mxu0 %v4977
    %5012 = vmatprep.subr.mxu0 0.0
    %5013 = vmatpush1.msra.mxu0 %v4978
    %5014 = vmatprep.subr.mxu0 0.0
    %5015 = vmatpush1.msra.mxu0 %v4979
    %5016 = vmatprep.subr.mxu0 0.0
    %5017 = vmatpush1.msra.mxu0 %v4980
    %5018 = vmatprep.subr.mxu0 0.0
    %5019 = vmatpush1.msra.mxu0 %v4981
    %5020 = vmatprep.subr.mxu0 0.0
    %5021 = vmatpush1.msra.mxu0 %v4982
    %5022 = vmatprep.subr.mxu0 0.0
    %5023 = vmatpush1.msra.mxu0 0.0
    %5024 = vmatprep.subr.mxu0 0.0
    %5025 = vmatpush1.msra.mxu0 0.0
    %5026 = vmatprep.subr.mxu0 0.0
    %5027 = vmatpush1.msra.mxu0 0.0
    %5028 = vmatprep.subr.mxu0 0.0
    %5029 = vmatpush1.msra.mxu0 0.0
    %5030 = vmatprep.subr.mxu0 0.0
    %5031 = vmatpush1.msra.mxu0 0.0
    %5032 = vmatprep.subr.mxu0 0.0
    %5033 = vmatpush1.msra.mxu0 0.0
    %5034 = vmatprep.subr.mxu0 0.0
    %5035 = vmatpush1.msra.mxu0 0.0
    %5036 = vmatprep.subr.mxu0 0.0
    %5037 = vmatpush1.msra.mxu0 0.0
    %5038 = vmatprep.subr.mxu0 0.0
    %5039 = vmatpush1.msra.mxu0 0.0
    %5040 = vmatprep.subr.mxu0 0.0
    %5041 = vmatpush1.msra.mxu0 0.0
    %5042 = vmatprep.subr.mxu0 0.0
    %5043 = vmatpush1.msra.mxu0 0.0
    %5044 = vmatprep.subr.mxu0 0.0
    %5045 = vmatpush1.msra.mxu0 0.0
    %5046 = vmatprep.subr.mxu0 0.0
    %5047 = vmatpush1.msra.mxu0 0.0
    %5048 = vmatprep.subr.mxu0 0.0
    %5049 = vmatpush1.msra.mxu0 0.0
    %5050 = vmatprep.subr.mxu0 0.0
    %5051 = vmatpush1.msra.mxu0 0.0
    %5052 = vmatprep.subr.mxu0 0.0
    %5053 = vmatpush1.msra.mxu0 0.0
    %5054 = vmatprep.mubr.f32.mxu0 0.0
    %5055 = vmatmul.mubr.f32.gmra.mrb[0].mxu0 %v4963
    %v5056 = vpop.f32.mrb[0].mxu0
    %v5057 = vadd.f32 %v4988, %v5056
    %v5058 = vpop.f32.mrb[0].mxu0
    %5059 = vmatprep.mubr.f32.mxu0 0.0
    %5060 = vmatmul.mubr.f32.gmra.mrb[0].mxu0 %v4964
    %v5061 = vpop.f32.mrb[0].mxu0
    %v5062 = vadd.f32 %v4988, %v5061
    %v5063 = vpop.f32.mrb[0].mxu0
    %5064 = vmatprep.mubr.f32.mxu0 0.0
    %5065 = vmatmul.mubr.f32.gmra.mrb[0].mxu0 %v4965
    %v5066 = vpop.f32.mrb[0].mxu0
    %v5067 = vadd.f32 %v4988, %v5066
    %v5068 = vpop.f32.mrb[0].mxu0
    %5069 = vmatprep.mubr.f32.mxu0 0.0
    %5070 = vmatmul.mubr.f32.gmra.mrb[0].mxu0 %v4966
    %v5071 = vpop.f32.mrb[0].mxu0
    %v5072 = vadd.f32 %v4988, %v5071
    %v5073 = vpop.f32.mrb[0].mxu0
    %5074 = vdwg.mxu0
    %v5075 = vmax.f32 %v5057, 0.0
    %v5076 = vmax.f32 %v5062, 0.0
    %v5077 = vmax.f32 %v5067, 0.0
    %v5078 = vmax.f32 %v5072, 0.0
    %v5079 = vld [vmem:[#allocation11] sm:$0xff]
    %v5080 = vld [vmem:[#allocation11 + $0x8] sm:$0xff]
    %v5081 = vld [vmem:[#allocation11 + $0x10] sm:$0xff]
    %v5082 = vld [vmem:[#allocation11 + $0x18] sm:$0xff]
    %v5083 = vld [vmem:[#allocation11 + $0x20] sm:$0xff]
    %v5084 = vld [vmem:[#allocation11 + $0x28] sm:$0xff]
    %v5085 = vld [vmem:[#allocation11 + $0x30] sm:$0xff]
    %v5086 = vld [vmem:[#allocation11 + $0x38] sm:$0xff]
    %v5087 = vld [vmem:[#allocation11 + $0x40] sm:$0xff]
    %v5088 = vld [vmem:[#allocation11 + $0x48] sm:$0xff]
    %v5089 = vld [vmem:[#allocation11 + $0x50] sm:$0xff]
    %v5090 = vld [vmem:[#allocation11 + $0x58] sm:$0xff]
    %v5091 = vld [vmem:[#allocation11 + $0x60] sm:$0xff]
    %v5092 = vld [vmem:[#allocation11 + $0x68] sm:$0xff]
    %v5093 = vld [vmem:[#allocation11 + $0x70] sm:$0xff]
    %v5094 = vld [vmem:[#allocation11 + $0x78] sm:$0xff]
    %v5095 = vld [vmem:[%s7] sm:$0x1]
    %v5097 = vlaneseq
    %v5098 = vshrl.u32 %v5097, 7
    %v5099 = vsub.s32 0, %v5098
    %v5100 = vrot.slane %v5095, %v5099
    %5102 = vmatprep.subr.mxu0 0.0
    %5103 = vmatpush1.msra.mxu0 %v5079
    %5104 = vmatprep.subr.mxu0 0.0
    %5105 = vmatpush1.msra.mxu0 %v5080
    %5106 = vmatprep.subr.mxu0 0.0
    %5107 = vmatpush1.msra.mxu0 %v5081
    %5108 = vmatprep.subr.mxu0 0.0
    %5109 = vmatpush1.msra.mxu0 %v5082
    %5110 = vmatprep.subr.mxu0 0.0
    %5111 = vmatpush1.msra.mxu0 %v5083
    %5112 = vmatprep.subr.mxu0 0.0
    %5113 = vmatpush1.msra.mxu0 %v5084
    %5114 = vmatprep.subr.mxu0 0.0
    %5115 = vmatpush1.msra.mxu0 %v5085
    %5116 = vmatprep.subr.mxu0 0.0
    %5117 = vmatpush1.msra.mxu0 %v5086
    %5118 = vmatprep.subr.mxu0 0.0
    %5119 = vmatpush1.msra.mxu0 %v5087
    %5120 = vmatprep.subr.mxu0 0.0
    %5121 = vmatpush1.msra.mxu0 %v5088
    %5122 = vmatprep.subr.mxu0 0.0
    %5123 = vmatpush1.msra.mxu0 %v5089
    %5124 = vmatprep.subr.mxu0 0.0
    %5125 = vmatpush1.msra.mxu0 %v5090
    %5126 = vmatprep.subr.mxu0 0.0
    %5127 = vmatpush1.msra.mxu0 %v5091
    %5128 = vmatprep.subr.mxu0 0.0
    %5129 = vmatpush1.msra.mxu0 %v5092
    %5130 = vmatprep.subr.mxu0 0.0
    %5131 = vmatpush1.msra.mxu0 %v5093
    %5132 = vmatprep.subr.mxu0 0.0
    %5133 = vmatpush1.msra.mxu0 %v5094
    %5134 = vmatprep.subr.mxu0 0.0
    %5135 = vmatpush1.msra.mxu0 0.0
    %5136 = vmatprep.subr.mxu0 0.0
    %5137 = vmatpush1.msra.mxu0 0.0
    %5138 = vmatprep.subr.mxu0 0.0
    %5139 = vmatpush1.msra.mxu0 0.0
    %5140 = vmatprep.subr.mxu0 0.0
    %5141 = vmatpush1.msra.mxu0 0.0
    %5142 = vmatprep.subr.mxu0 0.0
    %5143 = vmatpush1.msra.mxu0 0.0
    %5144 = vmatprep.subr.mxu0 0.0
    %5145 = vmatpush1.msra.mxu0 0.0
    %5146 = vmatprep.subr.mxu0 0.0
    %5147 = vmatpush1.msra.mxu0 0.0
    %5148 = vmatprep.subr.mxu0 0.0
    %5149 = vmatpush1.msra.mxu0 0.0
    %5150 = vmatprep.subr.mxu0 0.0
    %5151 = vmatpush1.msra.mxu0 0.0
    %5152 = vmatprep.subr.mxu0 0.0
    %5153 = vmatpush1.msra.mxu0 0.0
    %5154 = vmatprep.subr.mxu0 0.0
    %5155 = vmatpush1.msra.mxu0 0.0
    %5156 = vmatprep.subr.mxu0 0.0
    %5157 = vmatpush1.msra.mxu0 0.0
    %5158 = vmatprep.subr.mxu0 0.0
    %5159 = vmatpush1.msra.mxu0 0.0
    %5160 = vmatprep.subr.mxu0 0.0
    %5161 = vmatpush1.msra.mxu0 0.0
    %5162 = vmatprep.subr.mxu0 0.0
    %5163 = vmatpush1.msra.mxu0 0.0
    %5164 = vmatprep.subr.mxu0 0.0
    %5165 = vmatpush1.msra.mxu0 0.0
    %5166 = vmatprep.mubr.f32.mxu0 0.0
    %5167 = vmatmul.mubr.f32.gmra.mrb[0].mxu0 %v5075
    %v5168 = vpop.f32.mrb[0].mxu0
    %v5169 = vadd.f32 %v5100, %v5168
    %v5170 = vpop.f32.mrb[0].mxu0
    %5171 = vmatprep.mubr.f32.mxu0 0.0
    %5172 = vmatmul.mubr.f32.gmra.mrb[0].mxu0 %v5076
    %v5173 = vpop.f32.mrb[0].mxu0
    %v5174 = vadd.f32 %v5100, %v5173
    %v5175 = vpop.f32.mrb[0].mxu0
    %5176 = vmatprep.mubr.f32.mxu0 0.0
    %5177 = vmatmul.mubr.f32.gmra.mrb[0].mxu0 %v5077
    %v5178 = vpop.f32.mrb[0].mxu0
    %v5179 = vadd.f32 %v5100, %v5178
    %v5180 = vpop.f32.mrb[0].mxu0
    %5181 = vmatprep.mubr.f32.mxu0 0.0
    %5182 = vmatmul.mubr.f32.gmra.mrb[0].mxu0 %v5078
    %v5183 = vpop.f32.mrb[0].mxu0
    %v5184 = vadd.f32 %v5100, %v5183
    %v5185 = vpop.f32.mrb[0].mxu0
    %5186 = vdwg.mxu0
    %5187 = vst [vmem:[#allocation13] sm:$0xff] %v5169
    %5188 = vst [vmem:[#allocation13 + $0x8] sm:$0xff] %v5174
    %5189 = vst [vmem:[#allocation13 + $0x10] sm:$0xff] %v5179
    %5190 = vst [vmem:[#allocation13 + $0x18] sm:$0xff] %v5184
    // Predicated region
    $region58: #{tpu_custom_call.1} parent=1 // pred_check
      _
    $region59: #{tpu_custom_call.1} parent=1 // pred_check_branch
      %5192 = sbr.rel (0) target = $region61
    $region60: #{tpu_custom_call.1} parent=1 // pred_region
      %s5194 = ssub.s32 512, 512
      %5195 = vsyncadd [#allocation4], %s5194
      %s5196 = sshll.u32 [#allocation13], 4
      %s5197 = int_to_ptr.vmem [resolvable:$true] %s5196
      %5202 = dma.vmem_to_hbm [thread:$0]  %s5197, 512, %s8, [#allocation4], 128, 128, 8
    $region61: #{tpu_custom_call.1} parent=1 // pred_fallthru
      _
    // Predicated region
    $region62: #{tpu_custom_call.1} parent=1 // pred_check
      _
    $region63: #{tpu_custom_call.1} parent=1 // pred_check_branch
      %5204 = sbr.rel (0) target = $region65
    $region64: #{tpu_custom_call.1} parent=1 // pred_region
      %5205 = dma.done [#allocation4], 512
    $region65: #{tpu_custom_call.1} parent=1 // pred_fallthru
      _
    %5206 = vsyncpa [#allocation3], 1
    %5207 = vsyncpa [#allocation6], 1
    %5208 = vsyncpa [#allocation9], 1
    %5209 = vsyncpa [#allocation12], 1
    %5210 = vsyncpa [#allocation4], 1

</llo_original>
